<compile_context>
chip_gen: v7x
topology: tpu7x:2x2x1
jax: 0.10.0
libtpu: 0.0.40
codegen_flags: <defaults>
</compile_context>

<pallas_src>
import functools
import math

import jax
import jax.numpy as jnp
from jax.experimental import pallas as pl
from jax.experimental.pallas import tpu as pltpu


def _sigmoid(z):
    # exact logistic via tanh: stays on the EUP, no divide, no exp overflow
    return 0.5 * jnp.tanh(0.5 * z) + 0.5


def bigru_cnn_bigru_kernel(
    xcat_ref,                                  # (T*P, 2D) bf16  [x | time-reversed x], P-padded rows
    w1_ref, bi1_ref,                           # (2D, 6H) bf16, (1, 6H) f32   gate cols [rf rb zf zb nf nb]
    u1_ref, bh1_ref,                           # (2H, 6H) bf16, (1, 6H) f32   block-diag fwd/bwd
    wc_ref, bc_ref, gam_ref, bet_ref,          # (K, 2H, F) bf16, (1,F) f32 x3
    w2_ref, bi2_ref,                           # (2F, 6H) bf16, (1, 6H) f32
    u2_ref, bh2_ref,                           # (2H, 6H) bf16, (1, 6H) f32   block-diag fwd/bwd
    wfc_ref, bfc_ref,                          # (2H, S) bf16, (1, S) f32
    out_ref,                                   # (B, S) f32
    gi1_ref, seq1_ref, x2_ref, gi2_ref,        # VMEM scratch
    *, T, P,
):
    B = out_ref.shape[0]
    K, H2, F = wc_ref.shape                    # H2 = 2H
    H = H2 // 2
    G = 2 * H2                                 # fused r|z lane width (= 128 for H = 32)
    T2 = T // 2
    TP = T * P

    # ---- BiGRU-1 input projections, hoisted out of the recurrence ----------
    # one (T*P, 2D)@(2D, 6H) bf16 matmul covers both directions and all gates.
    gi1_ref[...] = (
        jnp.dot(xcat_ref[...], w1_ref[...], preferred_element_type=jnp.float32)
        + bi1_ref[...])

    # zero the conv halo row blocks (padded times -1 and T)
    seq1_ref[0:P, :] = jnp.zeros((P, H2), jnp.float32)
    seq1_ref[(T + 1) * P:(T + 2) * P, :] = jnp.zeros((P, H2), jnp.float32)

    # ---- fused bidirectional GRU-1 (single fully-unrolled scan) ------------
    # carry = [h_fwd | h_bwd] (P, 2H); block-diag u1 gives both directions'
    # recurrent gate pre-activations in one MXU push per step; r|z share one
    # 128-lane sigmoid.
    u1 = u1_ref[...]
    bh1 = bh1_ref[...]
    hcat = jnp.zeros((P, H2), jnp.float32)
    for t in range(T):                         # static unroll (T = 16)
        gi = gi1_ref[t * P:(t + 1) * P, :]     # fwd gates use x[t], bwd gates use x[T-1-t]
        gh = jnp.dot(hcat.astype(jnp.bfloat16), u1,
                     preferred_element_type=jnp.float32) + bh1
        rz = _sigmoid(gi[:, 0:G] + gh[:, 0:G])
        n = jnp.tanh(gi[:, G:G + H2] + rz[:, 0:H2] * gh[:, G:G + H2])
        z = rz[:, H2:G]
        hcat = (1.0 - z) * n + z * hcat
        seq1_ref[(t + 1) * P:(t + 2) * P, 0:H] = hcat[:, 0:H]       # fwd, time t
        seq1_ref[(T - t) * P:(T - t + 1) * P, H:H2] = hcat[:, H:H2]  # bwd, time T-1-t

    # ---- Conv1d(k=K, pad=1) + BatchNorm(eval, folded) + ReLU ----------------
    # K shifted (T*P, 2H)@(2H, F) dots, batched over all rows (fwd|bwd lanes
    # contract together thanks to the merged seq1 / stacked conv weights).
    acc = jnp.zeros((TP, F), jnp.float32) + bc_ref[...]
    for k in range(K):
        acc = acc + jnp.dot(seq1_ref[k * P:(k + T) * P, :].astype(jnp.bfloat16),
                            wc_ref[k], preferred_element_type=jnp.float32)
    acc = jnp.maximum(acc * gam_ref[...] + bet_ref[...], 0.0)
    # Dropout is identity in inference mode.

    # ---- MaxPool1d(2) over time, compacted to T2 row blocks ----------------
    # x2 block s: lanes [0:F] = pooled time s (fwd), lanes [F:2F] = pooled
    # time T2-1-s (bwd) -> GRU-2 reads one contiguous row block per step.
    for s in range(T2):
        blk = jnp.maximum(acc[(2 * s) * P:(2 * s + 1) * P, :],
                          acc[(2 * s + 1) * P:(2 * s + 2) * P, :])
        x2_ref[s * P:(s + 1) * P, 0:F] = blk
        x2_ref[(T2 - 1 - s) * P:(T2 - s) * P, F:2 * F] = blk

    # ---- BiGRU-2 input projections (both directions in one matmul) ---------
    gi2_ref[...] = (
        jnp.dot(x2_ref[...].astype(jnp.bfloat16), w2_ref[...],
                preferred_element_type=jnp.float32) + bi2_ref[...])

    # ---- fused bidirectional GRU-2 (only final hidden states needed) -------
    u2 = u2_ref[...]
    bh2 = bh2_ref[...]
    hcat2 = jnp.zeros((P, H2), jnp.float32)
    for s in range(T2):                        # static unroll (T2 = 8)
        gi = gi2_ref[s * P:(s + 1) * P, :]
        gh = jnp.dot(hcat2.astype(jnp.bfloat16), u2,
                     preferred_element_type=jnp.float32) + bh2
        rz = _sigmoid(gi[:, 0:G] + gh[:, 0:G])
        n = jnp.tanh(gi[:, G:G + H2] + rz[:, 0:H2] * gh[:, G:G + H2])
        z = rz[:, H2:G]
        hcat2 = (1.0 - z) * n + z * hcat2

    # ---- fc(cat(hn[-2], hn[-1])) as ONE dot on the fused carry --------------
    res = jnp.dot(hcat2.astype(jnp.bfloat16), wfc_ref[...],
                  preferred_element_type=jnp.float32) + bfc_ref[...]
    out_ref[...] = res[0:B, :]


def init_params(key, D, H, F, K, n_steps):
    """Deterministic synthetic weights in the PyTorch parameter layout."""
    ks = iter(jax.random.split(key, 28))

    def u(shape, scale):
        return jax.random.uniform(next(ks), shape, jnp.float32, -scale, scale)

    sH = 1.0 / math.sqrt(H)
    p = {}
    for d in ("f", "b"):                       # initial BiGRU (input = D)
        p[f"w_ih1{d}"] = u((3 * H, D), sH)
        p[f"w_hh1{d}"] = u((3 * H, H), sH)
        p[f"b_ih1{d}"] = u((3 * H,), sH)
        p[f"b_hh1{d}"] = u((3 * H,), sH)
    sc = 1.0 / math.sqrt(2 * H * K)            # Conv1d(2H -> F, K, pad=1)
    p["conv_w"] = u((F, 2 * H, K), sc)
    p["conv_b"] = u((F,), sc)
    p["bn_gamma"] = 1.0 + u((F,), 0.2)         # BatchNorm1d(F), eval statistics
    p["bn_beta"] = u((F,), 0.2)
    p["bn_mean"] = u((F,), 0.2)
    p["bn_var"] = 1.0 + u((F,), 0.3)
    for d in ("f", "b"):                       # final BiGRU (input = F)
        p[f"w_ih2{d}"] = u((3 * H, F), sH)
        p[f"w_hh2{d}"] = u((3 * H, H), sH)
        p[f"b_ih2{d}"] = u((3 * H,), sH)
        p[f"b_hh2{d}"] = u((3 * H,), sH)
    sf = 1.0 / math.sqrt(2 * H)                # fc(2H -> n_steps)
    p["fc_w"] = u((n_steps, 2 * H), sf)
    p["fc_b"] = u((n_steps,), sf)
    return p


def prepare_kernel_args(p, eps=1e-5):
    """Fold / re-layout PyTorch-style parameters into the kernel's layouts.

    Matmul weights are pre-cast to bfloat16 (MXU-native); biases / BN terms
    stay f32 since they feed the f32 elementwise gate math.
    """
    H = p["w_hh1f"].shape[1]

    def cast(a):
        return a.astype(jnp.bfloat16)

    def ih_interleaved(wf, wb):
        # (3H, Din) x2 -> (2*Din, 6H), gate cols [rf rb zf zb nf nb];
        # rows [0:Din] act on forward-time input, rows [Din:2Din] on reversed.
        din = wf.shape[1]
        wfT, wbT = wf.T, wb.T
        out = jnp.zeros((2 * din, 6 * H), jnp.float32)
        for g in range(3):
            out = out.at[:din, (2 * g) * H:(2 * g + 1) * H].set(wfT[:, g * H:(g + 1) * H])
            out = out.at[din:, (2 * g + 1) * H:(2 * g + 2) * H].set(wbT[:, g * H:(g + 1) * H])
        return out

    def hh_blockdiag(uf, ub):
        # (3H, H) x2 -> (2H, 6H): rows [0:H] = fwd h, rows [H:2H] = bwd h,
        # gate cols interleaved [rf rb zf zb nf nb] (block-diagonal per gate).
        ufT, ubT = uf.T, ub.T
        out = jnp.zeros((2 * H, 6 * H), jnp.float32)
        for g in range(3):
            out = out.at[:H, (2 * g) * H:(2 * g + 1) * H].set(ufT[:, g * H:(g + 1) * H])
            out = out.at[H:, (2 * g + 1) * H:(2 * g + 2) * H].set(ubT[:, g * H:(g + 1) * H])
        return out

    def bias_interleaved(bfwd, bbwd):
        parts = []
        for g in range(3):
            parts += [bfwd[g * H:(g + 1) * H], bbwd[g * H:(g + 1) * H]]
        return jnp.concatenate(parts).reshape(1, -1)

    gamma_eff = p["bn_gamma"] / jnp.sqrt(p["bn_var"] + eps)
    beta_eff = p["bn_beta"] - p["bn_mean"] * gamma_eff

    return (
        # BiGRU-1 (fused fwd/bwd, interleaved gates; input/hidden biases kept
        # separate so the hidden-side n-gate bias stays inside r * (...))
        cast(ih_interleaved(p["w_ih1f"], p["w_ih1b"])),
        bias_interleaved(p["b_ih1f"], p["b_ih1b"]),
        cast(hh_blockdiag(p["w_hh1f"], p["w_hh1b"])),
        bias_interleaved(p["b_hh1f"], p["b_hh1b"]),
        # Conv1d stacked over both directions: (K, 2H, F), channels [fwd|bwd]
        cast(jnp.transpose(p["conv_w"], (2, 1, 0))),
        p["conv_b"].reshape(1, -1),
        gamma_eff.reshape(1, -1),
        beta_eff.reshape(1, -1),
        # BiGRU-2, fused fwd/bwd with the same interleaved layout as GRU-1
        cast(ih_interleaved(p["w_ih2f"], p["w_ih2b"])),      # (2F, 6H)
        bias_interleaved(p["b_ih2f"], p["b_ih2b"]),
        cast(hh_blockdiag(p["w_hh2f"], p["w_hh2b"])),        # (2H, 6H)
        bias_interleaved(p["b_hh2f"], p["b_hh2b"]),
        # FC on the fused [hf | hb] carry: single (2H, S) weight
        cast(p["fc_w"].T),
        p["fc_b"].reshape(1, -1),
    )


def flexible_bigru_cnn_bigru(x, args):
    B, T, D = x.shape
    H = args[2].shape[0] // 2            # u1 is (2H, 6H)
    K, _, F = args[4].shape              # wc is (K, 2H, F)
    S = args[-1].shape[1]
    P = ((B + 7) // 8) * 8               # per-timestep rows padded to 8-sublane tile
    T2 = T // 2

    # time-major; each time step occupies a full P-row (8-sublane) block with
    # rows >= B zero-padded; the time-reversed copy is appended on the lane
    # axis so one matmul yields the hoisted gate inputs for both directions.
    x_tm = jnp.transpose(x, (1, 0, 2)).astype(jnp.float32)            # (T, B, D)
    x_pad = jnp.zeros((T, P, D), jnp.float32).at[:, :B, :].set(x_tm)  # (T, P, D)
    x_cat = jnp.concatenate(
        [x_pad.reshape(T * P, D), x_pad[::-1].reshape(T * P, D)],
        axis=-1).astype(jnp.bfloat16)

    kernel = functools.partial(bigru_cnn_bigru_kernel, T=T, P=P)
    kernel_inputs = (x_cat,) + tuple(args)
    vmem = pl.BlockSpec(memory_space=pltpu.MemorySpace.VMEM)
    return pl.pallas_call(
        kernel,
        out_shape=jax.ShapeDtypeStruct((B, S), jnp.float32),
        in_specs=[vmem] * len(kernel_inputs),
        out_specs=vmem,
        scratch_shapes=[
            pltpu.VMEM((T * P, 6 * H), jnp.float32),        # GRU-1 hoisted input gates
            pltpu.VMEM(((T + 2) * P, 2 * H), jnp.float32),  # GRU-1 seq [fwd|bwd] + conv halo
            pltpu.VMEM((T2 * P, 2 * F), jnp.float32),       # [pooled | time-reversed pooled]
            pltpu.VMEM((T2 * P, 6 * H), jnp.float32),       # GRU-2 hoisted input gates
        ],
    )(*kernel_inputs)


def reference_forward(x, p, eps=1e-5):
    """Plain-JAX f32 forward matching the PyTorch module in eval mode."""
    HI = jax.lax.Precision.HIGHEST
    B, T, _ = x.shape
    H = p["w_hh1f"].shape[1]

    def gru_dir(xs, w_ih, w_hh, b_ih, b_hh, reverse):
        Tn = xs.shape[1]
        h = jnp.zeros((B, H), jnp.float32)
        outs = [None] * Tn
        order = range(Tn - 1, -1, -1) if reverse else range(Tn)
        for t in order:
            gi = jnp.dot(xs[:, t, :], w_ih.T, precision=HI) + b_ih
            gh = jnp.dot(h, w_hh.T, precision=HI) + b_hh
            r = jax.nn.sigmoid(gi[:, :H] + gh[:, :H])
            z = jax.nn.sigmoid(gi[:, H:2 * H] + gh[:, H:2 * H])
            n = jnp.tanh(gi[:, 2 * H:] + r * gh[:, 2 * H:])
            h = (1.0 - z) * n + z * h
            outs[t] = h
        return jnp.stack(outs, axis=1), h

    of, _ = gru_dir(x, p["w_ih1f"], p["w_hh1f"], p["b_ih1f"], p["b_hh1f"], False)
    ob, _ = gru_dir(x, p["w_ih1b"], p["w_hh1b"], p["b_ih1b"], p["b_hh1b"], True)
    seq = jnp.concatenate([of, ob], axis=-1)                      # (B, T, 2H)

    F, _, K = p["conv_w"].shape
    xp = jnp.pad(seq, ((0, 0), (1, 1), (0, 0)))
    conv = jnp.zeros((B, T, F), jnp.float32) + p["conv_b"]
    for k in range(K):
        conv = conv + jnp.einsum("btc,fc->btf", xp[:, k:k + T, :],
                                 p["conv_w"][:, :, k], precision=HI)
    g = p["bn_gamma"] / jnp.sqrt(p["bn_var"] + eps)
    conv = jnp.maximum((conv - p["bn_mean"]) * g + p["bn_beta"], 0.0)
    T2 = T // 2
    pooled = jnp.maximum(conv[:, 0:2 * T2:2, :], conv[:, 1:2 * T2:2, :])

    _, hf = gru_dir(pooled, p["w_ih2f"], p["w_hh2f"], p["b_ih2f"], p["b_hh2f"], False)
    _, hb = gru_dir(pooled, p["w_ih2b"], p["w_hh2b"], p["b_ih2b"], p["b_hh2b"], True)
    hcat = jnp.concatenate([hf, hb], axis=-1)
    return jnp.dot(hcat, p["fc_w"].T, precision=HI) + p["fc_b"]


if __name__ == "__main__":
    # module config: input_shape=(T, D), hidden_size=H, num_filters=F,
    # kernel_size=3, pool_size=2, cnn_layers=bigru1_layers=bigru2_layers=1
    B, T, D = 2, 16, 8
    H, F, K, NSTEPS = 32, 16, 3, 10

    key = jax.random.PRNGKey(0)
    kx, kp = jax.random.split(key)
    x = jax.random.normal(kx, (B, T, D), jnp.float32)

    params = init_params(kp, D, H, F, K, NSTEPS)
    args = prepare_kernel_args(params)

    out = flexible_bigru_cnn_bigru(x, args)
    out = jax.block_until_ready(out)

    assert out.shape == (B, NSTEPS), out.shape
    assert bool(jnp.all(jnp.isfinite(out)))

    ref = reference_forward(x, params)
    err = float(jnp.max(jnp.abs(out - ref)))
    # bf16 matmul operands (f32 accumulation) loosen the match vs the f32 ref.
    assert err < 5e-2, f"max |kernel - reference| = {err}"
    print("KERNEL_OK")
</pallas_src>

<mosaic_0001>
module attributes {stable_mosaic.version = 11 : i64} {
  func.func @bigru_cnn_bigru_kernel(%arg0: memref<128x16xbf16, #tpu.memory_space<vmem>>, %arg1: memref<16x192xbf16, #tpu.memory_space<vmem>>, %arg2: memref<1x192xf32, #tpu.memory_space<vmem>>, %arg3: memref<64x192xbf16, #tpu.memory_space<vmem>>, %arg4: memref<1x192xf32, #tpu.memory_space<vmem>>, %arg5: memref<3x64x16xbf16, #tpu.memory_space<vmem>>, %arg6: memref<1x16xf32, #tpu.memory_space<vmem>>, %arg7: memref<1x16xf32, #tpu.memory_space<vmem>>, %arg8: memref<1x16xf32, #tpu.memory_space<vmem>>, %arg9: memref<32x192xbf16, #tpu.memory_space<vmem>>, %arg10: memref<1x192xf32, #tpu.memory_space<vmem>>, %arg11: memref<64x192xbf16, #tpu.memory_space<vmem>>, %arg12: memref<1x192xf32, #tpu.memory_space<vmem>>, %arg13: memref<64x10xbf16, #tpu.memory_space<vmem>>, %arg14: memref<1x10xf32, #tpu.memory_space<vmem>>, %arg15: memref<2x10xf32, #tpu.memory_space<vmem>>, %arg16: memref<128x192xf32, #tpu.memory_space<vmem>>, %arg17: memref<144x64xf32, #tpu.memory_space<vmem>>, %arg18: memref<64x32xf32, #tpu.memory_space<vmem>>, %arg19: memref<64x192xf32, #tpu.memory_space<vmem>>) attributes {dimension_semantics = [], scalar_prefetch = 0 : i64, scratch_operands = 4 : i64, tpu.core_type = #tpu.core_type<tc>} {
    %c0 = arith.constant 0 : index
    %c0_0 = arith.constant 0 : index
    %0 = vector.load %arg0[%c0, %c0_0] : memref<128x16xbf16, #tpu.memory_space<vmem>>, vector<128x16xbf16>
    %c0_1 = arith.constant 0 : index
    %c0_2 = arith.constant 0 : index
    %1 = vector.load %arg1[%c0_1, %c0_2] : memref<16x192xbf16, #tpu.memory_space<vmem>>, vector<16x192xbf16>
    %cst = arith.constant dense<0.000000e+00> : vector<128x192xf32>
    %2 = tpu.matmul %0, %1, %cst {dimension_numbers = #tpu.dot_dimension_numbers<[1], [0], [0], [1], [0, 0, 1, 1], [], []>} : vector<128x16xbf16>, vector<16x192xbf16>, vector<128x192xf32> -> vector<128x192xf32>
    %c0_3 = arith.constant 0 : index
    %c0_4 = arith.constant 0 : index
    %3 = vector.load %arg2[%c0_3, %c0_4] : memref<1x192xf32, #tpu.memory_space<vmem>>, vector<1x192xf32>
    %4 = vector.broadcast %3 : vector<1x192xf32> to vector<128x192xf32>
    %5 = arith.addf %2, %4 : vector<128x192xf32>
    %c0_5 = arith.constant 0 : index
    %c0_6 = arith.constant 0 : index
    %6 = vector.load %arg16[%c0_5, %c0_6] : memref<128x192xf32, #tpu.memory_space<vmem>>, vector<128x192xf32>
    tpu.vector_store %arg16[%c0_5, %c0_6], %5 {strides = array<i32>} : memref<128x192xf32, #tpu.memory_space<vmem>>, vector<128x192xf32>,
    %cst_7 = arith.constant 0.000000e+00 : f32
    %7 = vector.broadcast %cst_7 : f32 to vector<8x64xf32>
    %c0_8 = arith.constant 0 : index
    %c0_9 = arith.constant 0 : index
    %8 = vector.load %arg17[%c0_8, %c0_9] : memref<144x64xf32, #tpu.memory_space<vmem>>, vector<8x64xf32>
    tpu.vector_store %arg17[%c0_8, %c0_9], %7 {strides = array<i32>} : memref<144x64xf32, #tpu.memory_space<vmem>>, vector<8x64xf32>,
    %cst_10 = arith.constant 0.000000e+00 : f32
    %9 = vector.broadcast %cst_10 : f32 to vector<8x64xf32>
    %c136 = arith.constant 136 : index
    %c0_11 = arith.constant 0 : index
    %10 = vector.load %arg17[%c136, %c0_11] : memref<144x64xf32, #tpu.memory_space<vmem>>, vector<8x64xf32>
    tpu.vector_store %arg17[%c136, %c0_11], %9 {strides = array<i32>} : memref<144x64xf32, #tpu.memory_space<vmem>>, vector<8x64xf32>,
    %c0_12 = arith.constant 0 : index
    %c0_13 = arith.constant 0 : index
    %11 = vector.load %arg3[%c0_12, %c0_13] : memref<64x192xbf16, #tpu.memory_space<vmem>>, vector<64x192xbf16>
    %c0_14 = arith.constant 0 : index
    %c0_15 = arith.constant 0 : index
    %12 = vector.load %arg4[%c0_14, %c0_15] : memref<1x192xf32, #tpu.memory_space<vmem>>, vector<1x192xf32>
    %cst_16 = arith.constant 0.000000e+00 : f32
    %13 = vector.broadcast %cst_16 : f32 to vector<8x64xf32>
    %c0_17 = arith.constant 0 : index
    %c0_18 = arith.constant 0 : index
    %14 = vector.load %arg16[%c0_17, %c0_18] : memref<128x192xf32, #tpu.memory_space<vmem>>, vector<8x192xf32>
    %15 = arith.truncf %13 : vector<8x64xf32> to vector<8x64xbf16>
    %cst_19 = arith.constant dense<0.000000e+00> : vector<8x192xf32>
    %16 = tpu.matmul %15, %11, %cst_19 {dimension_numbers = #tpu.dot_dimension_numbers<[1], [0], [0], [1], [0, 0, 1, 1], [], []>} : vector<8x64xbf16>, vector<64x192xbf16>, vector<8x192xf32> -> vector<8x192xf32>
    %17 = vector.broadcast %12 : vector<1x192xf32> to vector<8x192xf32>
    %18 = arith.addf %16, %17 : vector<8x192xf32>
    %19 = vector.extract_strided_slice %14 {offsets = [0, 0], sizes = [8, 128], strides = [1, 1]} : vector<8x192xf32> to vector<8x128xf32>
    %20 = vector.extract_strided_slice %18 {offsets = [0, 0], sizes = [8, 128], strides = [1, 1]} : vector<8x192xf32> to vector<8x128xf32>
    %21 = arith.addf %19, %20 : vector<8x128xf32>
    %cst_20 = arith.constant 5.000000e-01 : f32
    %22 = vector.broadcast %cst_20 : f32 to vector<8x128xf32>
    %23 = arith.mulf %22, %21 : vector<8x128xf32>
    %24 = math.tanh %23 : vector<8x128xf32>
    %cst_21 = arith.constant 5.000000e-01 : f32
    %25 = vector.broadcast %cst_21 : f32 to vector<8x128xf32>
    %26 = arith.mulf %25, %24 : vector<8x128xf32>
    %cst_22 = arith.constant 5.000000e-01 : f32
    %27 = vector.broadcast %cst_22 : f32 to vector<8x128xf32>
    %28 = arith.addf %26, %27 : vector<8x128xf32>
    %29 = vector.extract_strided_slice %14 {offsets = [0, 128], sizes = [8, 64], strides = [1, 1]} : vector<8x192xf32> to vector<8x64xf32>
    %30 = vector.extract_strided_slice %28 {offsets = [0, 0], sizes = [8, 64], strides = [1, 1]} : vector<8x128xf32> to vector<8x64xf32>
    %31 = vector.extract_strided_slice %18 {offsets = [0, 128], sizes = [8, 64], strides = [1, 1]} : vector<8x192xf32> to vector<8x64xf32>
    %32 = arith.mulf %30, %31 : vector<8x64xf32>
    %33 = arith.addf %29, %32 : vector<8x64xf32>
    %34 = math.tanh %33 : vector<8x64xf32>
    %35 = vector.extract_strided_slice %28 {offsets = [0, 64], sizes = [8, 64], strides = [1, 1]} : vector<8x128xf32> to vector<8x64xf32>
    %cst_23 = arith.constant 1.000000e+00 : f32
    %36 = vector.broadcast %cst_23 : f32 to vector<8x64xf32>
    %37 = arith.subf %36, %35 : vector<8x64xf32>
    %38 = arith.mulf %37, %34 : vector<8x64xf32>
    %39 = arith.mulf %35, %13 : vector<8x64xf32>
    %40 = arith.addf %38, %39 : vector<8x64xf32>
    %41 = vector.extract_strided_slice %40 {offsets = [0, 0], sizes = [8, 32], strides = [1, 1]} : vector<8x64xf32> to vector<8x32xf32>
    %c8 = arith.constant 8 : index
    %c0_24 = arith.constant 0 : index
    %42 = vector.load %arg17[%c8, %c0_24] : memref<144x64xf32, #tpu.memory_space<vmem>>, vector<8x32xf32>
    tpu.vector_store %arg17[%c8, %c0_24], %41 {strides = array<i32>} : memref<144x64xf32, #tpu.memory_space<vmem>>, vector<8x32xf32>,
    %43 = vector.extract_strided_slice %40 {offsets = [0, 32], sizes = [8, 32], strides = [1, 1]} : vector<8x64xf32> to vector<8x32xf32>
    %c128 = arith.constant 128 : index
    %c32 = arith.constant 32 : index
    %44 = vector.load %arg17[%c128, %c32] : memref<144x64xf32, #tpu.memory_space<vmem>>, vector<8x32xf32>
    tpu.vector_store %arg17[%c128, %c32], %43 {strides = array<i32>} : memref<144x64xf32, #tpu.memory_space<vmem>>, vector<8x32xf32>,
    %c8_25 = arith.constant 8 : index
    %c0_26 = arith.constant 0 : index
    %45 = vector.load %arg16[%c8_25, %c0_26] : memref<128x192xf32, #tpu.memory_space<vmem>>, vector<8x192xf32>
    %46 = arith.truncf %40 : vector<8x64xf32> to vector<8x64xbf16>
    %cst_27 = arith.constant dense<0.000000e+00> : vector<8x192xf32>
    %47 = tpu.matmul %46, %11, %cst_27 {dimension_numbers = #tpu.dot_dimension_numbers<[1], [0], [0], [1], [0, 0, 1, 1], [], []>} : vector<8x64xbf16>, vector<64x192xbf16>, vector<8x192xf32> -> vector<8x192xf32>
    %48 = vector.broadcast %12 : vector<1x192xf32> to vector<8x192xf32>
    %49 = arith.addf %47, %48 : vector<8x192xf32>
    %50 = vector.extract_strided_slice %45 {offsets = [0, 0], sizes = [8, 128], strides = [1, 1]} : vector<8x192xf32> to vector<8x128xf32>
    %51 = vector.extract_strided_slice %49 {offsets = [0, 0], sizes = [8, 128], strides = [1, 1]} : vector<8x192xf32> to vector<8x128xf32>
    %52 = arith.addf %50, %51 : vector<8x128xf32>
    %cst_28 = arith.constant 5.000000e-01 : f32
    %53 = vector.broadcast %cst_28 : f32 to vector<8x128xf32>
    %54 = arith.mulf %53, %52 : vector<8x128xf32>
    %55 = math.tanh %54 : vector<8x128xf32>
    %cst_29 = arith.constant 5.000000e-01 : f32
    %56 = vector.broadcast %cst_29 : f32 to vector<8x128xf32>
    %57 = arith.mulf %56, %55 : vector<8x128xf32>
    %cst_30 = arith.constant 5.000000e-01 : f32
    %58 = vector.broadcast %cst_30 : f32 to vector<8x128xf32>
    %59 = arith.addf %57, %58 : vector<8x128xf32>
    %60 = vector.extract_strided_slice %45 {offsets = [0, 128], sizes = [8, 64], strides = [1, 1]} : vector<8x192xf32> to vector<8x64xf32>
    %61 = vector.extract_strided_slice %59 {offsets = [0, 0], sizes = [8, 64], strides = [1, 1]} : vector<8x128xf32> to vector<8x64xf32>
    %62 = vector.extract_strided_slice %49 {offsets = [0, 128], sizes = [8, 64], strides = [1, 1]} : vector<8x192xf32> to vector<8x64xf32>
    %63 = arith.mulf %61, %62 : vector<8x64xf32>
    %64 = arith.addf %60, %63 : vector<8x64xf32>
    %65 = math.tanh %64 : vector<8x64xf32>
    %66 = vector.extract_strided_slice %59 {offsets = [0, 64], sizes = [8, 64], strides = [1, 1]} : vector<8x128xf32> to vector<8x64xf32>
    %cst_31 = arith.constant 1.000000e+00 : f32
    %67 = vector.broadcast %cst_31 : f32 to vector<8x64xf32>
    %68 = arith.subf %67, %66 : vector<8x64xf32>
    %69 = arith.mulf %68, %65 : vector<8x64xf32>
    %70 = arith.mulf %66, %40 : vector<8x64xf32>
    %71 = arith.addf %69, %70 : vector<8x64xf32>
    %72 = vector.extract_strided_slice %71 {offsets = [0, 0], sizes = [8, 32], strides = [1, 1]} : vector<8x64xf32> to vector<8x32xf32>
    %c16 = arith.constant 16 : index
    %c0_32 = arith.constant 0 : index
    %73 = vector.load %arg17[%c16, %c0_32] : memref<144x64xf32, #tpu.memory_space<vmem>>, vector<8x32xf32>
    tpu.vector_store %arg17[%c16, %c0_32], %72 {strides = array<i32>} : memref<144x64xf32, #tpu.memory_space<vmem>>, vector<8x32xf32>,
    %74 = vector.extract_strided_slice %71 {offsets = [0, 32], sizes = [8, 32], strides = [1, 1]} : vector<8x64xf32> to vector<8x32xf32>
    %c120 = arith.constant 120 : index
    %c32_33 = arith.constant 32 : index
    %75 = vector.load %arg17[%c120, %c32_33] : memref<144x64xf32, #tpu.memory_space<vmem>>, vector<8x32xf32>
    tpu.vector_store %arg17[%c120, %c32_33], %74 {strides = array<i32>} : memref<144x64xf32, #tpu.memory_space<vmem>>, vector<8x32xf32>,
    %c16_34 = arith.constant 16 : index
    %c0_35 = arith.constant 0 : index
    %76 = vector.load %arg16[%c16_34, %c0_35] : memref<128x192xf32, #tpu.memory_space<vmem>>, vector<8x192xf32>
    %77 = arith.truncf %71 : vector<8x64xf32> to vector<8x64xbf16>
    %cst_36 = arith.constant dense<0.000000e+00> : vector<8x192xf32>
    %78 = tpu.matmul %77, %11, %cst_36 {dimension_numbers = #tpu.dot_dimension_numbers<[1], [0], [0], [1], [0, 0, 1, 1], [], []>} : vector<8x64xbf16>, vector<64x192xbf16>, vector<8x192xf32> -> vector<8x192xf32>
    %79 = vector.broadcast %12 : vector<1x192xf32> to vector<8x192xf32>
    %80 = arith.addf %78, %79 : vector<8x192xf32>
    %81 = vector.extract_strided_slice %76 {offsets = [0, 0], sizes = [8, 128], strides = [1, 1]} : vector<8x192xf32> to vector<8x128xf32>
    %82 = vector.extract_strided_slice %80 {offsets = [0, 0], sizes = [8, 128], strides = [1, 1]} : vector<8x192xf32> to vector<8x128xf32>
    %83 = arith.addf %81, %82 : vector<8x128xf32>
    %cst_37 = arith.constant 5.000000e-01 : f32
    %84 = vector.broadcast %cst_37 : f32 to vector<8x128xf32>
    %85 = arith.mulf %84, %83 : vector<8x128xf32>
    %86 = math.tanh %85 : vector<8x128xf32>
    %cst_38 = arith.constant 5.000000e-01 : f32
    %87 = vector.broadcast %cst_38 : f32 to vector<8x128xf32>
    %88 = arith.mulf %87, %86 : vector<8x128xf32>
    %cst_39 = arith.constant 5.000000e-01 : f32
    %89 = vector.broadcast %cst_39 : f32 to vector<8x128xf32>
    %90 = arith.addf %88, %89 : vector<8x128xf32>
    %91 = vector.extract_strided_slice %76 {offsets = [0, 128], sizes = [8, 64], strides = [1, 1]} : vector<8x192xf32> to vector<8x64xf32>
    %92 = vector.extract_strided_slice %90 {offsets = [0, 0], sizes = [8, 64], strides = [1, 1]} : vector<8x128xf32> to vector<8x64xf32>
    %93 = vector.extract_strided_slice %80 {offsets = [0, 128], sizes = [8, 64], strides = [1, 1]} : vector<8x192xf32> to vector<8x64xf32>
    %94 = arith.mulf %92, %93 : vector<8x64xf32>
    %95 = arith.addf %91, %94 : vector<8x64xf32>
    %96 = math.tanh %95 : vector<8x64xf32>
    %97 = vector.extract_strided_slice %90 {offsets = [0, 64], sizes = [8, 64], strides = [1, 1]} : vector<8x128xf32> to vector<8x64xf32>
    %cst_40 = arith.constant 1.000000e+00 : f32
    %98 = vector.broadcast %cst_40 : f32 to vector<8x64xf32>
    %99 = arith.subf %98, %97 : vector<8x64xf32>
    %100 = arith.mulf %99, %96 : vector<8x64xf32>
    %101 = arith.mulf %97, %71 : vector<8x64xf32>
    %102 = arith.addf %100, %101 : vector<8x64xf32>
    %103 = vector.extract_strided_slice %102 {offsets = [0, 0], sizes = [8, 32], strides = [1, 1]} : vector<8x64xf32> to vector<8x32xf32>
    %c24 = arith.constant 24 : index
    %c0_41 = arith.constant 0 : index
    %104 = vector.load %arg17[%c24, %c0_41] : memref<144x64xf32, #tpu.memory_space<vmem>>, vector<8x32xf32>
    tpu.vector_store %arg17[%c24, %c0_41], %103 {strides = array<i32>} : memref<144x64xf32, #tpu.memory_space<vmem>>, vector<8x32xf32>,
    %105 = vector.extract_strided_slice %102 {offsets = [0, 32], sizes = [8, 32], strides = [1, 1]} : vector<8x64xf32> to vector<8x32xf32>
    %c112 = arith.constant 112 : index
    %c32_42 = arith.constant 32 : index
    %106 = vector.load %arg17[%c112, %c32_42] : memref<144x64xf32, #tpu.memory_space<vmem>>, vector<8x32xf32>
    tpu.vector_store %arg17[%c112, %c32_42], %105 {strides = array<i32>} : memref<144x64xf32, #tpu.memory_space<vmem>>, vector<8x32xf32>,
    %c24_43 = arith.constant 24 : index
    %c0_44 = arith.constant 0 : index
    %107 = vector.load %arg16[%c24_43, %c0_44] : memref<128x192xf32, #tpu.memory_space<vmem>>, vector<8x192xf32>
    %108 = arith.truncf %102 : vector<8x64xf32> to vector<8x64xbf16>
    %cst_45 = arith.constant dense<0.000000e+00> : vector<8x192xf32>
    %109 = tpu.matmul %108, %11, %cst_45 {dimension_numbers = #tpu.dot_dimension_numbers<[1], [0], [0], [1], [0, 0, 1, 1], [], []>} : vector<8x64xbf16>, vector<64x192xbf16>, vector<8x192xf32> -> vector<8x192xf32>
    %110 = vector.broadcast %12 : vector<1x192xf32> to vector<8x192xf32>
    %111 = arith.addf %109, %110 : vector<8x192xf32>
    %112 = vector.extract_strided_slice %107 {offsets = [0, 0], sizes = [8, 128], strides = [1, 1]} : vector<8x192xf32> to vector<8x128xf32>
    %113 = vector.extract_strided_slice %111 {offsets = [0, 0], sizes = [8, 128], strides = [1, 1]} : vector<8x192xf32> to vector<8x128xf32>
    %114 = arith.addf %112, %113 : vector<8x128xf32>
    %cst_46 = arith.constant 5.000000e-01 : f32
    %115 = vector.broadcast %cst_46 : f32 to vector<8x128xf32>
    %116 = arith.mulf %115, %114 : vector<8x128xf32>
    %117 = math.tanh %116 : vector<8x128xf32>
    %cst_47 = arith.constant 5.000000e-01 : f32
    %118 = vector.broadcast %cst_47 : f32 to vector<8x128xf32>
    %119 = arith.mulf %118, %117 : vector<8x128xf32>
    %cst_48 = arith.constant 5.000000e-01 : f32
    %120 = vector.broadcast %cst_48 : f32 to vector<8x128xf32>
    %121 = arith.addf %119, %120 : vector<8x128xf32>
    %122 = vector.extract_strided_slice %107 {offsets = [0, 128], sizes = [8, 64], strides = [1, 1]} : vector<8x192xf32> to vector<8x64xf32>
    %123 = vector.extract_strided_slice %121 {offsets = [0, 0], sizes = [8, 64], strides = [1, 1]} : vector<8x128xf32> to vector<8x64xf32>
    %124 = vector.extract_strided_slice %111 {offsets = [0, 128], sizes = [8, 64], strides = [1, 1]} : vector<8x192xf32> to vector<8x64xf32>
    %125 = arith.mulf %123, %124 : vector<8x64xf32>
    %126 = arith.addf %122, %125 : vector<8x64xf32>
    %127 = math.tanh %126 : vector<8x64xf32>
    %128 = vector.extract_strided_slice %121 {offsets = [0, 64], sizes = [8, 64], strides = [1, 1]} : vector<8x128xf32> to vector<8x64xf32>
    %cst_49 = arith.constant 1.000000e+00 : f32
    %129 = vector.broadcast %cst_49 : f32 to vector<8x64xf32>
    %130 = arith.subf %129, %128 : vector<8x64xf32>
    %131 = arith.mulf %130, %127 : vector<8x64xf32>
    %132 = arith.mulf %128, %102 : vector<8x64xf32>
    %133 = arith.addf %131, %132 : vector<8x64xf32>
    %134 = vector.extract_strided_slice %133 {offsets = [0, 0], sizes = [8, 32], strides = [1, 1]} : vector<8x64xf32> to vector<8x32xf32>
    %c32_50 = arith.constant 32 : index
    %c0_51 = arith.constant 0 : index
    %135 = vector.load %arg17[%c32_50, %c0_51] : memref<144x64xf32, #tpu.memory_space<vmem>>, vector<8x32xf32>
    tpu.vector_store %arg17[%c32_50, %c0_51], %134 {strides = array<i32>} : memref<144x64xf32, #tpu.memory_space<vmem>>, vector<8x32xf32>,
    %136 = vector.extract_strided_slice %133 {offsets = [0, 32], sizes = [8, 32], strides = [1, 1]} : vector<8x64xf32> to vector<8x32xf32>
    %c104 = arith.constant 104 : index
    %c32_52 = arith.constant 32 : index
    %137 = vector.load %arg17[%c104, %c32_52] : memref<144x64xf32, #tpu.memory_space<vmem>>, vector<8x32xf32>
    tpu.vector_store %arg17[%c104, %c32_52], %136 {strides = array<i32>} : memref<144x64xf32, #tpu.memory_space<vmem>>, vector<8x32xf32>,
    %c32_53 = arith.constant 32 : index
    %c0_54 = arith.constant 0 : index
    %138 = vector.load %arg16[%c32_53, %c0_54] : memref<128x192xf32, #tpu.memory_space<vmem>>, vector<8x192xf32>
    %139 = arith.truncf %133 : vector<8x64xf32> to vector<8x64xbf16>
    %cst_55 = arith.constant dense<0.000000e+00> : vector<8x192xf32>
    %140 = tpu.matmul %139, %11, %cst_55 {dimension_numbers = #tpu.dot_dimension_numbers<[1], [0], [0], [1], [0, 0, 1, 1], [], []>} : vector<8x64xbf16>, vector<64x192xbf16>, vector<8x192xf32> -> vector<8x192xf32>
    %141 = vector.broadcast %12 : vector<1x192xf32> to vector<8x192xf32>
    %142 = arith.addf %140, %141 : vector<8x192xf32>
    %143 = vector.extract_strided_slice %138 {offsets = [0, 0], sizes = [8, 128], strides = [1, 1]} : vector<8x192xf32> to vector<8x128xf32>
    %144 = vector.extract_strided_slice %142 {offsets = [0, 0], sizes = [8, 128], strides = [1, 1]} : vector<8x192xf32> to vector<8x128xf32>
    %145 = arith.addf %143, %144 : vector<8x128xf32>
    %cst_56 = arith.constant 5.000000e-01 : f32
    %146 = vector.broadcast %cst_56 : f32 to vector<8x128xf32>
    %147 = arith.mulf %146, %145 : vector<8x128xf32>
    %148 = math.tanh %147 : vector<8x128xf32>
    %cst_57 = arith.constant 5.000000e-01 : f32
    %149 = vector.broadcast %cst_57 : f32 to vector<8x128xf32>
    %150 = arith.mulf %149, %148 : vector<8x128xf32>
    %cst_58 = arith.constant 5.000000e-01 : f32
    %151 = vector.broadcast %cst_58 : f32 to vector<8x128xf32>
    %152 = arith.addf %150, %151 : vector<8x128xf32>
    %153 = vector.extract_strided_slice %138 {offsets = [0, 128], sizes = [8, 64], strides = [1, 1]} : vector<8x192xf32> to vector<8x64xf32>
    %154 = vector.extract_strided_slice %152 {offsets = [0, 0], sizes = [8, 64], strides = [1, 1]} : vector<8x128xf32> to vector<8x64xf32>
    %155 = vector.extract_strided_slice %142 {offsets = [0, 128], sizes = [8, 64], strides = [1, 1]} : vector<8x192xf32> to vector<8x64xf32>
    %156 = arith.mulf %154, %155 : vector<8x64xf32>
    %157 = arith.addf %153, %156 : vector<8x64xf32>
    %158 = math.tanh %157 : vector<8x64xf32>
    %159 = vector.extract_strided_slice %152 {offsets = [0, 64], sizes = [8, 64], strides = [1, 1]} : vector<8x128xf32> to vector<8x64xf32>
    %cst_59 = arith.constant 1.000000e+00 : f32
    %160 = vector.broadcast %cst_59 : f32 to vector<8x64xf32>
    %161 = arith.subf %160, %159 : vector<8x64xf32>
    %162 = arith.mulf %161, %158 : vector<8x64xf32>
    %163 = arith.mulf %159, %133 : vector<8x64xf32>
    %164 = arith.addf %162, %163 : vector<8x64xf32>
    %165 = vector.extract_strided_slice %164 {offsets = [0, 0], sizes = [8, 32], strides = [1, 1]} : vector<8x64xf32> to vector<8x32xf32>
    %c40 = arith.constant 40 : index
    %c0_60 = arith.constant 0 : index
    %166 = vector.load %arg17[%c40, %c0_60] : memref<144x64xf32, #tpu.memory_space<vmem>>, vector<8x32xf32>
    tpu.vector_store %arg17[%c40, %c0_60], %165 {strides = array<i32>} : memref<144x64xf32, #tpu.memory_space<vmem>>, vector<8x32xf32>,
    %167 = vector.extract_strided_slice %164 {offsets = [0, 32], sizes = [8, 32], strides = [1, 1]} : vector<8x64xf32> to vector<8x32xf32>
    %c96 = arith.constant 96 : index
    %c32_61 = arith.constant 32 : index
    %168 = vector.load %arg17[%c96, %c32_61] : memref<144x64xf32, #tpu.memory_space<vmem>>, vector<8x32xf32>
    tpu.vector_store %arg17[%c96, %c32_61], %167 {strides = array<i32>} : memref<144x64xf32, #tpu.memory_space<vmem>>, vector<8x32xf32>,
    %c40_62 = arith.constant 40 : index
    %c0_63 = arith.constant 0 : index
    %169 = vector.load %arg16[%c40_62, %c0_63] : memref<128x192xf32, #tpu.memory_space<vmem>>, vector<8x192xf32>
    %170 = arith.truncf %164 : vector<8x64xf32> to vector<8x64xbf16>
    %cst_64 = arith.constant dense<0.000000e+00> : vector<8x192xf32>
    %171 = tpu.matmul %170, %11, %cst_64 {dimension_numbers = #tpu.dot_dimension_numbers<[1], [0], [0], [1], [0, 0, 1, 1], [], []>} : vector<8x64xbf16>, vector<64x192xbf16>, vector<8x192xf32> -> vector<8x192xf32>
    %172 = vector.broadcast %12 : vector<1x192xf32> to vector<8x192xf32>
    %173 = arith.addf %171, %172 : vector<8x192xf32>
    %174 = vector.extract_strided_slice %169 {offsets = [0, 0], sizes = [8, 128], strides = [1, 1]} : vector<8x192xf32> to vector<8x128xf32>
    %175 = vector.extract_strided_slice %173 {offsets = [0, 0], sizes = [8, 128], strides = [1, 1]} : vector<8x192xf32> to vector<8x128xf32>
    %176 = arith.addf %174, %175 : vector<8x128xf32>
    %cst_65 = arith.constant 5.000000e-01 : f32
    %177 = vector.broadcast %cst_65 : f32 to vector<8x128xf32>
    %178 = arith.mulf %177, %176 : vector<8x128xf32>
    %179 = math.tanh %178 : vector<8x128xf32>
    %cst_66 = arith.constant 5.000000e-01 : f32
    %180 = vector.broadcast %cst_66 : f32 to vector<8x128xf32>
    %181 = arith.mulf %180, %179 : vector<8x128xf32>
    %cst_67 = arith.constant 5.000000e-01 : f32
    %182 = vector.broadcast %cst_67 : f32 to vector<8x128xf32>
    %183 = arith.addf %181, %182 : vector<8x128xf32>
    %184 = vector.extract_strided_slice %169 {offsets = [0, 128], sizes = [8, 64], strides = [1, 1]} : vector<8x192xf32> to vector<8x64xf32>
    %185 = vector.extract_strided_slice %183 {offsets = [0, 0], sizes = [8, 64], strides = [1, 1]} : vector<8x128xf32> to vector<8x64xf32>
    %186 = vector.extract_strided_slice %173 {offsets = [0, 128], sizes = [8, 64], strides = [1, 1]} : vector<8x192xf32> to vector<8x64xf32>
    %187 = arith.mulf %185, %186 : vector<8x64xf32>
    %188 = arith.addf %184, %187 : vector<8x64xf32>
    %189 = math.tanh %188 : vector<8x64xf32>
    %190 = vector.extract_strided_slice %183 {offsets = [0, 64], sizes = [8, 64], strides = [1, 1]} : vector<8x128xf32> to vector<8x64xf32>
    %cst_68 = arith.constant 1.000000e+00 : f32
    %191 = vector.broadcast %cst_68 : f32 to vector<8x64xf32>
    %192 = arith.subf %191, %190 : vector<8x64xf32>
    %193 = arith.mulf %192, %189 : vector<8x64xf32>
    %194 = arith.mulf %190, %164 : vector<8x64xf32>
    %195 = arith.addf %193, %194 : vector<8x64xf32>
    %196 = vector.extract_strided_slice %195 {offsets = [0, 0], sizes = [8, 32], strides = [1, 1]} : vector<8x64xf32> to vector<8x32xf32>
    %c48 = arith.constant 48 : index
    %c0_69 = arith.constant 0 : index
    %197 = vector.load %arg17[%c48, %c0_69] : memref<144x64xf32, #tpu.memory_space<vmem>>, vector<8x32xf32>
    tpu.vector_store %arg17[%c48, %c0_69], %196 {strides = array<i32>} : memref<144x64xf32, #tpu.memory_space<vmem>>, vector<8x32xf32>,
    %198 = vector.extract_strided_slice %195 {offsets = [0, 32], sizes = [8, 32], strides = [1, 1]} : vector<8x64xf32> to vector<8x32xf32>
    %c88 = arith.constant 88 : index
    %c32_70 = arith.constant 32 : index
    %199 = vector.load %arg17[%c88, %c32_70] : memref<144x64xf32, #tpu.memory_space<vmem>>, vector<8x32xf32>
    tpu.vector_store %arg17[%c88, %c32_70], %198 {strides = array<i32>} : memref<144x64xf32, #tpu.memory_space<vmem>>, vector<8x32xf32>,
    %c48_71 = arith.constant 48 : index
    %c0_72 = arith.constant 0 : index
    %200 = vector.load %arg16[%c48_71, %c0_72] : memref<128x192xf32, #tpu.memory_space<vmem>>, vector<8x192xf32>
    %201 = arith.truncf %195 : vector<8x64xf32> to vector<8x64xbf16>
    %cst_73 = arith.constant dense<0.000000e+00> : vector<8x192xf32>
    %202 = tpu.matmul %201, %11, %cst_73 {dimension_numbers = #tpu.dot_dimension_numbers<[1], [0], [0], [1], [0, 0, 1, 1], [], []>} : vector<8x64xbf16>, vector<64x192xbf16>, vector<8x192xf32> -> vector<8x192xf32>
    %203 = vector.broadcast %12 : vector<1x192xf32> to vector<8x192xf32>
    %204 = arith.addf %202, %203 : vector<8x192xf32>
    %205 = vector.extract_strided_slice %200 {offsets = [0, 0], sizes = [8, 128], strides = [1, 1]} : vector<8x192xf32> to vector<8x128xf32>
    %206 = vector.extract_strided_slice %204 {offsets = [0, 0], sizes = [8, 128], strides = [1, 1]} : vector<8x192xf32> to vector<8x128xf32>
    %207 = arith.addf %205, %206 : vector<8x128xf32>
    %cst_74 = arith.constant 5.000000e-01 : f32
    %208 = vector.broadcast %cst_74 : f32 to vector<8x128xf32>
    %209 = arith.mulf %208, %207 : vector<8x128xf32>
    %210 = math.tanh %209 : vector<8x128xf32>
    %cst_75 = arith.constant 5.000000e-01 : f32
    %211 = vector.broadcast %cst_75 : f32 to vector<8x128xf32>
    %212 = arith.mulf %211, %210 : vector<8x128xf32>
    %cst_76 = arith.constant 5.000000e-01 : f32
    %213 = vector.broadcast %cst_76 : f32 to vector<8x128xf32>
    %214 = arith.addf %212, %213 : vector<8x128xf32>
    %215 = vector.extract_strided_slice %200 {offsets = [0, 128], sizes = [8, 64], strides = [1, 1]} : vector<8x192xf32> to vector<8x64xf32>
    %216 = vector.extract_strided_slice %214 {offsets = [0, 0], sizes = [8, 64], strides = [1, 1]} : vector<8x128xf32> to vector<8x64xf32>
    %217 = vector.extract_strided_slice %204 {offsets = [0, 128], sizes = [8, 64], strides = [1, 1]} : vector<8x192xf32> to vector<8x64xf32>
    %218 = arith.mulf %216, %217 : vector<8x64xf32>
    %219 = arith.addf %215, %218 : vector<8x64xf32>
    %220 = math.tanh %219 : vector<8x64xf32>
    %221 = vector.extract_strided_slice %214 {offsets = [0, 64], sizes = [8, 64], strides = [1, 1]} : vector<8x128xf32> to vector<8x64xf32>
    %cst_77 = arith.constant 1.000000e+00 : f32
    %222 = vector.broadcast %cst_77 : f32 to vector<8x64xf32>
    %223 = arith.subf %222, %221 : vector<8x64xf32>
    %224 = arith.mulf %223, %220 : vector<8x64xf32>
    %225 = arith.mulf %221, %195 : vector<8x64xf32>
    %226 = arith.addf %224, %225 : vector<8x64xf32>
    %227 = vector.extract_strided_slice %226 {offsets = [0, 0], sizes = [8, 32], strides = [1, 1]} : vector<8x64xf32> to vector<8x32xf32>
    %c56 = arith.constant 56 : index
    %c0_78 = arith.constant 0 : index
    %228 = vector.load %arg17[%c56, %c0_78] : memref<144x64xf32, #tpu.memory_space<vmem>>, vector<8x32xf32>
    tpu.vector_store %arg17[%c56, %c0_78], %227 {strides = array<i32>} : memref<144x64xf32, #tpu.memory_space<vmem>>, vector<8x32xf32>,
    %229 = vector.extract_strided_slice %226 {offsets = [0, 32], sizes = [8, 32], strides = [1, 1]} : vector<8x64xf32> to vector<8x32xf32>
    %c80 = arith.constant 80 : index
    %c32_79 = arith.constant 32 : index
    %230 = vector.load %arg17[%c80, %c32_79] : memref<144x64xf32, #tpu.memory_space<vmem>>, vector<8x32xf32>
    tpu.vector_store %arg17[%c80, %c32_79], %229 {strides = array<i32>} : memref<144x64xf32, #tpu.memory_space<vmem>>, vector<8x32xf32>,
    %c56_80 = arith.constant 56 : index
    %c0_81 = arith.constant 0 : index
    %231 = vector.load %arg16[%c56_80, %c0_81] : memref<128x192xf32, #tpu.memory_space<vmem>>, vector<8x192xf32>
    %232 = arith.truncf %226 : vector<8x64xf32> to vector<8x64xbf16>
    %cst_82 = arith.constant dense<0.000000e+00> : vector<8x192xf32>
    %233 = tpu.matmul %232, %11, %cst_82 {dimension_numbers = #tpu.dot_dimension_numbers<[1], [0], [0], [1], [0, 0, 1, 1], [], []>} : vector<8x64xbf16>, vector<64x192xbf16>, vector<8x192xf32> -> vector<8x192xf32>
    %234 = vector.broadcast %12 : vector<1x192xf32> to vector<8x192xf32>
    %235 = arith.addf %233, %234 : vector<8x192xf32>
    %236 = vector.extract_strided_slice %231 {offsets = [0, 0], sizes = [8, 128], strides = [1, 1]} : vector<8x192xf32> to vector<8x128xf32>
    %237 = vector.extract_strided_slice %235 {offsets = [0, 0], sizes = [8, 128], strides = [1, 1]} : vector<8x192xf32> to vector<8x128xf32>
    %238 = arith.addf %236, %237 : vector<8x128xf32>
    %cst_83 = arith.constant 5.000000e-01 : f32
    %239 = vector.broadcast %cst_83 : f32 to vector<8x128xf32>
    %240 = arith.mulf %239, %238 : vector<8x128xf32>
    %241 = math.tanh %240 : vector<8x128xf32>
    %cst_84 = arith.constant 5.000000e-01 : f32
    %242 = vector.broadcast %cst_84 : f32 to vector<8x128xf32>
    %243 = arith.mulf %242, %241 : vector<8x128xf32>
    %cst_85 = arith.constant 5.000000e-01 : f32
    %244 = vector.broadcast %cst_85 : f32 to vector<8x128xf32>
    %245 = arith.addf %243, %244 : vector<8x128xf32>
    %246 = vector.extract_strided_slice %231 {offsets = [0, 128], sizes = [8, 64], strides = [1, 1]} : vector<8x192xf32> to vector<8x64xf32>
    %247 = vector.extract_strided_slice %245 {offsets = [0, 0], sizes = [8, 64], strides = [1, 1]} : vector<8x128xf32> to vector<8x64xf32>
    %248 = vector.extract_strided_slice %235 {offsets = [0, 128], sizes = [8, 64], strides = [1, 1]} : vector<8x192xf32> to vector<8x64xf32>
    %249 = arith.mulf %247, %248 : vector<8x64xf32>
    %250 = arith.addf %246, %249 : vector<8x64xf32>
    %251 = math.tanh %250 : vector<8x64xf32>
    %252 = vector.extract_strided_slice %245 {offsets = [0, 64], sizes = [8, 64], strides = [1, 1]} : vector<8x128xf32> to vector<8x64xf32>
    %cst_86 = arith.constant 1.000000e+00 : f32
    %253 = vector.broadcast %cst_86 : f32 to vector<8x64xf32>
    %254 = arith.subf %253, %252 : vector<8x64xf32>
    %255 = arith.mulf %254, %251 : vector<8x64xf32>
    %256 = arith.mulf %252, %226 : vector<8x64xf32>
    %257 = arith.addf %255, %256 : vector<8x64xf32>
    %258 = vector.extract_strided_slice %257 {offsets = [0, 0], sizes = [8, 32], strides = [1, 1]} : vector<8x64xf32> to vector<8x32xf32>
    %c64 = arith.constant 64 : index
    %c0_87 = arith.constant 0 : index
    %259 = vector.load %arg17[%c64, %c0_87] : memref<144x64xf32, #tpu.memory_space<vmem>>, vector<8x32xf32>
    tpu.vector_store %arg17[%c64, %c0_87], %258 {strides = array<i32>} : memref<144x64xf32, #tpu.memory_space<vmem>>, vector<8x32xf32>,
    %260 = vector.extract_strided_slice %257 {offsets = [0, 32], sizes = [8, 32], strides = [1, 1]} : vector<8x64xf32> to vector<8x32xf32>
    %c72 = arith.constant 72 : index
    %c32_88 = arith.constant 32 : index
    %261 = vector.load %arg17[%c72, %c32_88] : memref<144x64xf32, #tpu.memory_space<vmem>>, vector<8x32xf32>
    tpu.vector_store %arg17[%c72, %c32_88], %260 {strides = array<i32>} : memref<144x64xf32, #tpu.memory_space<vmem>>, vector<8x32xf32>,
    %c64_89 = arith.constant 64 : index
    %c0_90 = arith.constant 0 : index
    %262 = vector.load %arg16[%c64_89, %c0_90] : memref<128x192xf32, #tpu.memory_space<vmem>>, vector<8x192xf32>
    %263 = arith.truncf %257 : vector<8x64xf32> to vector<8x64xbf16>
    %cst_91 = arith.constant dense<0.000000e+00> : vector<8x192xf32>
    %264 = tpu.matmul %263, %11, %cst_91 {dimension_numbers = #tpu.dot_dimension_numbers<[1], [0], [0], [1], [0, 0, 1, 1], [], []>} : vector<8x64xbf16>, vector<64x192xbf16>, vector<8x192xf32> -> vector<8x192xf32>
    %265 = vector.broadcast %12 : vector<1x192xf32> to vector<8x192xf32>
    %266 = arith.addf %264, %265 : vector<8x192xf32>
    %267 = vector.extract_strided_slice %262 {offsets = [0, 0], sizes = [8, 128], strides = [1, 1]} : vector<8x192xf32> to vector<8x128xf32>
    %268 = vector.extract_strided_slice %266 {offsets = [0, 0], sizes = [8, 128], strides = [1, 1]} : vector<8x192xf32> to vector<8x128xf32>
    %269 = arith.addf %267, %268 : vector<8x128xf32>
    %cst_92 = arith.constant 5.000000e-01 : f32
    %270 = vector.broadcast %cst_92 : f32 to vector<8x128xf32>
    %271 = arith.mulf %270, %269 : vector<8x128xf32>
    %272 = math.tanh %271 : vector<8x128xf32>
    %cst_93 = arith.constant 5.000000e-01 : f32
    %273 = vector.broadcast %cst_93 : f32 to vector<8x128xf32>
    %274 = arith.mulf %273, %272 : vector<8x128xf32>
    %cst_94 = arith.constant 5.000000e-01 : f32
    %275 = vector.broadcast %cst_94 : f32 to vector<8x128xf32>
    %276 = arith.addf %274, %275 : vector<8x128xf32>
    %277 = vector.extract_strided_slice %262 {offsets = [0, 128], sizes = [8, 64], strides = [1, 1]} : vector<8x192xf32> to vector<8x64xf32>
    %278 = vector.extract_strided_slice %276 {offsets = [0, 0], sizes = [8, 64], strides = [1, 1]} : vector<8x128xf32> to vector<8x64xf32>
    %279 = vector.extract_strided_slice %266 {offsets = [0, 128], sizes = [8, 64], strides = [1, 1]} : vector<8x192xf32> to vector<8x64xf32>
    %280 = arith.mulf %278, %279 : vector<8x64xf32>
    %281 = arith.addf %277, %280 : vector<8x64xf32>
    %282 = math.tanh %281 : vector<8x64xf32>
    %283 = vector.extract_strided_slice %276 {offsets = [0, 64], sizes = [8, 64], strides = [1, 1]} : vector<8x128xf32> to vector<8x64xf32>
    %cst_95 = arith.constant 1.000000e+00 : f32
    %284 = vector.broadcast %cst_95 : f32 to vector<8x64xf32>
    %285 = arith.subf %284, %283 : vector<8x64xf32>
    %286 = arith.mulf %285, %282 : vector<8x64xf32>
    %287 = arith.mulf %283, %257 : vector<8x64xf32>
    %288 = arith.addf %286, %287 : vector<8x64xf32>
    %289 = vector.extract_strided_slice %288 {offsets = [0, 0], sizes = [8, 32], strides = [1, 1]} : vector<8x64xf32> to vector<8x32xf32>
    %c72_96 = arith.constant 72 : index
    %c0_97 = arith.constant 0 : index
    %290 = vector.load %arg17[%c72_96, %c0_97] : memref<144x64xf32, #tpu.memory_space<vmem>>, vector<8x32xf32>
    tpu.vector_store %arg17[%c72_96, %c0_97], %289 {strides = array<i32>} : memref<144x64xf32, #tpu.memory_space<vmem>>, vector<8x32xf32>,
    %291 = vector.extract_strided_slice %288 {offsets = [0, 32], sizes = [8, 32], strides = [1, 1]} : vector<8x64xf32> to vector<8x32xf32>
    %c64_98 = arith.constant 64 : index
    %c32_99 = arith.constant 32 : index
    %292 = vector.load %arg17[%c64_98, %c32_99] : memref<144x64xf32, #tpu.memory_space<vmem>>, vector<8x32xf32>
    tpu.vector_store %arg17[%c64_98, %c32_99], %291 {strides = array<i32>} : memref<144x64xf32, #tpu.memory_space<vmem>>, vector<8x32xf32>,
    %c72_100 = arith.constant 72 : index
    %c0_101 = arith.constant 0 : index
    %293 = vector.load %arg16[%c72_100, %c0_101] : memref<128x192xf32, #tpu.memory_space<vmem>>, vector<8x192xf32>
    %294 = arith.truncf %288 : vector<8x64xf32> to vector<8x64xbf16>
    %cst_102 = arith.constant dense<0.000000e+00> : vector<8x192xf32>
    %295 = tpu.matmul %294, %11, %cst_102 {dimension_numbers = #tpu.dot_dimension_numbers<[1], [0], [0], [1], [0, 0, 1, 1], [], []>} : vector<8x64xbf16>, vector<64x192xbf16>, vector<8x192xf32> -> vector<8x192xf32>
    %296 = vector.broadcast %12 : vector<1x192xf32> to vector<8x192xf32>
    %297 = arith.addf %295, %296 : vector<8x192xf32>
    %298 = vector.extract_strided_slice %293 {offsets = [0, 0], sizes = [8, 128], strides = [1, 1]} : vector<8x192xf32> to vector<8x128xf32>
    %299 = vector.extract_strided_slice %297 {offsets = [0, 0], sizes = [8, 128], strides = [1, 1]} : vector<8x192xf32> to vector<8x128xf32>
    %300 = arith.addf %298, %299 : vector<8x128xf32>
    %cst_103 = arith.constant 5.000000e-01 : f32
    %301 = vector.broadcast %cst_103 : f32 to vector<8x128xf32>
    %302 = arith.mulf %301, %300 : vector<8x128xf32>
    %303 = math.tanh %302 : vector<8x128xf32>
    %cst_104 = arith.constant 5.000000e-01 : f32
    %304 = vector.broadcast %cst_104 : f32 to vector<8x128xf32>
    %305 = arith.mulf %304, %303 : vector<8x128xf32>
    %cst_105 = arith.constant 5.000000e-01 : f32
    %306 = vector.broadcast %cst_105 : f32 to vector<8x128xf32>
    %307 = arith.addf %305, %306 : vector<8x128xf32>
    %308 = vector.extract_strided_slice %293 {offsets = [0, 128], sizes = [8, 64], strides = [1, 1]} : vector<8x192xf32> to vector<8x64xf32>
    %309 = vector.extract_strided_slice %307 {offsets = [0, 0], sizes = [8, 64], strides = [1, 1]} : vector<8x128xf32> to vector<8x64xf32>
    %310 = vector.extract_strided_slice %297 {offsets = [0, 128], sizes = [8, 64], strides = [1, 1]} : vector<8x192xf32> to vector<8x64xf32>
    %311 = arith.mulf %309, %310 : vector<8x64xf32>
    %312 = arith.addf %308, %311 : vector<8x64xf32>
    %313 = math.tanh %312 : vector<8x64xf32>
    %314 = vector.extract_strided_slice %307 {offsets = [0, 64], sizes = [8, 64], strides = [1, 1]} : vector<8x128xf32> to vector<8x64xf32>
    %cst_106 = arith.constant 1.000000e+00 : f32
    %315 = vector.broadcast %cst_106 : f32 to vector<8x64xf32>
    %316 = arith.subf %315, %314 : vector<8x64xf32>
    %317 = arith.mulf %316, %313 : vector<8x64xf32>
    %318 = arith.mulf %314, %288 : vector<8x64xf32>
    %319 = arith.addf %317, %318 : vector<8x64xf32>
    %320 = vector.extract_strided_slice %319 {offsets = [0, 0], sizes = [8, 32], strides = [1, 1]} : vector<8x64xf32> to vector<8x32xf32>
    %c80_107 = arith.constant 80 : index
    %c0_108 = arith.constant 0 : index
    %321 = vector.load %arg17[%c80_107, %c0_108] : memref<144x64xf32, #tpu.memory_space<vmem>>, vector<8x32xf32>
    tpu.vector_store %arg17[%c80_107, %c0_108], %320 {strides = array<i32>} : memref<144x64xf32, #tpu.memory_space<vmem>>, vector<8x32xf32>,
    %322 = vector.extract_strided_slice %319 {offsets = [0, 32], sizes = [8, 32], strides = [1, 1]} : vector<8x64xf32> to vector<8x32xf32>
    %c56_109 = arith.constant 56 : index
    %c32_110 = arith.constant 32 : index
    %323 = vector.load %arg17[%c56_109, %c32_110] : memref<144x64xf32, #tpu.memory_space<vmem>>, vector<8x32xf32>
    tpu.vector_store %arg17[%c56_109, %c32_110], %322 {strides = array<i32>} : memref<144x64xf32, #tpu.memory_space<vmem>>, vector<8x32xf32>,
    %c80_111 = arith.constant 80 : index
    %c0_112 = arith.constant 0 : index
    %324 = vector.load %arg16[%c80_111, %c0_112] : memref<128x192xf32, #tpu.memory_space<vmem>>, vector<8x192xf32>
    %325 = arith.truncf %319 : vector<8x64xf32> to vector<8x64xbf16>
    %cst_113 = arith.constant dense<0.000000e+00> : vector<8x192xf32>
    %326 = tpu.matmul %325, %11, %cst_113 {dimension_numbers = #tpu.dot_dimension_numbers<[1], [0], [0], [1], [0, 0, 1, 1], [], []>} : vector<8x64xbf16>, vector<64x192xbf16>, vector<8x192xf32> -> vector<8x192xf32>
    %327 = vector.broadcast %12 : vector<1x192xf32> to vector<8x192xf32>
    %328 = arith.addf %326, %327 : vector<8x192xf32>
    %329 = vector.extract_strided_slice %324 {offsets = [0, 0], sizes = [8, 128], strides = [1, 1]} : vector<8x192xf32> to vector<8x128xf32>
    %330 = vector.extract_strided_slice %328 {offsets = [0, 0], sizes = [8, 128], strides = [1, 1]} : vector<8x192xf32> to vector<8x128xf32>
    %331 = arith.addf %329, %330 : vector<8x128xf32>
    %cst_114 = arith.constant 5.000000e-01 : f32
    %332 = vector.broadcast %cst_114 : f32 to vector<8x128xf32>
    %333 = arith.mulf %332, %331 : vector<8x128xf32>
    %334 = math.tanh %333 : vector<8x128xf32>
    %cst_115 = arith.constant 5.000000e-01 : f32
    %335 = vector.broadcast %cst_115 : f32 to vector<8x128xf32>
    %336 = arith.mulf %335, %334 : vector<8x128xf32>
    %cst_116 = arith.constant 5.000000e-01 : f32
    %337 = vector.broadcast %cst_116 : f32 to vector<8x128xf32>
    %338 = arith.addf %336, %337 : vector<8x128xf32>
    %339 = vector.extract_strided_slice %324 {offsets = [0, 128], sizes = [8, 64], strides = [1, 1]} : vector<8x192xf32> to vector<8x64xf32>
    %340 = vector.extract_strided_slice %338 {offsets = [0, 0], sizes = [8, 64], strides = [1, 1]} : vector<8x128xf32> to vector<8x64xf32>
    %341 = vector.extract_strided_slice %328 {offsets = [0, 128], sizes = [8, 64], strides = [1, 1]} : vector<8x192xf32> to vector<8x64xf32>
    %342 = arith.mulf %340, %341 : vector<8x64xf32>
    %343 = arith.addf %339, %342 : vector<8x64xf32>
    %344 = math.tanh %343 : vector<8x64xf32>
    %345 = vector.extract_strided_slice %338 {offsets = [0, 64], sizes = [8, 64], strides = [1, 1]} : vector<8x128xf32> to vector<8x64xf32>
    %cst_117 = arith.constant 1.000000e+00 : f32
    %346 = vector.broadcast %cst_117 : f32 to vector<8x64xf32>
    %347 = arith.subf %346, %345 : vector<8x64xf32>
    %348 = arith.mulf %347, %344 : vector<8x64xf32>
    %349 = arith.mulf %345, %319 : vector<8x64xf32>
    %350 = arith.addf %348, %349 : vector<8x64xf32>
    %351 = vector.extract_strided_slice %350 {offsets = [0, 0], sizes = [8, 32], strides = [1, 1]} : vector<8x64xf32> to vector<8x32xf32>
    %c88_118 = arith.constant 88 : index
    %c0_119 = arith.constant 0 : index
    %352 = vector.load %arg17[%c88_118, %c0_119] : memref<144x64xf32, #tpu.memory_space<vmem>>, vector<8x32xf32>
    tpu.vector_store %arg17[%c88_118, %c0_119], %351 {strides = array<i32>} : memref<144x64xf32, #tpu.memory_space<vmem>>, vector<8x32xf32>,
    %353 = vector.extract_strided_slice %350 {offsets = [0, 32], sizes = [8, 32], strides = [1, 1]} : vector<8x64xf32> to vector<8x32xf32>
    %c48_120 = arith.constant 48 : index
    %c32_121 = arith.constant 32 : index
    %354 = vector.load %arg17[%c48_120, %c32_121] : memref<144x64xf32, #tpu.memory_space<vmem>>, vector<8x32xf32>
    tpu.vector_store %arg17[%c48_120, %c32_121], %353 {strides = array<i32>} : memref<144x64xf32, #tpu.memory_space<vmem>>, vector<8x32xf32>,
    %c88_122 = arith.constant 88 : index
    %c0_123 = arith.constant 0 : index
    %355 = vector.load %arg16[%c88_122, %c0_123] : memref<128x192xf32, #tpu.memory_space<vmem>>, vector<8x192xf32>
    %356 = arith.truncf %350 : vector<8x64xf32> to vector<8x64xbf16>
    %cst_124 = arith.constant dense<0.000000e+00> : vector<8x192xf32>
    %357 = tpu.matmul %356, %11, %cst_124 {dimension_numbers = #tpu.dot_dimension_numbers<[1], [0], [0], [1], [0, 0, 1, 1], [], []>} : vector<8x64xbf16>, vector<64x192xbf16>, vector<8x192xf32> -> vector<8x192xf32>
    %358 = vector.broadcast %12 : vector<1x192xf32> to vector<8x192xf32>
    %359 = arith.addf %357, %358 : vector<8x192xf32>
    %360 = vector.extract_strided_slice %355 {offsets = [0, 0], sizes = [8, 128], strides = [1, 1]} : vector<8x192xf32> to vector<8x128xf32>
    %361 = vector.extract_strided_slice %359 {offsets = [0, 0], sizes = [8, 128], strides = [1, 1]} : vector<8x192xf32> to vector<8x128xf32>
    %362 = arith.addf %360, %361 : vector<8x128xf32>
    %cst_125 = arith.constant 5.000000e-01 : f32
    %363 = vector.broadcast %cst_125 : f32 to vector<8x128xf32>
    %364 = arith.mulf %363, %362 : vector<8x128xf32>
    %365 = math.tanh %364 : vector<8x128xf32>
    %cst_126 = arith.constant 5.000000e-01 : f32
    %366 = vector.broadcast %cst_126 : f32 to vector<8x128xf32>
    %367 = arith.mulf %366, %365 : vector<8x128xf32>
    %cst_127 = arith.constant 5.000000e-01 : f32
    %368 = vector.broadcast %cst_127 : f32 to vector<8x128xf32>
    %369 = arith.addf %367, %368 : vector<8x128xf32>
    %370 = vector.extract_strided_slice %355 {offsets = [0, 128], sizes = [8, 64], strides = [1, 1]} : vector<8x192xf32> to vector<8x64xf32>
    %371 = vector.extract_strided_slice %369 {offsets = [0, 0], sizes = [8, 64], strides = [1, 1]} : vector<8x128xf32> to vector<8x64xf32>
    %372 = vector.extract_strided_slice %359 {offsets = [0, 128], sizes = [8, 64], strides = [1, 1]} : vector<8x192xf32> to vector<8x64xf32>
    %373 = arith.mulf %371, %372 : vector<8x64xf32>
    %374 = arith.addf %370, %373 : vector<8x64xf32>
    %375 = math.tanh %374 : vector<8x64xf32>
    %376 = vector.extract_strided_slice %369 {offsets = [0, 64], sizes = [8, 64], strides = [1, 1]} : vector<8x128xf32> to vector<8x64xf32>
    %cst_128 = arith.constant 1.000000e+00 : f32
    %377 = vector.broadcast %cst_128 : f32 to vector<8x64xf32>
    %378 = arith.subf %377, %376 : vector<8x64xf32>
    %379 = arith.mulf %378, %375 : vector<8x64xf32>
    %380 = arith.mulf %376, %350 : vector<8x64xf32>
    %381 = arith.addf %379, %380 : vector<8x64xf32>
    %382 = vector.extract_strided_slice %381 {offsets = [0, 0], sizes = [8, 32], strides = [1, 1]} : vector<8x64xf32> to vector<8x32xf32>
    %c96_129 = arith.constant 96 : index
    %c0_130 = arith.constant 0 : index
    %383 = vector.load %arg17[%c96_129, %c0_130] : memref<144x64xf32, #tpu.memory_space<vmem>>, vector<8x32xf32>
    tpu.vector_store %arg17[%c96_129, %c0_130], %382 {strides = array<i32>} : memref<144x64xf32, #tpu.memory_space<vmem>>, vector<8x32xf32>,
    %384 = vector.extract_strided_slice %381 {offsets = [0, 32], sizes = [8, 32], strides = [1, 1]} : vector<8x64xf32> to vector<8x32xf32>
    %c40_131 = arith.constant 40 : index
    %c32_132 = arith.constant 32 : index
    %385 = vector.load %arg17[%c40_131, %c32_132] : memref<144x64xf32, #tpu.memory_space<vmem>>, vector<8x32xf32>
    tpu.vector_store %arg17[%c40_131, %c32_132], %384 {strides = array<i32>} : memref<144x64xf32, #tpu.memory_space<vmem>>, vector<8x32xf32>,
    %c96_133 = arith.constant 96 : index
    %c0_134 = arith.constant 0 : index
    %386 = vector.load %arg16[%c96_133, %c0_134] : memref<128x192xf32, #tpu.memory_space<vmem>>, vector<8x192xf32>
    %387 = arith.truncf %381 : vector<8x64xf32> to vector<8x64xbf16>
    %cst_135 = arith.constant dense<0.000000e+00> : vector<8x192xf32>
    %388 = tpu.matmul %387, %11, %cst_135 {dimension_numbers = #tpu.dot_dimension_numbers<[1], [0], [0], [1], [0, 0, 1, 1], [], []>} : vector<8x64xbf16>, vector<64x192xbf16>, vector<8x192xf32> -> vector<8x192xf32>
    %389 = vector.broadcast %12 : vector<1x192xf32> to vector<8x192xf32>
    %390 = arith.addf %388, %389 : vector<8x192xf32>
    %391 = vector.extract_strided_slice %386 {offsets = [0, 0], sizes = [8, 128], strides = [1, 1]} : vector<8x192xf32> to vector<8x128xf32>
    %392 = vector.extract_strided_slice %390 {offsets = [0, 0], sizes = [8, 128], strides = [1, 1]} : vector<8x192xf32> to vector<8x128xf32>
    %393 = arith.addf %391, %392 : vector<8x128xf32>
    %cst_136 = arith.constant 5.000000e-01 : f32
    %394 = vector.broadcast %cst_136 : f32 to vector<8x128xf32>
    %395 = arith.mulf %394, %393 : vector<8x128xf32>
    %396 = math.tanh %395 : vector<8x128xf32>
    %cst_137 = arith.constant 5.000000e-01 : f32
    %397 = vector.broadcast %cst_137 : f32 to vector<8x128xf32>
    %398 = arith.mulf %397, %396 : vector<8x128xf32>
    %cst_138 = arith.constant 5.000000e-01 : f32
    %399 = vector.broadcast %cst_138 : f32 to vector<8x128xf32>
    %400 = arith.addf %398, %399 : vector<8x128xf32>
    %401 = vector.extract_strided_slice %386 {offsets = [0, 128], sizes = [8, 64], strides = [1, 1]} : vector<8x192xf32> to vector<8x64xf32>
    %402 = vector.extract_strided_slice %400 {offsets = [0, 0], sizes = [8, 64], strides = [1, 1]} : vector<8x128xf32> to vector<8x64xf32>
    %403 = vector.extract_strided_slice %390 {offsets = [0, 128], sizes = [8, 64], strides = [1, 1]} : vector<8x192xf32> to vector<8x64xf32>
    %404 = arith.mulf %402, %403 : vector<8x64xf32>
    %405 = arith.addf %401, %404 : vector<8x64xf32>
    %406 = math.tanh %405 : vector<8x64xf32>
    %407 = vector.extract_strided_slice %400 {offsets = [0, 64], sizes = [8, 64], strides = [1, 1]} : vector<8x128xf32> to vector<8x64xf32>
    %cst_139 = arith.constant 1.000000e+00 : f32
    %408 = vector.broadcast %cst_139 : f32 to vector<8x64xf32>
    %409 = arith.subf %408, %407 : vector<8x64xf32>
    %410 = arith.mulf %409, %406 : vector<8x64xf32>
    %411 = arith.mulf %407, %381 : vector<8x64xf32>
    %412 = arith.addf %410, %411 : vector<8x64xf32>
    %413 = vector.extract_strided_slice %412 {offsets = [0, 0], sizes = [8, 32], strides = [1, 1]} : vector<8x64xf32> to vector<8x32xf32>
    %c104_140 = arith.constant 104 : index
    %c0_141 = arith.constant 0 : index
    %414 = vector.load %arg17[%c104_140, %c0_141] : memref<144x64xf32, #tpu.memory_space<vmem>>, vector<8x32xf32>
    tpu.vector_store %arg17[%c104_140, %c0_141], %413 {strides = array<i32>} : memref<144x64xf32, #tpu.memory_space<vmem>>, vector<8x32xf32>,
    %415 = vector.extract_strided_slice %412 {offsets = [0, 32], sizes = [8, 32], strides = [1, 1]} : vector<8x64xf32> to vector<8x32xf32>
    %c32_142 = arith.constant 32 : index
    %c32_143 = arith.constant 32 : index
    %416 = vector.load %arg17[%c32_142, %c32_143] : memref<144x64xf32, #tpu.memory_space<vmem>>, vector<8x32xf32>
    tpu.vector_store %arg17[%c32_142, %c32_143], %415 {strides = array<i32>} : memref<144x64xf32, #tpu.memory_space<vmem>>, vector<8x32xf32>,
    %c104_144 = arith.constant 104 : index
    %c0_145 = arith.constant 0 : index
    %417 = vector.load %arg16[%c104_144, %c0_145] : memref<128x192xf32, #tpu.memory_space<vmem>>, vector<8x192xf32>
    %418 = arith.truncf %412 : vector<8x64xf32> to vector<8x64xbf16>
    %cst_146 = arith.constant dense<0.000000e+00> : vector<8x192xf32>
    %419 = tpu.matmul %418, %11, %cst_146 {dimension_numbers = #tpu.dot_dimension_numbers<[1], [0], [0], [1], [0, 0, 1, 1], [], []>} : vector<8x64xbf16>, vector<64x192xbf16>, vector<8x192xf32> -> vector<8x192xf32>
    %420 = vector.broadcast %12 : vector<1x192xf32> to vector<8x192xf32>
    %421 = arith.addf %419, %420 : vector<8x192xf32>
    %422 = vector.extract_strided_slice %417 {offsets = [0, 0], sizes = [8, 128], strides = [1, 1]} : vector<8x192xf32> to vector<8x128xf32>
    %423 = vector.extract_strided_slice %421 {offsets = [0, 0], sizes = [8, 128], strides = [1, 1]} : vector<8x192xf32> to vector<8x128xf32>
    %424 = arith.addf %422, %423 : vector<8x128xf32>
    %cst_147 = arith.constant 5.000000e-01 : f32
    %425 = vector.broadcast %cst_147 : f32 to vector<8x128xf32>
    %426 = arith.mulf %425, %424 : vector<8x128xf32>
    %427 = math.tanh %426 : vector<8x128xf32>
    %cst_148 = arith.constant 5.000000e-01 : f32
    %428 = vector.broadcast %cst_148 : f32 to vector<8x128xf32>
    %429 = arith.mulf %428, %427 : vector<8x128xf32>
    %cst_149 = arith.constant 5.000000e-01 : f32
    %430 = vector.broadcast %cst_149 : f32 to vector<8x128xf32>
    %431 = arith.addf %429, %430 : vector<8x128xf32>
    %432 = vector.extract_strided_slice %417 {offsets = [0, 128], sizes = [8, 64], strides = [1, 1]} : vector<8x192xf32> to vector<8x64xf32>
    %433 = vector.extract_strided_slice %431 {offsets = [0, 0], sizes = [8, 64], strides = [1, 1]} : vector<8x128xf32> to vector<8x64xf32>
    %434 = vector.extract_strided_slice %421 {offsets = [0, 128], sizes = [8, 64], strides = [1, 1]} : vector<8x192xf32> to vector<8x64xf32>
    %435 = arith.mulf %433, %434 : vector<8x64xf32>
    %436 = arith.addf %432, %435 : vector<8x64xf32>
    %437 = math.tanh %436 : vector<8x64xf32>
    %438 = vector.extract_strided_slice %431 {offsets = [0, 64], sizes = [8, 64], strides = [1, 1]} : vector<8x128xf32> to vector<8x64xf32>
    %cst_150 = arith.constant 1.000000e+00 : f32
    %439 = vector.broadcast %cst_150 : f32 to vector<8x64xf32>
    %440 = arith.subf %439, %438 : vector<8x64xf32>
    %441 = arith.mulf %440, %437 : vector<8x64xf32>
    %442 = arith.mulf %438, %412 : vector<8x64xf32>
    %443 = arith.addf %441, %442 : vector<8x64xf32>
    %444 = vector.extract_strided_slice %443 {offsets = [0, 0], sizes = [8, 32], strides = [1, 1]} : vector<8x64xf32> to vector<8x32xf32>
    %c112_151 = arith.constant 112 : index
    %c0_152 = arith.constant 0 : index
    %445 = vector.load %arg17[%c112_151, %c0_152] : memref<144x64xf32, #tpu.memory_space<vmem>>, vector<8x32xf32>
    tpu.vector_store %arg17[%c112_151, %c0_152], %444 {strides = array<i32>} : memref<144x64xf32, #tpu.memory_space<vmem>>, vector<8x32xf32>,
    %446 = vector.extract_strided_slice %443 {offsets = [0, 32], sizes = [8, 32], strides = [1, 1]} : vector<8x64xf32> to vector<8x32xf32>
    %c24_153 = arith.constant 24 : index
    %c32_154 = arith.constant 32 : index
    %447 = vector.load %arg17[%c24_153, %c32_154] : memref<144x64xf32, #tpu.memory_space<vmem>>, vector<8x32xf32>
    tpu.vector_store %arg17[%c24_153, %c32_154], %446 {strides = array<i32>} : memref<144x64xf32, #tpu.memory_space<vmem>>, vector<8x32xf32>,
    %c112_155 = arith.constant 112 : index
    %c0_156 = arith.constant 0 : index
    %448 = vector.load %arg16[%c112_155, %c0_156] : memref<128x192xf32, #tpu.memory_space<vmem>>, vector<8x192xf32>
    %449 = arith.truncf %443 : vector<8x64xf32> to vector<8x64xbf16>
    %cst_157 = arith.constant dense<0.000000e+00> : vector<8x192xf32>
    %450 = tpu.matmul %449, %11, %cst_157 {dimension_numbers = #tpu.dot_dimension_numbers<[1], [0], [0], [1], [0, 0, 1, 1], [], []>} : vector<8x64xbf16>, vector<64x192xbf16>, vector<8x192xf32> -> vector<8x192xf32>
    %451 = vector.broadcast %12 : vector<1x192xf32> to vector<8x192xf32>
    %452 = arith.addf %450, %451 : vector<8x192xf32>
    %453 = vector.extract_strided_slice %448 {offsets = [0, 0], sizes = [8, 128], strides = [1, 1]} : vector<8x192xf32> to vector<8x128xf32>
    %454 = vector.extract_strided_slice %452 {offsets = [0, 0], sizes = [8, 128], strides = [1, 1]} : vector<8x192xf32> to vector<8x128xf32>
    %455 = arith.addf %453, %454 : vector<8x128xf32>
    %cst_158 = arith.constant 5.000000e-01 : f32
    %456 = vector.broadcast %cst_158 : f32 to vector<8x128xf32>
    %457 = arith.mulf %456, %455 : vector<8x128xf32>
    %458 = math.tanh %457 : vector<8x128xf32>
    %cst_159 = arith.constant 5.000000e-01 : f32
    %459 = vector.broadcast %cst_159 : f32 to vector<8x128xf32>
    %460 = arith.mulf %459, %458 : vector<8x128xf32>
    %cst_160 = arith.constant 5.000000e-01 : f32
    %461 = vector.broadcast %cst_160 : f32 to vector<8x128xf32>
    %462 = arith.addf %460, %461 : vector<8x128xf32>
    %463 = vector.extract_strided_slice %448 {offsets = [0, 128], sizes = [8, 64], strides = [1, 1]} : vector<8x192xf32> to vector<8x64xf32>
    %464 = vector.extract_strided_slice %462 {offsets = [0, 0], sizes = [8, 64], strides = [1, 1]} : vector<8x128xf32> to vector<8x64xf32>
    %465 = vector.extract_strided_slice %452 {offsets = [0, 128], sizes = [8, 64], strides = [1, 1]} : vector<8x192xf32> to vector<8x64xf32>
    %466 = arith.mulf %464, %465 : vector<8x64xf32>
    %467 = arith.addf %463, %466 : vector<8x64xf32>
    %468 = math.tanh %467 : vector<8x64xf32>
    %469 = vector.extract_strided_slice %462 {offsets = [0, 64], sizes = [8, 64], strides = [1, 1]} : vector<8x128xf32> to vector<8x64xf32>
    %cst_161 = arith.constant 1.000000e+00 : f32
    %470 = vector.broadcast %cst_161 : f32 to vector<8x64xf32>
    %471 = arith.subf %470, %469 : vector<8x64xf32>
    %472 = arith.mulf %471, %468 : vector<8x64xf32>
    %473 = arith.mulf %469, %443 : vector<8x64xf32>
    %474 = arith.addf %472, %473 : vector<8x64xf32>
    %475 = vector.extract_strided_slice %474 {offsets = [0, 0], sizes = [8, 32], strides = [1, 1]} : vector<8x64xf32> to vector<8x32xf32>
    %c120_162 = arith.constant 120 : index
    %c0_163 = arith.constant 0 : index
    %476 = vector.load %arg17[%c120_162, %c0_163] : memref<144x64xf32, #tpu.memory_space<vmem>>, vector<8x32xf32>
    tpu.vector_store %arg17[%c120_162, %c0_163], %475 {strides = array<i32>} : memref<144x64xf32, #tpu.memory_space<vmem>>, vector<8x32xf32>,
    %477 = vector.extract_strided_slice %474 {offsets = [0, 32], sizes = [8, 32], strides = [1, 1]} : vector<8x64xf32> to vector<8x32xf32>
    %c16_164 = arith.constant 16 : index
    %c32_165 = arith.constant 32 : index
    %478 = vector.load %arg17[%c16_164, %c32_165] : memref<144x64xf32, #tpu.memory_space<vmem>>, vector<8x32xf32>
    tpu.vector_store %arg17[%c16_164, %c32_165], %477 {strides = array<i32>} : memref<144x64xf32, #tpu.memory_space<vmem>>, vector<8x32xf32>,
    %c120_166 = arith.constant 120 : index
    %c0_167 = arith.constant 0 : index
    %479 = vector.load %arg16[%c120_166, %c0_167] : memref<128x192xf32, #tpu.memory_space<vmem>>, vector<8x192xf32>
    %480 = arith.truncf %474 : vector<8x64xf32> to vector<8x64xbf16>
    %cst_168 = arith.constant dense<0.000000e+00> : vector<8x192xf32>
    %481 = tpu.matmul %480, %11, %cst_168 {dimension_numbers = #tpu.dot_dimension_numbers<[1], [0], [0], [1], [0, 0, 1, 1], [], []>} : vector<8x64xbf16>, vector<64x192xbf16>, vector<8x192xf32> -> vector<8x192xf32>
    %482 = vector.broadcast %12 : vector<1x192xf32> to vector<8x192xf32>
    %483 = arith.addf %481, %482 : vector<8x192xf32>
    %484 = vector.extract_strided_slice %479 {offsets = [0, 0], sizes = [8, 128], strides = [1, 1]} : vector<8x192xf32> to vector<8x128xf32>
    %485 = vector.extract_strided_slice %483 {offsets = [0, 0], sizes = [8, 128], strides = [1, 1]} : vector<8x192xf32> to vector<8x128xf32>
    %486 = arith.addf %484, %485 : vector<8x128xf32>
    %cst_169 = arith.constant 5.000000e-01 : f32
    %487 = vector.broadcast %cst_169 : f32 to vector<8x128xf32>
    %488 = arith.mulf %487, %486 : vector<8x128xf32>
    %489 = math.tanh %488 : vector<8x128xf32>
    %cst_170 = arith.constant 5.000000e-01 : f32
    %490 = vector.broadcast %cst_170 : f32 to vector<8x128xf32>
    %491 = arith.mulf %490, %489 : vector<8x128xf32>
    %cst_171 = arith.constant 5.000000e-01 : f32
    %492 = vector.broadcast %cst_171 : f32 to vector<8x128xf32>
    %493 = arith.addf %491, %492 : vector<8x128xf32>
    %494 = vector.extract_strided_slice %479 {offsets = [0, 128], sizes = [8, 64], strides = [1, 1]} : vector<8x192xf32> to vector<8x64xf32>
    %495 = vector.extract_strided_slice %493 {offsets = [0, 0], sizes = [8, 64], strides = [1, 1]} : vector<8x128xf32> to vector<8x64xf32>
    %496 = vector.extract_strided_slice %483 {offsets = [0, 128], sizes = [8, 64], strides = [1, 1]} : vector<8x192xf32> to vector<8x64xf32>
    %497 = arith.mulf %495, %496 : vector<8x64xf32>
    %498 = arith.addf %494, %497 : vector<8x64xf32>
    %499 = math.tanh %498 : vector<8x64xf32>
    %500 = vector.extract_strided_slice %493 {offsets = [0, 64], sizes = [8, 64], strides = [1, 1]} : vector<8x128xf32> to vector<8x64xf32>
    %cst_172 = arith.constant 1.000000e+00 : f32
    %501 = vector.broadcast %cst_172 : f32 to vector<8x64xf32>
    %502 = arith.subf %501, %500 : vector<8x64xf32>
    %503 = arith.mulf %502, %499 : vector<8x64xf32>
    %504 = arith.mulf %500, %474 : vector<8x64xf32>
    %505 = arith.addf %503, %504 : vector<8x64xf32>
    %506 = vector.extract_strided_slice %505 {offsets = [0, 0], sizes = [8, 32], strides = [1, 1]} : vector<8x64xf32> to vector<8x32xf32>
    %c128_173 = arith.constant 128 : index
    %c0_174 = arith.constant 0 : index
    %507 = vector.load %arg17[%c128_173, %c0_174] : memref<144x64xf32, #tpu.memory_space<vmem>>, vector<8x32xf32>
    tpu.vector_store %arg17[%c128_173, %c0_174], %506 {strides = array<i32>} : memref<144x64xf32, #tpu.memory_space<vmem>>, vector<8x32xf32>,
    %508 = vector.extract_strided_slice %505 {offsets = [0, 32], sizes = [8, 32], strides = [1, 1]} : vector<8x64xf32> to vector<8x32xf32>
    %c8_175 = arith.constant 8 : index
    %c32_176 = arith.constant 32 : index
    %509 = vector.load %arg17[%c8_175, %c32_176] : memref<144x64xf32, #tpu.memory_space<vmem>>, vector<8x32xf32>
    tpu.vector_store %arg17[%c8_175, %c32_176], %508 {strides = array<i32>} : memref<144x64xf32, #tpu.memory_space<vmem>>, vector<8x32xf32>,
    %cst_177 = arith.constant 0.000000e+00 : f32
    %510 = vector.broadcast %cst_177 : f32 to vector<128x16xf32>
    %c0_178 = arith.constant 0 : index
    %c0_179 = arith.constant 0 : index
    %511 = vector.load %arg6[%c0_178, %c0_179] : memref<1x16xf32, #tpu.memory_space<vmem>>, vector<1x16xf32>
    %512 = vector.broadcast %511 : vector<1x16xf32> to vector<128x16xf32>
    %513 = arith.addf %510, %512 : vector<128x16xf32>
    %c0_180 = arith.constant 0 : index
    %c0_181 = arith.constant 0 : index
    %514 = vector.load %arg17[%c0_180, %c0_181] : memref<144x64xf32, #tpu.memory_space<vmem>>, vector<128x64xf32>
    %515 = arith.truncf %514 : vector<128x64xf32> to vector<128x64xbf16>
    %c0_182 = arith.constant 0 : index
    %c0_183 = arith.constant 0 : index
    %c0_184 = arith.constant 0 : index
    %516 = vector.load %arg5[%c0_182, %c0_183, %c0_184] : memref<3x64x16xbf16, #tpu.memory_space<vmem>>, vector<1x64x16xbf16>
    %517 = vector.shape_cast %516 : vector<1x64x16xbf16> to vector<64x16xbf16>
    %cst_185 = arith.constant dense<0.000000e+00> : vector<128x16xf32>
    %518 = tpu.matmul %515, %517, %cst_185 {dimension_numbers = #tpu.dot_dimension_numbers<[1], [0], [0], [1], [0, 0, 1, 1], [], []>} : vector<128x64xbf16>, vector<64x16xbf16>, vector<128x16xf32> -> vector<128x16xf32>
    %519 = arith.addf %513, %518 : vector<128x16xf32>
    %c8_186 = arith.constant 8 : index
    %c0_187 = arith.constant 0 : index
    %520 = vector.load %arg17[%c8_186, %c0_187] : memref<144x64xf32, #tpu.memory_space<vmem>>, vector<128x64xf32>
    %521 = arith.truncf %520 : vector<128x64xf32> to vector<128x64xbf16>
    %c1 = arith.constant 1 : index
    %c0_188 = arith.constant 0 : index
    %c0_189 = arith.constant 0 : index
    %522 = vector.load %arg5[%c1, %c0_188, %c0_189] : memref<3x64x16xbf16, #tpu.memory_space<vmem>>, vector<1x64x16xbf16>
    %523 = vector.shape_cast %522 : vector<1x64x16xbf16> to vector<64x16xbf16>
    %cst_190 = arith.constant dense<0.000000e+00> : vector<128x16xf32>
    %524 = tpu.matmul %521, %523, %cst_190 {dimension_numbers = #tpu.dot_dimension_numbers<[1], [0], [0], [1], [0, 0, 1, 1], [], []>} : vector<128x64xbf16>, vector<64x16xbf16>, vector<128x16xf32> -> vector<128x16xf32>
    %525 = arith.addf %519, %524 : vector<128x16xf32>
    %c16_191 = arith.constant 16 : index
    %c0_192 = arith.constant 0 : index
    %526 = vector.load %arg17[%c16_191, %c0_192] : memref<144x64xf32, #tpu.memory_space<vmem>>, vector<128x64xf32>
    %527 = arith.truncf %526 : vector<128x64xf32> to vector<128x64xbf16>
    %c2 = arith.constant 2 : index
    %c0_193 = arith.constant 0 : index
    %c0_194 = arith.constant 0 : index
    %528 = vector.load %arg5[%c2, %c0_193, %c0_194] : memref<3x64x16xbf16, #tpu.memory_space<vmem>>, vector<1x64x16xbf16>
    %529 = vector.shape_cast %528 : vector<1x64x16xbf16> to vector<64x16xbf16>
    %cst_195 = arith.constant dense<0.000000e+00> : vector<128x16xf32>
    %530 = tpu.matmul %527, %529, %cst_195 {dimension_numbers = #tpu.dot_dimension_numbers<[1], [0], [0], [1], [0, 0, 1, 1], [], []>} : vector<128x64xbf16>, vector<64x16xbf16>, vector<128x16xf32> -> vector<128x16xf32>
    %531 = arith.addf %525, %530 : vector<128x16xf32>
    %c0_196 = arith.constant 0 : index
    %c0_197 = arith.constant 0 : index
    %532 = vector.load %arg7[%c0_196, %c0_197] : memref<1x16xf32, #tpu.memory_space<vmem>>, vector<1x16xf32>
    %533 = vector.broadcast %532 : vector<1x16xf32> to vector<128x16xf32>
    %534 = arith.mulf %531, %533 : vector<128x16xf32>
    %c0_198 = arith.constant 0 : index
    %c0_199 = arith.constant 0 : index
    %535 = vector.load %arg8[%c0_198, %c0_199] : memref<1x16xf32, #tpu.memory_space<vmem>>, vector<1x16xf32>
    %536 = vector.broadcast %535 : vector<1x16xf32> to vector<128x16xf32>
    %537 = arith.addf %534, %536 : vector<128x16xf32>
    %cst_200 = arith.constant 0.000000e+00 : f32
    %538 = vector.broadcast %cst_200 : f32 to vector<128x16xf32>
    %539 = arith.maximumf %537, %538 : vector<128x16xf32>
    %540 = vector.extract_strided_slice %539 {offsets = [0, 0], sizes = [8, 16], strides = [1, 1]} : vector<128x16xf32> to vector<8x16xf32>
    %541 = vector.extract_strided_slice %539 {offsets = [8, 0], sizes = [8, 16], strides = [1, 1]} : vector<128x16xf32> to vector<8x16xf32>
    %542 = arith.maximumf %540, %541 : vector<8x16xf32>
    %c0_201 = arith.constant 0 : index
    %c0_202 = arith.constant 0 : index
    %543 = vector.load %arg18[%c0_201, %c0_202] : memref<64x32xf32, #tpu.memory_space<vmem>>, vector<8x16xf32>
    tpu.vector_store %arg18[%c0_201, %c0_202], %542 {strides = array<i32>} : memref<64x32xf32, #tpu.memory_space<vmem>>, vector<8x16xf32>,
    %c56_203 = arith.constant 56 : index
    %c16_204 = arith.constant 16 : index
    %544 = vector.load %arg18[%c56_203, %c16_204] : memref<64x32xf32, #tpu.memory_space<vmem>>, vector<8x16xf32>
    tpu.vector_store %arg18[%c56_203, %c16_204], %542 {strides = array<i32>} : memref<64x32xf32, #tpu.memory_space<vmem>>, vector<8x16xf32>,
    %545 = vector.extract_strided_slice %539 {offsets = [16, 0], sizes = [8, 16], strides = [1, 1]} : vector<128x16xf32> to vector<8x16xf32>
    %546 = vector.extract_strided_slice %539 {offsets = [24, 0], sizes = [8, 16], strides = [1, 1]} : vector<128x16xf32> to vector<8x16xf32>
    %547 = arith.maximumf %545, %546 : vector<8x16xf32>
    %c8_205 = arith.constant 8 : index
    %c0_206 = arith.constant 0 : index
    %548 = vector.load %arg18[%c8_205, %c0_206] : memref<64x32xf32, #tpu.memory_space<vmem>>, vector<8x16xf32>
    tpu.vector_store %arg18[%c8_205, %c0_206], %547 {strides = array<i32>} : memref<64x32xf32, #tpu.memory_space<vmem>>, vector<8x16xf32>,
    %c48_207 = arith.constant 48 : index
    %c16_208 = arith.constant 16 : index
    %549 = vector.load %arg18[%c48_207, %c16_208] : memref<64x32xf32, #tpu.memory_space<vmem>>, vector<8x16xf32>
    tpu.vector_store %arg18[%c48_207, %c16_208], %547 {strides = array<i32>} : memref<64x32xf32, #tpu.memory_space<vmem>>, vector<8x16xf32>,
    %550 = vector.extract_strided_slice %539 {offsets = [32, 0], sizes = [8, 16], strides = [1, 1]} : vector<128x16xf32> to vector<8x16xf32>
    %551 = vector.extract_strided_slice %539 {offsets = [40, 0], sizes = [8, 16], strides = [1, 1]} : vector<128x16xf32> to vector<8x16xf32>
    %552 = arith.maximumf %550, %551 : vector<8x16xf32>
    %c16_209 = arith.constant 16 : index
    %c0_210 = arith.constant 0 : index
    %553 = vector.load %arg18[%c16_209, %c0_210] : memref<64x32xf32, #tpu.memory_space<vmem>>, vector<8x16xf32>
    tpu.vector_store %arg18[%c16_209, %c0_210], %552 {strides = array<i32>} : memref<64x32xf32, #tpu.memory_space<vmem>>, vector<8x16xf32>,
    %c40_211 = arith.constant 40 : index
    %c16_212 = arith.constant 16 : index
    %554 = vector.load %arg18[%c40_211, %c16_212] : memref<64x32xf32, #tpu.memory_space<vmem>>, vector<8x16xf32>
    tpu.vector_store %arg18[%c40_211, %c16_212], %552 {strides = array<i32>} : memref<64x32xf32, #tpu.memory_space<vmem>>, vector<8x16xf32>,
    %555 = vector.extract_strided_slice %539 {offsets = [48, 0], sizes = [8, 16], strides = [1, 1]} : vector<128x16xf32> to vector<8x16xf32>
    %556 = vector.extract_strided_slice %539 {offsets = [56, 0], sizes = [8, 16], strides = [1, 1]} : vector<128x16xf32> to vector<8x16xf32>
    %557 = arith.maximumf %555, %556 : vector<8x16xf32>
    %c24_213 = arith.constant 24 : index
    %c0_214 = arith.constant 0 : index
    %558 = vector.load %arg18[%c24_213, %c0_214] : memref<64x32xf32, #tpu.memory_space<vmem>>, vector<8x16xf32>
    tpu.vector_store %arg18[%c24_213, %c0_214], %557 {strides = array<i32>} : memref<64x32xf32, #tpu.memory_space<vmem>>, vector<8x16xf32>,
    %c32_215 = arith.constant 32 : index
    %c16_216 = arith.constant 16 : index
    %559 = vector.load %arg18[%c32_215, %c16_216] : memref<64x32xf32, #tpu.memory_space<vmem>>, vector<8x16xf32>
    tpu.vector_store %arg18[%c32_215, %c16_216], %557 {strides = array<i32>} : memref<64x32xf32, #tpu.memory_space<vmem>>, vector<8x16xf32>,
    %560 = vector.extract_strided_slice %539 {offsets = [64, 0], sizes = [8, 16], strides = [1, 1]} : vector<128x16xf32> to vector<8x16xf32>
    %561 = vector.extract_strided_slice %539 {offsets = [72, 0], sizes = [8, 16], strides = [1, 1]} : vector<128x16xf32> to vector<8x16xf32>
    %562 = arith.maximumf %560, %561 : vector<8x16xf32>
    %c32_217 = arith.constant 32 : index
    %c0_218 = arith.constant 0 : index
    %563 = vector.load %arg18[%c32_217, %c0_218] : memref<64x32xf32, #tpu.memory_space<vmem>>, vector<8x16xf32>
    tpu.vector_store %arg18[%c32_217, %c0_218], %562 {strides = array<i32>} : memref<64x32xf32, #tpu.memory_space<vmem>>, vector<8x16xf32>,
    %c24_219 = arith.constant 24 : index
    %c16_220 = arith.constant 16 : index
    %564 = vector.load %arg18[%c24_219, %c16_220] : memref<64x32xf32, #tpu.memory_space<vmem>>, vector<8x16xf32>
    tpu.vector_store %arg18[%c24_219, %c16_220], %562 {strides = array<i32>} : memref<64x32xf32, #tpu.memory_space<vmem>>, vector<8x16xf32>,
    %565 = vector.extract_strided_slice %539 {offsets = [80, 0], sizes = [8, 16], strides = [1, 1]} : vector<128x16xf32> to vector<8x16xf32>
    %566 = vector.extract_strided_slice %539 {offsets = [88, 0], sizes = [8, 16], strides = [1, 1]} : vector<128x16xf32> to vector<8x16xf32>
    %567 = arith.maximumf %565, %566 : vector<8x16xf32>
    %c40_221 = arith.constant 40 : index
    %c0_222 = arith.constant 0 : index
    %568 = vector.load %arg18[%c40_221, %c0_222] : memref<64x32xf32, #tpu.memory_space<vmem>>, vector<8x16xf32>
    tpu.vector_store %arg18[%c40_221, %c0_222], %567 {strides = array<i32>} : memref<64x32xf32, #tpu.memory_space<vmem>>, vector<8x16xf32>,
    %c16_223 = arith.constant 16 : index
    %c16_224 = arith.constant 16 : index
    %569 = vector.load %arg18[%c16_223, %c16_224] : memref<64x32xf32, #tpu.memory_space<vmem>>, vector<8x16xf32>
    tpu.vector_store %arg18[%c16_223, %c16_224], %567 {strides = array<i32>} : memref<64x32xf32, #tpu.memory_space<vmem>>, vector<8x16xf32>,
    %570 = vector.extract_strided_slice %539 {offsets = [96, 0], sizes = [8, 16], strides = [1, 1]} : vector<128x16xf32> to vector<8x16xf32>
    %571 = vector.extract_strided_slice %539 {offsets = [104, 0], sizes = [8, 16], strides = [1, 1]} : vector<128x16xf32> to vector<8x16xf32>
    %572 = arith.maximumf %570, %571 : vector<8x16xf32>
    %c48_225 = arith.constant 48 : index
    %c0_226 = arith.constant 0 : index
    %573 = vector.load %arg18[%c48_225, %c0_226] : memref<64x32xf32, #tpu.memory_space<vmem>>, vector<8x16xf32>
    tpu.vector_store %arg18[%c48_225, %c0_226], %572 {strides = array<i32>} : memref<64x32xf32, #tpu.memory_space<vmem>>, vector<8x16xf32>,
    %c8_227 = arith.constant 8 : index
    %c16_228 = arith.constant 16 : index
    %574 = vector.load %arg18[%c8_227, %c16_228] : memref<64x32xf32, #tpu.memory_space<vmem>>, vector<8x16xf32>
    tpu.vector_store %arg18[%c8_227, %c16_228], %572 {strides = array<i32>} : memref<64x32xf32, #tpu.memory_space<vmem>>, vector<8x16xf32>,
    %575 = vector.extract_strided_slice %539 {offsets = [112, 0], sizes = [8, 16], strides = [1, 1]} : vector<128x16xf32> to vector<8x16xf32>
    %576 = vector.extract_strided_slice %539 {offsets = [120, 0], sizes = [8, 16], strides = [1, 1]} : vector<128x16xf32> to vector<8x16xf32>
    %577 = arith.maximumf %575, %576 : vector<8x16xf32>
    %c56_229 = arith.constant 56 : index
    %c0_230 = arith.constant 0 : index
    %578 = vector.load %arg18[%c56_229, %c0_230] : memref<64x32xf32, #tpu.memory_space<vmem>>, vector<8x16xf32>
    tpu.vector_store %arg18[%c56_229, %c0_230], %577 {strides = array<i32>} : memref<64x32xf32, #tpu.memory_space<vmem>>, vector<8x16xf32>,
    %c0_231 = arith.constant 0 : index
    %c16_232 = arith.constant 16 : index
    %579 = vector.load %arg18[%c0_231, %c16_232] : memref<64x32xf32, #tpu.memory_space<vmem>>, vector<8x16xf32>
    tpu.vector_store %arg18[%c0_231, %c16_232], %577 {strides = array<i32>} : memref<64x32xf32, #tpu.memory_space<vmem>>, vector<8x16xf32>,
    %c0_233 = arith.constant 0 : index
    %c0_234 = arith.constant 0 : index
    %580 = vector.load %arg18[%c0_233, %c0_234] : memref<64x32xf32, #tpu.memory_space<vmem>>, vector<64x32xf32>
    %581 = arith.truncf %580 : vector<64x32xf32> to vector<64x32xbf16>
    %c0_235 = arith.constant 0 : index
    %c0_236 = arith.constant 0 : index
    %582 = vector.load %arg9[%c0_235, %c0_236] : memref<32x192xbf16, #tpu.memory_space<vmem>>, vector<32x192xbf16>
    %cst_237 = arith.constant dense<0.000000e+00> : vector<64x192xf32>
    %583 = tpu.matmul %581, %582, %cst_237 {dimension_numbers = #tpu.dot_dimension_numbers<[1], [0], [0], [1], [0, 0, 1, 1], [], []>} : vector<64x32xbf16>, vector<32x192xbf16>, vector<64x192xf32> -> vector<64x192xf32>
    %c0_238 = arith.constant 0 : index
    %c0_239 = arith.constant 0 : index
    %584 = vector.load %arg10[%c0_238, %c0_239] : memref<1x192xf32, #tpu.memory_space<vmem>>, vector<1x192xf32>
    %585 = vector.broadcast %584 : vector<1x192xf32> to vector<64x192xf32>
    %586 = arith.addf %583, %585 : vector<64x192xf32>
    %c0_240 = arith.constant 0 : index
    %c0_241 = arith.constant 0 : index
    %587 = vector.load %arg19[%c0_240, %c0_241] : memref<64x192xf32, #tpu.memory_space<vmem>>, vector<64x192xf32>
    tpu.vector_store %arg19[%c0_240, %c0_241], %586 {strides = array<i32>} : memref<64x192xf32, #tpu.memory_space<vmem>>, vector<64x192xf32>,
    %c0_242 = arith.constant 0 : index
    %c0_243 = arith.constant 0 : index
    %588 = vector.load %arg11[%c0_242, %c0_243] : memref<64x192xbf16, #tpu.memory_space<vmem>>, vector<64x192xbf16>
    %c0_244 = arith.constant 0 : index
    %c0_245 = arith.constant 0 : index
    %589 = vector.load %arg12[%c0_244, %c0_245] : memref<1x192xf32, #tpu.memory_space<vmem>>, vector<1x192xf32>
    %cst_246 = arith.constant 0.000000e+00 : f32
    %590 = vector.broadcast %cst_246 : f32 to vector<8x64xf32>
    %c0_247 = arith.constant 0 : index
    %c0_248 = arith.constant 0 : index
    %591 = vector.load %arg19[%c0_247, %c0_248] : memref<64x192xf32, #tpu.memory_space<vmem>>, vector<8x192xf32>
    %592 = arith.truncf %590 : vector<8x64xf32> to vector<8x64xbf16>
    %cst_249 = arith.constant dense<0.000000e+00> : vector<8x192xf32>
    %593 = tpu.matmul %592, %588, %cst_249 {dimension_numbers = #tpu.dot_dimension_numbers<[1], [0], [0], [1], [0, 0, 1, 1], [], []>} : vector<8x64xbf16>, vector<64x192xbf16>, vector<8x192xf32> -> vector<8x192xf32>
    %594 = vector.broadcast %589 : vector<1x192xf32> to vector<8x192xf32>
    %595 = arith.addf %593, %594 : vector<8x192xf32>
    %596 = vector.extract_strided_slice %591 {offsets = [0, 0], sizes = [8, 128], strides = [1, 1]} : vector<8x192xf32> to vector<8x128xf32>
    %597 = vector.extract_strided_slice %595 {offsets = [0, 0], sizes = [8, 128], strides = [1, 1]} : vector<8x192xf32> to vector<8x128xf32>
    %598 = arith.addf %596, %597 : vector<8x128xf32>
    %cst_250 = arith.constant 5.000000e-01 : f32
    %599 = vector.broadcast %cst_250 : f32 to vector<8x128xf32>
    %600 = arith.mulf %599, %598 : vector<8x128xf32>
    %601 = math.tanh %600 : vector<8x128xf32>
    %cst_251 = arith.constant 5.000000e-01 : f32
    %602 = vector.broadcast %cst_251 : f32 to vector<8x128xf32>
    %603 = arith.mulf %602, %601 : vector<8x128xf32>
    %cst_252 = arith.constant 5.000000e-01 : f32
    %604 = vector.broadcast %cst_252 : f32 to vector<8x128xf32>
    %605 = arith.addf %603, %604 : vector<8x128xf32>
    %606 = vector.extract_strided_slice %591 {offsets = [0, 128], sizes = [8, 64], strides = [1, 1]} : vector<8x192xf32> to vector<8x64xf32>
    %607 = vector.extract_strided_slice %605 {offsets = [0, 0], sizes = [8, 64], strides = [1, 1]} : vector<8x128xf32> to vector<8x64xf32>
    %608 = vector.extract_strided_slice %595 {offsets = [0, 128], sizes = [8, 64], strides = [1, 1]} : vector<8x192xf32> to vector<8x64xf32>
    %609 = arith.mulf %607, %608 : vector<8x64xf32>
    %610 = arith.addf %606, %609 : vector<8x64xf32>
    %611 = math.tanh %610 : vector<8x64xf32>
    %612 = vector.extract_strided_slice %605 {offsets = [0, 64], sizes = [8, 64], strides = [1, 1]} : vector<8x128xf32> to vector<8x64xf32>
    %cst_253 = arith.constant 1.000000e+00 : f32
    %613 = vector.broadcast %cst_253 : f32 to vector<8x64xf32>
    %614 = arith.subf %613, %612 : vector<8x64xf32>
    %615 = arith.mulf %614, %611 : vector<8x64xf32>
    %616 = arith.mulf %612, %590 : vector<8x64xf32>
    %617 = arith.addf %615, %616 : vector<8x64xf32>
    %c8_254 = arith.constant 8 : index
    %c0_255 = arith.constant 0 : index
    %618 = vector.load %arg19[%c8_254, %c0_255] : memref<64x192xf32, #tpu.memory_space<vmem>>, vector<8x192xf32>
    %619 = arith.truncf %617 : vector<8x64xf32> to vector<8x64xbf16>
    %cst_256 = arith.constant dense<0.000000e+00> : vector<8x192xf32>
    %620 = tpu.matmul %619, %588, %cst_256 {dimension_numbers = #tpu.dot_dimension_numbers<[1], [0], [0], [1], [0, 0, 1, 1], [], []>} : vector<8x64xbf16>, vector<64x192xbf16>, vector<8x192xf32> -> vector<8x192xf32>
    %621 = vector.broadcast %589 : vector<1x192xf32> to vector<8x192xf32>
    %622 = arith.addf %620, %621 : vector<8x192xf32>
    %623 = vector.extract_strided_slice %618 {offsets = [0, 0], sizes = [8, 128], strides = [1, 1]} : vector<8x192xf32> to vector<8x128xf32>
    %624 = vector.extract_strided_slice %622 {offsets = [0, 0], sizes = [8, 128], strides = [1, 1]} : vector<8x192xf32> to vector<8x128xf32>
    %625 = arith.addf %623, %624 : vector<8x128xf32>
    %cst_257 = arith.constant 5.000000e-01 : f32
    %626 = vector.broadcast %cst_257 : f32 to vector<8x128xf32>
    %627 = arith.mulf %626, %625 : vector<8x128xf32>
    %628 = math.tanh %627 : vector<8x128xf32>
    %cst_258 = arith.constant 5.000000e-01 : f32
    %629 = vector.broadcast %cst_258 : f32 to vector<8x128xf32>
    %630 = arith.mulf %629, %628 : vector<8x128xf32>
    %cst_259 = arith.constant 5.000000e-01 : f32
    %631 = vector.broadcast %cst_259 : f32 to vector<8x128xf32>
    %632 = arith.addf %630, %631 : vector<8x128xf32>
    %633 = vector.extract_strided_slice %618 {offsets = [0, 128], sizes = [8, 64], strides = [1, 1]} : vector<8x192xf32> to vector<8x64xf32>
    %634 = vector.extract_strided_slice %632 {offsets = [0, 0], sizes = [8, 64], strides = [1, 1]} : vector<8x128xf32> to vector<8x64xf32>
    %635 = vector.extract_strided_slice %622 {offsets = [0, 128], sizes = [8, 64], strides = [1, 1]} : vector<8x192xf32> to vector<8x64xf32>
    %636 = arith.mulf %634, %635 : vector<8x64xf32>
    %637 = arith.addf %633, %636 : vector<8x64xf32>
    %638 = math.tanh %637 : vector<8x64xf32>
    %639 = vector.extract_strided_slice %632 {offsets = [0, 64], sizes = [8, 64], strides = [1, 1]} : vector<8x128xf32> to vector<8x64xf32>
    %cst_260 = arith.constant 1.000000e+00 : f32
    %640 = vector.broadcast %cst_260 : f32 to vector<8x64xf32>
    %641 = arith.subf %640, %639 : vector<8x64xf32>
    %642 = arith.mulf %641, %638 : vector<8x64xf32>
    %643 = arith.mulf %639, %617 : vector<8x64xf32>
    %644 = arith.addf %642, %643 : vector<8x64xf32>
    %c16_261 = arith.constant 16 : index
    %c0_262 = arith.constant 0 : index
    %645 = vector.load %arg19[%c16_261, %c0_262] : memref<64x192xf32, #tpu.memory_space<vmem>>, vector<8x192xf32>
    %646 = arith.truncf %644 : vector<8x64xf32> to vector<8x64xbf16>
    %cst_263 = arith.constant dense<0.000000e+00> : vector<8x192xf32>
    %647 = tpu.matmul %646, %588, %cst_263 {dimension_numbers = #tpu.dot_dimension_numbers<[1], [0], [0], [1], [0, 0, 1, 1], [], []>} : vector<8x64xbf16>, vector<64x192xbf16>, vector<8x192xf32> -> vector<8x192xf32>
    %648 = vector.broadcast %589 : vector<1x192xf32> to vector<8x192xf32>
    %649 = arith.addf %647, %648 : vector<8x192xf32>
    %650 = vector.extract_strided_slice %645 {offsets = [0, 0], sizes = [8, 128], strides = [1, 1]} : vector<8x192xf32> to vector<8x128xf32>
    %651 = vector.extract_strided_slice %649 {offsets = [0, 0], sizes = [8, 128], strides = [1, 1]} : vector<8x192xf32> to vector<8x128xf32>
    %652 = arith.addf %650, %651 : vector<8x128xf32>
    %cst_264 = arith.constant 5.000000e-01 : f32
    %653 = vector.broadcast %cst_264 : f32 to vector<8x128xf32>
    %654 = arith.mulf %653, %652 : vector<8x128xf32>
    %655 = math.tanh %654 : vector<8x128xf32>
    %cst_265 = arith.constant 5.000000e-01 : f32
    %656 = vector.broadcast %cst_265 : f32 to vector<8x128xf32>
    %657 = arith.mulf %656, %655 : vector<8x128xf32>
    %cst_266 = arith.constant 5.000000e-01 : f32
    %658 = vector.broadcast %cst_266 : f32 to vector<8x128xf32>
    %659 = arith.addf %657, %658 : vector<8x128xf32>
    %660 = vector.extract_strided_slice %645 {offsets = [0, 128], sizes = [8, 64], strides = [1, 1]} : vector<8x192xf32> to vector<8x64xf32>
    %661 = vector.extract_strided_slice %659 {offsets = [0, 0], sizes = [8, 64], strides = [1, 1]} : vector<8x128xf32> to vector<8x64xf32>
    %662 = vector.extract_strided_slice %649 {offsets = [0, 128], sizes = [8, 64], strides = [1, 1]} : vector<8x192xf32> to vector<8x64xf32>
    %663 = arith.mulf %661, %662 : vector<8x64xf32>
    %664 = arith.addf %660, %663 : vector<8x64xf32>
    %665 = math.tanh %664 : vector<8x64xf32>
    %666 = vector.extract_strided_slice %659 {offsets = [0, 64], sizes = [8, 64], strides = [1, 1]} : vector<8x128xf32> to vector<8x64xf32>
    %cst_267 = arith.constant 1.000000e+00 : f32
    %667 = vector.broadcast %cst_267 : f32 to vector<8x64xf32>
    %668 = arith.subf %667, %666 : vector<8x64xf32>
    %669 = arith.mulf %668, %665 : vector<8x64xf32>
    %670 = arith.mulf %666, %644 : vector<8x64xf32>
    %671 = arith.addf %669, %670 : vector<8x64xf32>
    %c24_268 = arith.constant 24 : index
    %c0_269 = arith.constant 0 : index
    %672 = vector.load %arg19[%c24_268, %c0_269] : memref<64x192xf32, #tpu.memory_space<vmem>>, vector<8x192xf32>
    %673 = arith.truncf %671 : vector<8x64xf32> to vector<8x64xbf16>
    %cst_270 = arith.constant dense<0.000000e+00> : vector<8x192xf32>
    %674 = tpu.matmul %673, %588, %cst_270 {dimension_numbers = #tpu.dot_dimension_numbers<[1], [0], [0], [1], [0, 0, 1, 1], [], []>} : vector<8x64xbf16>, vector<64x192xbf16>, vector<8x192xf32> -> vector<8x192xf32>
    %675 = vector.broadcast %589 : vector<1x192xf32> to vector<8x192xf32>
    %676 = arith.addf %674, %675 : vector<8x192xf32>
    %677 = vector.extract_strided_slice %672 {offsets = [0, 0], sizes = [8, 128], strides = [1, 1]} : vector<8x192xf32> to vector<8x128xf32>
    %678 = vector.extract_strided_slice %676 {offsets = [0, 0], sizes = [8, 128], strides = [1, 1]} : vector<8x192xf32> to vector<8x128xf32>
    %679 = arith.addf %677, %678 : vector<8x128xf32>
    %cst_271 = arith.constant 5.000000e-01 : f32
    %680 = vector.broadcast %cst_271 : f32 to vector<8x128xf32>
    %681 = arith.mulf %680, %679 : vector<8x128xf32>
    %682 = math.tanh %681 : vector<8x128xf32>
    %cst_272 = arith.constant 5.000000e-01 : f32
    %683 = vector.broadcast %cst_272 : f32 to vector<8x128xf32>
    %684 = arith.mulf %683, %682 : vector<8x128xf32>
    %cst_273 = arith.constant 5.000000e-01 : f32
    %685 = vector.broadcast %cst_273 : f32 to vector<8x128xf32>
    %686 = arith.addf %684, %685 : vector<8x128xf32>
    %687 = vector.extract_strided_slice %672 {offsets = [0, 128], sizes = [8, 64], strides = [1, 1]} : vector<8x192xf32> to vector<8x64xf32>
    %688 = vector.extract_strided_slice %686 {offsets = [0, 0], sizes = [8, 64], strides = [1, 1]} : vector<8x128xf32> to vector<8x64xf32>
    %689 = vector.extract_strided_slice %676 {offsets = [0, 128], sizes = [8, 64], strides = [1, 1]} : vector<8x192xf32> to vector<8x64xf32>
    %690 = arith.mulf %688, %689 : vector<8x64xf32>
    %691 = arith.addf %687, %690 : vector<8x64xf32>
    %692 = math.tanh %691 : vector<8x64xf32>
    %693 = vector.extract_strided_slice %686 {offsets = [0, 64], sizes = [8, 64], strides = [1, 1]} : vector<8x128xf32> to vector<8x64xf32>
    %cst_274 = arith.constant 1.000000e+00 : f32
    %694 = vector.broadcast %cst_274 : f32 to vector<8x64xf32>
    %695 = arith.subf %694, %693 : vector<8x64xf32>
    %696 = arith.mulf %695, %692 : vector<8x64xf32>
    %697 = arith.mulf %693, %671 : vector<8x64xf32>
    %698 = arith.addf %696, %697 : vector<8x64xf32>
    %c32_275 = arith.constant 32 : index
    %c0_276 = arith.constant 0 : index
    %699 = vector.load %arg19[%c32_275, %c0_276] : memref<64x192xf32, #tpu.memory_space<vmem>>, vector<8x192xf32>
    %700 = arith.truncf %698 : vector<8x64xf32> to vector<8x64xbf16>
    %cst_277 = arith.constant dense<0.000000e+00> : vector<8x192xf32>
    %701 = tpu.matmul %700, %588, %cst_277 {dimension_numbers = #tpu.dot_dimension_numbers<[1], [0], [0], [1], [0, 0, 1, 1], [], []>} : vector<8x64xbf16>, vector<64x192xbf16>, vector<8x192xf32> -> vector<8x192xf32>
    %702 = vector.broadcast %589 : vector<1x192xf32> to vector<8x192xf32>
    %703 = arith.addf %701, %702 : vector<8x192xf32>
    %704 = vector.extract_strided_slice %699 {offsets = [0, 0], sizes = [8, 128], strides = [1, 1]} : vector<8x192xf32> to vector<8x128xf32>
    %705 = vector.extract_strided_slice %703 {offsets = [0, 0], sizes = [8, 128], strides = [1, 1]} : vector<8x192xf32> to vector<8x128xf32>
    %706 = arith.addf %704, %705 : vector<8x128xf32>
    %cst_278 = arith.constant 5.000000e-01 : f32
    %707 = vector.broadcast %cst_278 : f32 to vector<8x128xf32>
    %708 = arith.mulf %707, %706 : vector<8x128xf32>
    %709 = math.tanh %708 : vector<8x128xf32>
    %cst_279 = arith.constant 5.000000e-01 : f32
    %710 = vector.broadcast %cst_279 : f32 to vector<8x128xf32>
    %711 = arith.mulf %710, %709 : vector<8x128xf32>
    %cst_280 = arith.constant 5.000000e-01 : f32
    %712 = vector.broadcast %cst_280 : f32 to vector<8x128xf32>
    %713 = arith.addf %711, %712 : vector<8x128xf32>
    %714 = vector.extract_strided_slice %699 {offsets = [0, 128], sizes = [8, 64], strides = [1, 1]} : vector<8x192xf32> to vector<8x64xf32>
    %715 = vector.extract_strided_slice %713 {offsets = [0, 0], sizes = [8, 64], strides = [1, 1]} : vector<8x128xf32> to vector<8x64xf32>
    %716 = vector.extract_strided_slice %703 {offsets = [0, 128], sizes = [8, 64], strides = [1, 1]} : vector<8x192xf32> to vector<8x64xf32>
    %717 = arith.mulf %715, %716 : vector<8x64xf32>
    %718 = arith.addf %714, %717 : vector<8x64xf32>
    %719 = math.tanh %718 : vector<8x64xf32>
    %720 = vector.extract_strided_slice %713 {offsets = [0, 64], sizes = [8, 64], strides = [1, 1]} : vector<8x128xf32> to vector<8x64xf32>
    %cst_281 = arith.constant 1.000000e+00 : f32
    %721 = vector.broadcast %cst_281 : f32 to vector<8x64xf32>
    %722 = arith.subf %721, %720 : vector<8x64xf32>
    %723 = arith.mulf %722, %719 : vector<8x64xf32>
    %724 = arith.mulf %720, %698 : vector<8x64xf32>
    %725 = arith.addf %723, %724 : vector<8x64xf32>
    %c40_282 = arith.constant 40 : index
    %c0_283 = arith.constant 0 : index
    %726 = vector.load %arg19[%c40_282, %c0_283] : memref<64x192xf32, #tpu.memory_space<vmem>>, vector<8x192xf32>
    %727 = arith.truncf %725 : vector<8x64xf32> to vector<8x64xbf16>
    %cst_284 = arith.constant dense<0.000000e+00> : vector<8x192xf32>
    %728 = tpu.matmul %727, %588, %cst_284 {dimension_numbers = #tpu.dot_dimension_numbers<[1], [0], [0], [1], [0, 0, 1, 1], [], []>} : vector<8x64xbf16>, vector<64x192xbf16>, vector<8x192xf32> -> vector<8x192xf32>
    %729 = vector.broadcast %589 : vector<1x192xf32> to vector<8x192xf32>
    %730 = arith.addf %728, %729 : vector<8x192xf32>
    %731 = vector.extract_strided_slice %726 {offsets = [0, 0], sizes = [8, 128], strides = [1, 1]} : vector<8x192xf32> to vector<8x128xf32>
    %732 = vector.extract_strided_slice %730 {offsets = [0, 0], sizes = [8, 128], strides = [1, 1]} : vector<8x192xf32> to vector<8x128xf32>
    %733 = arith.addf %731, %732 : vector<8x128xf32>
    %cst_285 = arith.constant 5.000000e-01 : f32
    %734 = vector.broadcast %cst_285 : f32 to vector<8x128xf32>
    %735 = arith.mulf %734, %733 : vector<8x128xf32>
    %736 = math.tanh %735 : vector<8x128xf32>
    %cst_286 = arith.constant 5.000000e-01 : f32
    %737 = vector.broadcast %cst_286 : f32 to vector<8x128xf32>
    %738 = arith.mulf %737, %736 : vector<8x128xf32>
    %cst_287 = arith.constant 5.000000e-01 : f32
    %739 = vector.broadcast %cst_287 : f32 to vector<8x128xf32>
    %740 = arith.addf %738, %739 : vector<8x128xf32>
    %741 = vector.extract_strided_slice %726 {offsets = [0, 128], sizes = [8, 64], strides = [1, 1]} : vector<8x192xf32> to vector<8x64xf32>
    %742 = vector.extract_strided_slice %740 {offsets = [0, 0], sizes = [8, 64], strides = [1, 1]} : vector<8x128xf32> to vector<8x64xf32>
    %743 = vector.extract_strided_slice %730 {offsets = [0, 128], sizes = [8, 64], strides = [1, 1]} : vector<8x192xf32> to vector<8x64xf32>
    %744 = arith.mulf %742, %743 : vector<8x64xf32>
    %745 = arith.addf %741, %744 : vector<8x64xf32>
    %746 = math.tanh %745 : vector<8x64xf32>
    %747 = vector.extract_strided_slice %740 {offsets = [0, 64], sizes = [8, 64], strides = [1, 1]} : vector<8x128xf32> to vector<8x64xf32>
    %cst_288 = arith.constant 1.000000e+00 : f32
    %748 = vector.broadcast %cst_288 : f32 to vector<8x64xf32>
    %749 = arith.subf %748, %747 : vector<8x64xf32>
    %750 = arith.mulf %749, %746 : vector<8x64xf32>
    %751 = arith.mulf %747, %725 : vector<8x64xf32>
    %752 = arith.addf %750, %751 : vector<8x64xf32>
    %c48_289 = arith.constant 48 : index
    %c0_290 = arith.constant 0 : index
    %753 = vector.load %arg19[%c48_289, %c0_290] : memref<64x192xf32, #tpu.memory_space<vmem>>, vector<8x192xf32>
    %754 = arith.truncf %752 : vector<8x64xf32> to vector<8x64xbf16>
    %cst_291 = arith.constant dense<0.000000e+00> : vector<8x192xf32>
    %755 = tpu.matmul %754, %588, %cst_291 {dimension_numbers = #tpu.dot_dimension_numbers<[1], [0], [0], [1], [0, 0, 1, 1], [], []>} : vector<8x64xbf16>, vector<64x192xbf16>, vector<8x192xf32> -> vector<8x192xf32>
    %756 = vector.broadcast %589 : vector<1x192xf32> to vector<8x192xf32>
    %757 = arith.addf %755, %756 : vector<8x192xf32>
    %758 = vector.extract_strided_slice %753 {offsets = [0, 0], sizes = [8, 128], strides = [1, 1]} : vector<8x192xf32> to vector<8x128xf32>
    %759 = vector.extract_strided_slice %757 {offsets = [0, 0], sizes = [8, 128], strides = [1, 1]} : vector<8x192xf32> to vector<8x128xf32>
    %760 = arith.addf %758, %759 : vector<8x128xf32>
    %cst_292 = arith.constant 5.000000e-01 : f32
    %761 = vector.broadcast %cst_292 : f32 to vector<8x128xf32>
    %762 = arith.mulf %761, %760 : vector<8x128xf32>
    %763 = math.tanh %762 : vector<8x128xf32>
    %cst_293 = arith.constant 5.000000e-01 : f32
    %764 = vector.broadcast %cst_293 : f32 to vector<8x128xf32>
    %765 = arith.mulf %764, %763 : vector<8x128xf32>
    %cst_294 = arith.constant 5.000000e-01 : f32
    %766 = vector.broadcast %cst_294 : f32 to vector<8x128xf32>
    %767 = arith.addf %765, %766 : vector<8x128xf32>
    %768 = vector.extract_strided_slice %753 {offsets = [0, 128], sizes = [8, 64], strides = [1, 1]} : vector<8x192xf32> to vector<8x64xf32>
    %769 = vector.extract_strided_slice %767 {offsets = [0, 0], sizes = [8, 64], strides = [1, 1]} : vector<8x128xf32> to vector<8x64xf32>
    %770 = vector.extract_strided_slice %757 {offsets = [0, 128], sizes = [8, 64], strides = [1, 1]} : vector<8x192xf32> to vector<8x64xf32>
    %771 = arith.mulf %769, %770 : vector<8x64xf32>
    %772 = arith.addf %768, %771 : vector<8x64xf32>
    %773 = math.tanh %772 : vector<8x64xf32>
    %774 = vector.extract_strided_slice %767 {offsets = [0, 64], sizes = [8, 64], strides = [1, 1]} : vector<8x128xf32> to vector<8x64xf32>
    %cst_295 = arith.constant 1.000000e+00 : f32
    %775 = vector.broadcast %cst_295 : f32 to vector<8x64xf32>
    %776 = arith.subf %775, %774 : vector<8x64xf32>
    %777 = arith.mulf %776, %773 : vector<8x64xf32>
    %778 = arith.mulf %774, %752 : vector<8x64xf32>
    %779 = arith.addf %777, %778 : vector<8x64xf32>
    %c56_296 = arith.constant 56 : index
    %c0_297 = arith.constant 0 : index
    %780 = vector.load %arg19[%c56_296, %c0_297] : memref<64x192xf32, #tpu.memory_space<vmem>>, vector<8x192xf32>
    %781 = arith.truncf %779 : vector<8x64xf32> to vector<8x64xbf16>
    %cst_298 = arith.constant dense<0.000000e+00> : vector<8x192xf32>
    %782 = tpu.matmul %781, %588, %cst_298 {dimension_numbers = #tpu.dot_dimension_numbers<[1], [0], [0], [1], [0, 0, 1, 1], [], []>} : vector<8x64xbf16>, vector<64x192xbf16>, vector<8x192xf32> -> vector<8x192xf32>
    %783 = vector.broadcast %589 : vector<1x192xf32> to vector<8x192xf32>
    %784 = arith.addf %782, %783 : vector<8x192xf32>
    %785 = vector.extract_strided_slice %780 {offsets = [0, 0], sizes = [8, 128], strides = [1, 1]} : vector<8x192xf32> to vector<8x128xf32>
    %786 = vector.extract_strided_slice %784 {offsets = [0, 0], sizes = [8, 128], strides = [1, 1]} : vector<8x192xf32> to vector<8x128xf32>
    %787 = arith.addf %785, %786 : vector<8x128xf32>
    %cst_299 = arith.constant 5.000000e-01 : f32
    %788 = vector.broadcast %cst_299 : f32 to vector<8x128xf32>
    %789 = arith.mulf %788, %787 : vector<8x128xf32>
    %790 = math.tanh %789 : vector<8x128xf32>
    %cst_300 = arith.constant 5.000000e-01 : f32
    %791 = vector.broadcast %cst_300 : f32 to vector<8x128xf32>
    %792 = arith.mulf %791, %790 : vector<8x128xf32>
    %cst_301 = arith.constant 5.000000e-01 : f32
    %793 = vector.broadcast %cst_301 : f32 to vector<8x128xf32>
    %794 = arith.addf %792, %793 : vector<8x128xf32>
    %795 = vector.extract_strided_slice %780 {offsets = [0, 128], sizes = [8, 64], strides = [1, 1]} : vector<8x192xf32> to vector<8x64xf32>
    %796 = vector.extract_strided_slice %794 {offsets = [0, 0], sizes = [8, 64], strides = [1, 1]} : vector<8x128xf32> to vector<8x64xf32>
    %797 = vector.extract_strided_slice %784 {offsets = [0, 128], sizes = [8, 64], strides = [1, 1]} : vector<8x192xf32> to vector<8x64xf32>
    %798 = arith.mulf %796, %797 : vector<8x64xf32>
    %799 = arith.addf %795, %798 : vector<8x64xf32>
    %800 = math.tanh %799 : vector<8x64xf32>
    %801 = vector.extract_strided_slice %794 {offsets = [0, 64], sizes = [8, 64], strides = [1, 1]} : vector<8x128xf32> to vector<8x64xf32>
    %cst_302 = arith.constant 1.000000e+00 : f32
    %802 = vector.broadcast %cst_302 : f32 to vector<8x64xf32>
    %803 = arith.subf %802, %801 : vector<8x64xf32>
    %804 = arith.mulf %803, %800 : vector<8x64xf32>
    %805 = arith.mulf %801, %779 : vector<8x64xf32>
    %806 = arith.addf %804, %805 : vector<8x64xf32>
    %807 = arith.truncf %806 : vector<8x64xf32> to vector<8x64xbf16>
    %c0_303 = arith.constant 0 : index
    %c0_304 = arith.constant 0 : index
    %808 = vector.load %arg13[%c0_303, %c0_304] : memref<64x10xbf16, #tpu.memory_space<vmem>>, vector<64x10xbf16>
    %cst_305 = arith.constant dense<0.000000e+00> : vector<8x10xf32>
    %809 = tpu.matmul %807, %808, %cst_305 {dimension_numbers = #tpu.dot_dimension_numbers<[1], [0], [0], [1], [0, 0, 1, 1], [], []>} : vector<8x64xbf16>, vector<64x10xbf16>, vector<8x10xf32> -> vector<8x10xf32>
    %c0_306 = arith.constant 0 : index
    %c0_307 = arith.constant 0 : index
    %810 = vector.load %arg14[%c0_306, %c0_307] : memref<1x10xf32, #tpu.memory_space<vmem>>, vector<1x10xf32>
    %811 = vector.broadcast %810 : vector<1x10xf32> to vector<8x10xf32>
    %812 = arith.addf %809, %811 : vector<8x10xf32>
    %813 = vector.extract_strided_slice %812 {offsets = [0, 0], sizes = [2, 10], strides = [1, 1]} : vector<8x10xf32> to vector<2x10xf32>
    %c0_308 = arith.constant 0 : index
    %c0_309 = arith.constant 0 : index
    %814 = vector.load %arg15[%c0_308, %c0_309] : memref<2x10xf32, #tpu.memory_space<vmem>>, vector<2x10xf32>
    tpu.vector_store %arg15[%c0_308, %c0_309], %813 {strides = array<i32>} : memref<2x10xf32, #tpu.memory_space<vmem>>, vector<2x10xf32>,
    return
  }
}

</mosaic_0001>

<llo_original>
// kernel: tpu_custom_call.1
$region0: #{tpu_custom_call.1}
  #allocation0 [shape = 'u32[]', space=smem, size = 0x4, offset = 0x4, fixed_abs, tag = 'smem constant byte address 0x4 - core index']
  #allocation1 [shape = 'u32[144,128]{1,0:T(1,128)}', space=vmem, size = 0x12000, scoped, tag = 'internal scratch']
  #allocation2 [shape = 'f32[128,192]{1,0:T(8,128)}', space=vmem, size = 0x20000, scoped, tag = 'scratch operand']
  #allocation3 [shape = 'f32[144,64]{1,0:T(8,128)}', space=vmem, size = 0x12000, scoped, tag = 'scratch operand']
  #allocation4 [shape = 'f32[64,32]{1,0:T(8,128)}', space=vmem, size = 0x8000, scoped, tag = 'scratch operand']
  #allocation5 [shape = 'f32[64,192]{1,0:T(8,128)}', space=vmem, size = 0x10000, scoped, tag = 'scratch operand']
  %s0 = inlined_call_operand.vmem [shape: bf16[128,16], index: 0, kind: input, shape index: {}]
  %s1 = inlined_call_operand.vmem [shape: bf16[16,192], index: 1, kind: input, shape index: {}]
  %s2 = inlined_call_operand.vmem [shape: f32[1,192], index: 2, kind: input, shape index: {}]
  %s3 = inlined_call_operand.vmem [shape: bf16[64,192], index: 3, kind: input, shape index: {}]
  %s4 = inlined_call_operand.vmem [shape: f32[1,192], index: 4, kind: input, shape index: {}]
  %s5 = inlined_call_operand.vmem [shape: bf16[3,64,16], index: 5, kind: input, shape index: {}]
  %s6 = inlined_call_operand.vmem [shape: f32[1,16], index: 6, kind: input, shape index: {}]
  %s7 = inlined_call_operand.vmem [shape: f32[1,16], index: 7, kind: input, shape index: {}]
  %s8 = inlined_call_operand.vmem [shape: f32[1,16], index: 8, kind: input, shape index: {}]
  %s9 = inlined_call_operand.vmem [shape: bf16[32,192], index: 9, kind: input, shape index: {}]
  %s10 = inlined_call_operand.vmem [shape: f32[1,192], index: 10, kind: input, shape index: {}]
  %s11 = inlined_call_operand.vmem [shape: bf16[64,192], index: 11, kind: input, shape index: {}]
  %s12 = inlined_call_operand.vmem [shape: f32[1,192], index: 12, kind: input, shape index: {}]
  %s13 = inlined_call_operand.vmem [shape: bf16[64,10], index: 13, kind: input, shape index: {}]
  %s14 = inlined_call_operand.vmem [shape: f32[1,10], index: 14, kind: input, shape index: {}]
  %s15 = inlined_call_operand.hbm [shape: f32[2,10], index: 15, kind: output, shape index: {}]
  %s16 = sld [smem:[#allocation0]]
  $region70: #{tpu_custom_call.1} parent=0
    _
  %s18 = ssub.s32 1, %s16
  %s19 = scalar_select 0, %s18, %s16
  $region1: #{tpu_custom_call.1} parent=0
    #allocation6 [shape = 'u8[1024]{0}', space=vmem, size = 0x400, scoped, tag = 'output window, operand 0, single buffered']
    #allocation7 [shape = 's32[1]{0}', space=sflag, size = 0x4, scoped, tag = 'scoped memory for tpu_custom_call.1']
    %20 = vsyncpa [#allocation7], 0
    // Predicated region
    $region2: #{tpu_custom_call.1} parent=1 // pred_check
      _
    $region3: #{tpu_custom_call.1} parent=1 // pred_check_branch
      %22 = sbr.rel (0) target = $region5
    $region4: #{tpu_custom_call.1} parent=1 // pred_region
      _
    $region5: #{tpu_custom_call.1} parent=1 // pred_fallthru
      _
    // Predicated region
    $region6: #{tpu_custom_call.1} parent=1 // pred_check
      _
    $region7: #{tpu_custom_call.1} parent=1 // pred_check_branch
      %24 = sbr.rel (0) target = $region9
    $region8: #{tpu_custom_call.1} parent=1 // pred_region
      _
    $region9: #{tpu_custom_call.1} parent=1 // pred_fallthru
      _
    // Predicated region
    $region10: #{tpu_custom_call.1} parent=1 // pred_check
      _
    $region11: #{tpu_custom_call.1} parent=1 // pred_check_branch
      %26 = sbr.rel (0) target = $region13
    $region12: #{tpu_custom_call.1} parent=1 // pred_region
      _
    $region13: #{tpu_custom_call.1} parent=1 // pred_fallthru
      _
    // Predicated region
    $region14: #{tpu_custom_call.1} parent=1 // pred_check
      _
    $region15: #{tpu_custom_call.1} parent=1 // pred_check_branch
      %28 = sbr.rel (0) target = $region17
    $region16: #{tpu_custom_call.1} parent=1 // pred_region
      _
    $region17: #{tpu_custom_call.1} parent=1 // pred_fallthru
      _
    // Predicated region
    $region18: #{tpu_custom_call.1} parent=1 // pred_check
      _
    $region19: #{tpu_custom_call.1} parent=1 // pred_check_branch
      %30 = sbr.rel (0) target = $region21
    $region20: #{tpu_custom_call.1} parent=1 // pred_region
      _
    $region21: #{tpu_custom_call.1} parent=1 // pred_fallthru
      _
    // Predicated region
    $region22: #{tpu_custom_call.1} parent=1 // pred_check
      _
    $region23: #{tpu_custom_call.1} parent=1 // pred_check_branch
      %32 = sbr.rel (0) target = $region25
    $region24: #{tpu_custom_call.1} parent=1 // pred_region
      _
    $region25: #{tpu_custom_call.1} parent=1 // pred_fallthru
      _
    // Predicated region
    $region26: #{tpu_custom_call.1} parent=1 // pred_check
      _
    $region27: #{tpu_custom_call.1} parent=1 // pred_check_branch
      %34 = sbr.rel (0) target = $region29
    $region28: #{tpu_custom_call.1} parent=1 // pred_region
      _
    $region29: #{tpu_custom_call.1} parent=1 // pred_fallthru
      _
    // Predicated region
    $region30: #{tpu_custom_call.1} parent=1 // pred_check
      _
    $region31: #{tpu_custom_call.1} parent=1 // pred_check_branch
      %36 = sbr.rel (0) target = $region33
    $region32: #{tpu_custom_call.1} parent=1 // pred_region
      _
    $region33: #{tpu_custom_call.1} parent=1 // pred_fallthru
      _
    // Predicated region
    $region34: #{tpu_custom_call.1} parent=1 // pred_check
      _
    $region35: #{tpu_custom_call.1} parent=1 // pred_check_branch
      %38 = sbr.rel (0) target = $region37
    $region36: #{tpu_custom_call.1} parent=1 // pred_region
      _
    $region37: #{tpu_custom_call.1} parent=1 // pred_fallthru
      _
    // Predicated region
    $region38: #{tpu_custom_call.1} parent=1 // pred_check
      _
    $region39: #{tpu_custom_call.1} parent=1 // pred_check_branch
      %40 = sbr.rel (0) target = $region41
    $region40: #{tpu_custom_call.1} parent=1 // pred_region
      _
    $region41: #{tpu_custom_call.1} parent=1 // pred_fallthru
      _
    // Predicated region
    $region42: #{tpu_custom_call.1} parent=1 // pred_check
      _
    $region43: #{tpu_custom_call.1} parent=1 // pred_check_branch
      %42 = sbr.rel (0) target = $region45
    $region44: #{tpu_custom_call.1} parent=1 // pred_region
      _
    $region45: #{tpu_custom_call.1} parent=1 // pred_fallthru
      _
    // Predicated region
    $region46: #{tpu_custom_call.1} parent=1 // pred_check
      _
    $region47: #{tpu_custom_call.1} parent=1 // pred_check_branch
      %44 = sbr.rel (0) target = $region49
    $region48: #{tpu_custom_call.1} parent=1 // pred_region
      _
    $region49: #{tpu_custom_call.1} parent=1 // pred_fallthru
      _
    // Predicated region
    $region50: #{tpu_custom_call.1} parent=1 // pred_check
      _
    $region51: #{tpu_custom_call.1} parent=1 // pred_check_branch
      %46 = sbr.rel (0) target = $region53
    $region52: #{tpu_custom_call.1} parent=1 // pred_region
      _
    $region53: #{tpu_custom_call.1} parent=1 // pred_fallthru
      _
    // Predicated region
    $region54: #{tpu_custom_call.1} parent=1 // pred_check
      _
    $region55: #{tpu_custom_call.1} parent=1 // pred_check_branch
      %48 = sbr.rel (0) target = $region57
    $region56: #{tpu_custom_call.1} parent=1 // pred_region
      _
    $region57: #{tpu_custom_call.1} parent=1 // pred_fallthru
      _
    // Predicated region
    $region58: #{tpu_custom_call.1} parent=1 // pred_check
      _
    $region59: #{tpu_custom_call.1} parent=1 // pred_check_branch
      %50 = sbr.rel (0) target = $region61
    $region60: #{tpu_custom_call.1} parent=1 // pred_region
      _
    $region61: #{tpu_custom_call.1} parent=1 // pred_fallthru
      _
    %v52 = vld [vmem:[%s0] sm:$0xf]
    %v53 = vld [vmem:[%s0 + $0x4] sm:$0xf]
    %v54 = vld [vmem:[%s0 + $0x8] sm:$0xf]
    %v55 = vld [vmem:[%s0 + $0xc] sm:$0xf]
    %v56 = vld [vmem:[%s0 + $0x10] sm:$0xf]
    %v57 = vld [vmem:[%s0 + $0x14] sm:$0xf]
    %v58 = vld [vmem:[%s0 + $0x18] sm:$0xf]
    %v59 = vld [vmem:[%s0 + $0x1c] sm:$0xf]
    %v60 = vld [vmem:[%s0 + $0x20] sm:$0xf]
    %v61 = vld [vmem:[%s0 + $0x24] sm:$0xf]
    %v62 = vld [vmem:[%s0 + $0x28] sm:$0xf]
    %v63 = vld [vmem:[%s0 + $0x2c] sm:$0xf]
    %v64 = vld [vmem:[%s0 + $0x30] sm:$0xf]
    %v65 = vld [vmem:[%s0 + $0x34] sm:$0xf]
    %v66 = vld [vmem:[%s0 + $0x38] sm:$0xf]
    %v67 = vld [vmem:[%s0 + $0x3c] sm:$0xf]
    %v68 = vld [vmem:[%s1] sm:$0xff]
    %v69 = vld [vmem:[%s1 + $0x8] sm:$0xff]
    %v70 = vld [vmem:[%s2] sm:$0x3]
    %v72 = vlaneseq
    %v73 = vshrl.u32 %v72, 7
    %v74 = vsub.s32 0, %v73
    %v75 = vrot.slane %v70, %v74
    %v76 = vlaneseq
    %v77 = vshrl.u32 %v76, 7
    %v78 = vsub.s32 1, %v77
    %v79 = vrot.slane %v70, %v78
    %v98 = vunpack.c.l.b16 %v52
    %v99 = vunpack.c.l.b16 %v53
    %v100 = vunpack.c.l.b16 %v54
    %v101 = vunpack.c.l.b16 %v55
    %v102 = vunpack.c.l.b16 %v56
    %v103 = vunpack.c.l.b16 %v57
    %v104 = vunpack.c.l.b16 %v58
    %v105 = vunpack.c.l.b16 %v59
    %v106 = vunpack.c.l.b16 %v60
    %v107 = vunpack.c.l.b16 %v61
    %v108 = vunpack.c.l.b16 %v62
    %v109 = vunpack.c.l.b16 %v63
    %v110 = vunpack.c.l.b16 %v64
    %v111 = vunpack.c.l.b16 %v65
    %v112 = vunpack.c.l.b16 %v66
    %v113 = vunpack.c.l.b16 %v67
    %v114 = vpack.c.b16 %v99, %v98
    %v115 = vpack.c.b16 %v101, %v100
    %v116 = vpack.c.b16 %v103, %v102
    %v117 = vpack.c.b16 %v105, %v104
    %v118 = vpack.c.b16 %v107, %v106
    %v119 = vpack.c.b16 %v109, %v108
    %v120 = vpack.c.b16 %v111, %v110
    %v121 = vpack.c.b16 %v113, %v112
    %v124 = vunpack.c.l.b16 %v68
    %v125 = vunpack.c.h.b16 %v68
    %v126 = vunpack.c.l.b16 %v69
    %v127 = vunpack.c.h.b16 %v69
    %v128 = vpack.c.b16 %v126, %v124
    %v129 = vpack.c.b16 %v127, %v125
    %vm132 = vcmask 130048
    %v134 = vsel %vm132, %v114, 0
    %v137 = vsel %vm132, %v115, 0
    %v140 = vsel %vm132, %v116, 0
    %v143 = vsel %vm132, %v117, 0
    %v146 = vsel %vm132, %v118, 0
    %v149 = vsel %vm132, %v119, 0
    %v152 = vsel %vm132, %v120, 0
    %v155 = vsel %vm132, %v121, 0
    %157 = vmatprep.subr.bf16.mxu0 %v129
    %158 = vmatpush1.bf16.msra.mxu0 %v128
    %159 = vmatprep.subr.bf16.mxu0 0
    %160 = vmatpush1.bf16.msra.mxu0 0
    %161 = vmatprep.subr.bf16.mxu0 0
    %162 = vmatpush1.bf16.msra.mxu0 0
    %163 = vmatprep.subr.bf16.mxu0 0
    %164 = vmatpush1.bf16.msra.mxu0 0
    %165 = vmatprep.subr.bf16.mxu0 0
    %166 = vmatpush1.bf16.msra.mxu0 0
    %167 = vmatprep.subr.bf16.mxu0 0
    %168 = vmatpush1.bf16.msra.mxu0 0
    %169 = vmatprep.subr.bf16.mxu0 0
    %170 = vmatpush1.bf16.msra.mxu0 0
    %171 = vmatprep.subr.bf16.mxu0 0
    %172 = vmatpush1.bf16.msra.mxu0 0
    %173 = vmatprep.subr.bf16.mxu0 0
    %174 = vmatpush1.bf16.msra.mxu0 0
    %175 = vmatprep.subr.bf16.mxu0 0
    %176 = vmatpush1.bf16.msra.mxu0 0
    %177 = vmatprep.subr.bf16.mxu0 0
    %178 = vmatpush1.bf16.msra.mxu0 0
    %179 = vmatprep.subr.bf16.mxu0 0
    %180 = vmatpush1.bf16.msra.mxu0 0
    %181 = vmatprep.subr.bf16.mxu0 0
    %182 = vmatpush1.bf16.msra.mxu0 0
    %183 = vmatprep.subr.bf16.mxu0 0
    %184 = vmatpush1.bf16.msra.mxu0 0
    %185 = vmatprep.subr.bf16.mxu0 0
    %186 = vmatpush1.bf16.msra.mxu0 0
    %187 = vmatprep.subr.bf16.mxu0 0
    %188 = vmatpush1.bf16.msra.mxu0 0
    %189 = vmatprep.mubr.bf16.mxu0 0
    %190 = vmatmul.mubr.bf16.gmra.mrb[0].mxu0 %v134
    %v191 = vpop.f32.mrb[0].mxu0
    %v192 = vadd.f32 %v75, %v191
    %v193 = vpop.f32.mrb[0].mxu0
    %v194 = vadd.f32 %v79, %v193
    %v195 = vpop.f32.mrb[0].mxu0
    %v196 = vadd.f32 %v75, %v195
    %v197 = vpop.f32.mrb[0].mxu0
    %v198 = vadd.f32 %v79, %v197
    %199 = vmatprep.mubr.bf16.mxu0 0
    %200 = vmatmul.mubr.bf16.gmra.mrb[0].mxu0 %v137
    %v201 = vpop.f32.mrb[0].mxu0
    %v202 = vadd.f32 %v75, %v201
    %v203 = vpop.f32.mrb[0].mxu0
    %v204 = vadd.f32 %v79, %v203
    %v205 = vpop.f32.mrb[0].mxu0
    %v206 = vadd.f32 %v75, %v205
    %v207 = vpop.f32.mrb[0].mxu0
    %v208 = vadd.f32 %v79, %v207
    %209 = vmatprep.mubr.bf16.mxu0 0
    %210 = vmatmul.mubr.bf16.gmra.mrb[0].mxu0 %v140
    %v211 = vpop.f32.mrb[0].mxu0
    %v212 = vadd.f32 %v75, %v211
    %v213 = vpop.f32.mrb[0].mxu0
    %v214 = vadd.f32 %v79, %v213
    %v215 = vpop.f32.mrb[0].mxu0
    %v216 = vadd.f32 %v75, %v215
    %v217 = vpop.f32.mrb[0].mxu0
    %v218 = vadd.f32 %v79, %v217
    %219 = vmatprep.mubr.bf16.mxu0 0
    %220 = vmatmul.mubr.bf16.gmra.mrb[0].mxu0 %v143
    %v221 = vpop.f32.mrb[0].mxu0
    %v222 = vadd.f32 %v75, %v221
    %v223 = vpop.f32.mrb[0].mxu0
    %v224 = vadd.f32 %v79, %v223
    %v225 = vpop.f32.mrb[0].mxu0
    %v226 = vadd.f32 %v75, %v225
    %v227 = vpop.f32.mrb[0].mxu0
    %v228 = vadd.f32 %v79, %v227
    %229 = vmatprep.mubr.bf16.mxu0 0
    %230 = vmatmul.mubr.bf16.gmra.mrb[0].mxu0 %v146
    %v231 = vpop.f32.mrb[0].mxu0
    %v232 = vadd.f32 %v75, %v231
    %v233 = vpop.f32.mrb[0].mxu0
    %v234 = vadd.f32 %v79, %v233
    %v235 = vpop.f32.mrb[0].mxu0
    %v236 = vadd.f32 %v75, %v235
    %v237 = vpop.f32.mrb[0].mxu0
    %v238 = vadd.f32 %v79, %v237
    %239 = vmatprep.mubr.bf16.mxu0 0
    %240 = vmatmul.mubr.bf16.gmra.mrb[0].mxu0 %v149
    %v241 = vpop.f32.mrb[0].mxu0
    %v242 = vadd.f32 %v75, %v241
    %v243 = vpop.f32.mrb[0].mxu0
    %v244 = vadd.f32 %v79, %v243
    %v245 = vpop.f32.mrb[0].mxu0
    %v246 = vadd.f32 %v75, %v245
    %v247 = vpop.f32.mrb[0].mxu0
    %v248 = vadd.f32 %v79, %v247
    %249 = vmatprep.mubr.bf16.mxu0 0
    %250 = vmatmul.mubr.bf16.gmra.mrb[0].mxu0 %v152
    %v251 = vpop.f32.mrb[0].mxu0
    %v252 = vadd.f32 %v75, %v251
    %v253 = vpop.f32.mrb[0].mxu0
    %v254 = vadd.f32 %v79, %v253
    %v255 = vpop.f32.mrb[0].mxu0
    %v256 = vadd.f32 %v75, %v255
    %v257 = vpop.f32.mrb[0].mxu0
    %v258 = vadd.f32 %v79, %v257
    %259 = vmatprep.mubr.bf16.mxu0 0
    %260 = vmatmul.mubr.bf16.gmra.mrb[0].mxu0 %v155
    %v261 = vpop.f32.mrb[0].mxu0
    %v262 = vadd.f32 %v75, %v261
    %v263 = vpop.f32.mrb[0].mxu0
    %v264 = vadd.f32 %v79, %v263
    %v265 = vpop.f32.mrb[0].mxu0
    %v266 = vadd.f32 %v75, %v265
    %v267 = vpop.f32.mrb[0].mxu0
    %v268 = vadd.f32 %v79, %v267
    %269 = vdwg.mxu0
    %270 = vst [vmem:[#allocation2] sm:$0xff] %v192
    %vm271 = vcmask 523264
    %272 = vst.msk [vmem:[#allocation2 + $0x8] sm:$0xff] %vm271, %v194
    %273 = vst [vmem:[#allocation2 + $0x10] sm:$0xff] %v196
    %274 = vst.msk [vmem:[#allocation2 + $0x18] sm:$0xff] %vm271, %v198
    %275 = vst [vmem:[#allocation2 + $0x20] sm:$0xff] %v202
    %276 = vst.msk [vmem:[#allocation2 + $0x28] sm:$0xff] %vm271, %v204
    %277 = vst [vmem:[#allocation2 + $0x30] sm:$0xff] %v206
    %278 = vst.msk [vmem:[#allocation2 + $0x38] sm:$0xff] %vm271, %v208
    %279 = vst [vmem:[#allocation2 + $0x40] sm:$0xff] %v212
    %280 = vst.msk [vmem:[#allocation2 + $0x48] sm:$0xff] %vm271, %v214
    %281 = vst [vmem:[#allocation2 + $0x50] sm:$0xff] %v216
    %282 = vst.msk [vmem:[#allocation2 + $0x58] sm:$0xff] %vm271, %v218
    %283 = vst [vmem:[#allocation2 + $0x60] sm:$0xff] %v222
    %284 = vst.msk [vmem:[#allocation2 + $0x68] sm:$0xff] %vm271, %v224
    %285 = vst [vmem:[#allocation2 + $0x70] sm:$0xff] %v226
    %286 = vst.msk [vmem:[#allocation2 + $0x78] sm:$0xff] %vm271, %v228
    %287 = vst [vmem:[#allocation2 + $0x80] sm:$0xff] %v232
    %288 = vst.msk [vmem:[#allocation2 + $0x88] sm:$0xff] %vm271, %v234
    %289 = vst [vmem:[#allocation2 + $0x90] sm:$0xff] %v236
    %290 = vst.msk [vmem:[#allocation2 + $0x98] sm:$0xff] %vm271, %v238
    %291 = vst [vmem:[#allocation2 + $0xa0] sm:$0xff] %v242
    %292 = vst.msk [vmem:[#allocation2 + $0xa8] sm:$0xff] %vm271, %v244
    %293 = vst [vmem:[#allocation2 + $0xb0] sm:$0xff] %v246
    %294 = vst.msk [vmem:[#allocation2 + $0xb8] sm:$0xff] %vm271, %v248
    %295 = vst [vmem:[#allocation2 + $0xc0] sm:$0xff] %v252
    %296 = vst.msk [vmem:[#allocation2 + $0xc8] sm:$0xff] %vm271, %v254
    %297 = vst [vmem:[#allocation2 + $0xd0] sm:$0xff] %v256
    %298 = vst.msk [vmem:[#allocation2 + $0xd8] sm:$0xff] %vm271, %v258
    %299 = vst [vmem:[#allocation2 + $0xe0] sm:$0xff] %v262
    %300 = vst.msk [vmem:[#allocation2 + $0xe8] sm:$0xff] %vm271, %v264
    %301 = vst [vmem:[#allocation2 + $0xf0] sm:$0xff] %v266
    %302 = vst.msk [vmem:[#allocation2 + $0xf8] sm:$0xff] %vm271, %v268
    %303 = vst.msk [vmem:[#allocation3] sm:$0xff] %vm271, 0.0
    %304 = vst.msk [vmem:[#allocation3 + $0x88] sm:$0xff] %vm271, 0.0
    %v305 = vld [vmem:[%s3] sm:$0xff]
    %v306 = vld [vmem:[%s3 + $0x8] sm:$0xff]
    %v307 = vld [vmem:[%s3 + $0x10] sm:$0xff]
    %v308 = vld [vmem:[%s3 + $0x18] sm:$0xff]
    %v309 = vld [vmem:[%s3 + $0x20] sm:$0xff]
    %v310 = vld [vmem:[%s3 + $0x28] sm:$0xff]
    %v311 = vld [vmem:[%s3 + $0x30] sm:$0xff]
    %v312 = vld [vmem:[%s3 + $0x38] sm:$0xff]
    %v313 = vld [vmem:[%s4] sm:$0x3]
    %v314 = vld [vmem:[#allocation2] sm:$0xff]
    %v315 = vld [vmem:[#allocation2 + $0x8] sm:$0xff]
    %v317 = vlaneseq
    %v318 = vshrl.u32 %v317, 7
    %v319 = vsub.s32 0, %v318
    %v320 = vrot.slane %v313, %v319
    %v321 = vlaneseq
    %v322 = vshrl.u32 %v321, 7
    %v323 = vsub.s32 1, %v322
    %v324 = vrot.slane %v313, %v323
    %v335 = vunpack.c.l.b16 %v305
    %v336 = vunpack.c.h.b16 %v305
    %v337 = vunpack.c.l.b16 %v306
    %v338 = vunpack.c.h.b16 %v306
    %v339 = vunpack.c.l.b16 %v307
    %v340 = vunpack.c.h.b16 %v307
    %v341 = vunpack.c.l.b16 %v308
    %v342 = vunpack.c.h.b16 %v308
    %v343 = vunpack.c.l.b16 %v309
    %v344 = vunpack.c.h.b16 %v309
    %v345 = vunpack.c.l.b16 %v310
    %v346 = vunpack.c.h.b16 %v310
    %v347 = vunpack.c.l.b16 %v311
    %v348 = vunpack.c.h.b16 %v311
    %v349 = vunpack.c.l.b16 %v312
    %v350 = vunpack.c.h.b16 %v312
    %v351 = vpack.c.b16 %v337, %v335
    %v352 = vpack.c.b16 %v338, %v336
    %v353 = vpack.c.b16 %v341, %v339
    %v354 = vpack.c.b16 %v342, %v340
    %v355 = vpack.c.b16 %v345, %v343
    %v356 = vpack.c.b16 %v346, %v344
    %v357 = vpack.c.b16 %v349, %v347
    %v358 = vpack.c.b16 %v350, %v348
    %v368 = vsel %vm271, 0, 0
    %370 = vmatprep.subr.bf16.mxu0 %v352
    %371 = vmatpush1.bf16.msra.mxu0 %v351
    %372 = vmatprep.subr.bf16.mxu0 %v354
    %373 = vmatpush1.bf16.msra.mxu0 %v353
    %374 = vmatprep.subr.bf16.mxu0 %v356
    %375 = vmatpush1.bf16.msra.mxu0 %v355
    %376 = vmatprep.subr.bf16.mxu0 %v358
    %377 = vmatpush1.bf16.msra.mxu0 %v357
    %378 = vmatprep.subr.bf16.mxu0 0
    %379 = vmatpush1.bf16.msra.mxu0 0
    %380 = vmatprep.subr.bf16.mxu0 0
    %381 = vmatpush1.bf16.msra.mxu0 0
    %382 = vmatprep.subr.bf16.mxu0 0
    %383 = vmatpush1.bf16.msra.mxu0 0
    %384 = vmatprep.subr.bf16.mxu0 0
    %385 = vmatpush1.bf16.msra.mxu0 0
    %386 = vmatprep.subr.bf16.mxu0 0
    %387 = vmatpush1.bf16.msra.mxu0 0
    %388 = vmatprep.subr.bf16.mxu0 0
    %389 = vmatpush1.bf16.msra.mxu0 0
    %390 = vmatprep.subr.bf16.mxu0 0
    %391 = vmatpush1.bf16.msra.mxu0 0
    %392 = vmatprep.subr.bf16.mxu0 0
    %393 = vmatpush1.bf16.msra.mxu0 0
    %394 = vmatprep.subr.bf16.mxu0 0
    %395 = vmatpush1.bf16.msra.mxu0 0
    %396 = vmatprep.subr.bf16.mxu0 0
    %397 = vmatpush1.bf16.msra.mxu0 0
    %398 = vmatprep.subr.bf16.mxu0 0
    %399 = vmatpush1.bf16.msra.mxu0 0
    %400 = vmatprep.subr.bf16.mxu0 0
    %401 = vmatpush1.bf16.msra.mxu0 0
    %402 = vmatprep.mubr.bf16.mxu0 0
    %403 = vmatmul.mubr.bf16.gmra.mrb[0].mxu0 %v368
    %v404 = vpop.f32.mrb[0].mxu0
    %v405 = vadd.f32 %v320, %v404
    %v406 = vpop.f32.mrb[0].mxu0
    %v407 = vadd.f32 %v324, %v406
    %v408 = vpop.f32.mrb[0].mxu0
    %v409 = vpop.f32.mrb[0].mxu0
    %410 = vdwg.mxu0
    %v411 = vadd.f32 %v314, %v405
    %v412 = vmul.f32 %v411, 0.5
    %v413 = vtanh.pop %v412
    %v414 = vmul.f32 %v413, 0.5
    %v415 = vadd.f32 %v414, 0.5
    %v416 = vmul.f32 %v415, %v407
    %v417 = vadd.f32 %v315, %v416
    %v418 = vtanh.pop %v417
    %v419 = vsub.f32 1.0, %v415
    %421 = vrot.lane.b32.xlu0 %v418, 64
    %v422 = vpop.permute.xlu0 %421
    %v424 = vmul.f32 %v419, %v422
    %v425 = vmul.f32 %v415, 0.0
    %v426 = vadd.f32 %v424, %v425
    %428 = vrot.lane.b32.xlu0 %v426, 64
    %v429 = vpop.permute.xlu0 %428
    %vm431 = vcmask 261120
    %432 = vst.msk [vmem:[#allocation3 + $0x8] sm:$0xff] %vm431, %v429
    %vm433 = vcmask 523520
    %434 = vst.msk [vmem:[#allocation3 + $0x80] sm:$0xff] %vm433, %v429
    %v435 = vld [vmem:[#allocation2 + $0x10] sm:$0xff]
    %v436 = vld [vmem:[#allocation2 + $0x18] sm:$0xff]
    %v437 = vpack.c.bf16 %v426, %v426
    %439 = vrot.lane.b32.xlu0 %v437, 64
    %v440 = vpop.permute.xlu0 %439
    %v442 = vsel %vm271, %v440, 0
    %444 = vmatprep.subr.bf16.mxu0 %v352
    %445 = vmatpush1.bf16.msra.mxu0 %v351
    %446 = vmatprep.subr.bf16.mxu0 %v354
    %447 = vmatpush1.bf16.msra.mxu0 %v353
    %448 = vmatprep.subr.bf16.mxu0 %v356
    %449 = vmatpush1.bf16.msra.mxu0 %v355
    %450 = vmatprep.subr.bf16.mxu0 %v358
    %451 = vmatpush1.bf16.msra.mxu0 %v357
    %452 = vmatprep.subr.bf16.mxu0 0
    %453 = vmatpush1.bf16.msra.mxu0 0
    %454 = vmatprep.subr.bf16.mxu0 0
    %455 = vmatpush1.bf16.msra.mxu0 0
    %456 = vmatprep.subr.bf16.mxu0 0
    %457 = vmatpush1.bf16.msra.mxu0 0
    %458 = vmatprep.subr.bf16.mxu0 0
    %459 = vmatpush1.bf16.msra.mxu0 0
    %460 = vmatprep.subr.bf16.mxu0 0
    %461 = vmatpush1.bf16.msra.mxu0 0
    %462 = vmatprep.subr.bf16.mxu0 0
    %463 = vmatpush1.bf16.msra.mxu0 0
    %464 = vmatprep.subr.bf16.mxu0 0
    %465 = vmatpush1.bf16.msra.mxu0 0
    %466 = vmatprep.subr.bf16.mxu0 0
    %467 = vmatpush1.bf16.msra.mxu0 0
    %468 = vmatprep.subr.bf16.mxu0 0
    %469 = vmatpush1.bf16.msra.mxu0 0
    %470 = vmatprep.subr.bf16.mxu0 0
    %471 = vmatpush1.bf16.msra.mxu0 0
    %472 = vmatprep.subr.bf16.mxu0 0
    %473 = vmatpush1.bf16.msra.mxu0 0
    %474 = vmatprep.subr.bf16.mxu0 0
    %475 = vmatpush1.bf16.msra.mxu0 0
    %476 = vmatprep.mubr.bf16.mxu0 0
    %477 = vmatmul.mubr.bf16.gmra.mrb[0].mxu0 %v442
    %v478 = vpop.f32.mrb[0].mxu0
    %v479 = vadd.f32 %v320, %v478
    %v480 = vpop.f32.mrb[0].mxu0
    %v481 = vadd.f32 %v324, %v480
    %v482 = vpop.f32.mrb[0].mxu0
    %v483 = vpop.f32.mrb[0].mxu0
    %484 = vdwg.mxu0
    %v485 = vadd.f32 %v435, %v479
    %v486 = vmul.f32 %v485, 0.5
    %v487 = vtanh.pop %v486
    %v488 = vmul.f32 %v487, 0.5
    %v489 = vadd.f32 %v488, 0.5
    %v490 = vmul.f32 %v489, %v481
    %v491 = vadd.f32 %v436, %v490
    %v492 = vtanh.pop %v491
    %v493 = vsub.f32 1.0, %v489
    %495 = vrot.lane.b32.xlu0 %v492, 64
    %v496 = vpop.permute.xlu0 %495
    %v498 = vmul.f32 %v493, %v496
    %v499 = vmul.f32 %v489, %v426
    %v500 = vadd.f32 %v498, %v499
    %502 = vrot.lane.b32.xlu0 %v500, 64
    %v503 = vpop.permute.xlu0 %502
    %505 = vst.msk [vmem:[#allocation3 + $0x10] sm:$0xff] %vm431, %v503
    %506 = vst.msk [vmem:[#allocation3 + $0x78] sm:$0xff] %vm433, %v503
    %v507 = vld [vmem:[#allocation2 + $0x20] sm:$0xff]
    %v508 = vld [vmem:[#allocation2 + $0x28] sm:$0xff]
    %v509 = vpack.c.bf16 %v500, %v500
    %511 = vrot.lane.b32.xlu0 %v509, 64
    %v512 = vpop.permute.xlu0 %511
    %v514 = vsel %vm271, %v512, 0
    %516 = vmatprep.subr.bf16.mxu0 %v352
    %517 = vmatpush1.bf16.msra.mxu0 %v351
    %518 = vmatprep.subr.bf16.mxu0 %v354
    %519 = vmatpush1.bf16.msra.mxu0 %v353
    %520 = vmatprep.subr.bf16.mxu0 %v356
    %521 = vmatpush1.bf16.msra.mxu0 %v355
    %522 = vmatprep.subr.bf16.mxu0 %v358
    %523 = vmatpush1.bf16.msra.mxu0 %v357
    %524 = vmatprep.subr.bf16.mxu0 0
    %525 = vmatpush1.bf16.msra.mxu0 0
    %526 = vmatprep.subr.bf16.mxu0 0
    %527 = vmatpush1.bf16.msra.mxu0 0
    %528 = vmatprep.subr.bf16.mxu0 0
    %529 = vmatpush1.bf16.msra.mxu0 0
    %530 = vmatprep.subr.bf16.mxu0 0
    %531 = vmatpush1.bf16.msra.mxu0 0
    %532 = vmatprep.subr.bf16.mxu0 0
    %533 = vmatpush1.bf16.msra.mxu0 0
    %534 = vmatprep.subr.bf16.mxu0 0
    %535 = vmatpush1.bf16.msra.mxu0 0
    %536 = vmatprep.subr.bf16.mxu0 0
    %537 = vmatpush1.bf16.msra.mxu0 0
    %538 = vmatprep.subr.bf16.mxu0 0
    %539 = vmatpush1.bf16.msra.mxu0 0
    %540 = vmatprep.subr.bf16.mxu0 0
    %541 = vmatpush1.bf16.msra.mxu0 0
    %542 = vmatprep.subr.bf16.mxu0 0
    %543 = vmatpush1.bf16.msra.mxu0 0
    %544 = vmatprep.subr.bf16.mxu0 0
    %545 = vmatpush1.bf16.msra.mxu0 0
    %546 = vmatprep.subr.bf16.mxu0 0
    %547 = vmatpush1.bf16.msra.mxu0 0
    %548 = vmatprep.mubr.bf16.mxu0 0
    %549 = vmatmul.mubr.bf16.gmra.mrb[0].mxu0 %v514
    %v550 = vpop.f32.mrb[0].mxu0
    %v551 = vadd.f32 %v320, %v550
    %v552 = vpop.f32.mrb[0].mxu0
    %v553 = vadd.f32 %v324, %v552
    %v554 = vpop.f32.mrb[0].mxu0
    %v555 = vpop.f32.mrb[0].mxu0
    %556 = vdwg.mxu0
    %v557 = vadd.f32 %v507, %v551
    %v558 = vmul.f32 %v557, 0.5
    %v559 = vtanh.pop %v558
    %v560 = vmul.f32 %v559, 0.5
    %v561 = vadd.f32 %v560, 0.5
    %v562 = vmul.f32 %v561, %v553
    %v563 = vadd.f32 %v508, %v562
    %v564 = vtanh.pop %v563
    %v565 = vsub.f32 1.0, %v561
    %567 = vrot.lane.b32.xlu0 %v564, 64
    %v568 = vpop.permute.xlu0 %567
    %v570 = vmul.f32 %v565, %v568
    %v571 = vmul.f32 %v561, %v500
    %v572 = vadd.f32 %v570, %v571
    %574 = vrot.lane.b32.xlu0 %v572, 64
    %v575 = vpop.permute.xlu0 %574
    %577 = vst.msk [vmem:[#allocation3 + $0x18] sm:$0xff] %vm431, %v575
    %578 = vst.msk [vmem:[#allocation3 + $0x70] sm:$0xff] %vm433, %v575
    %v579 = vld [vmem:[#allocation2 + $0x30] sm:$0xff]
    %v580 = vld [vmem:[#allocation2 + $0x38] sm:$0xff]
    %v581 = vpack.c.bf16 %v572, %v572
    %583 = vrot.lane.b32.xlu0 %v581, 64
    %v584 = vpop.permute.xlu0 %583
    %v586 = vsel %vm271, %v584, 0
    %588 = vmatprep.subr.bf16.mxu0 %v352
    %589 = vmatpush1.bf16.msra.mxu0 %v351
    %590 = vmatprep.subr.bf16.mxu0 %v354
    %591 = vmatpush1.bf16.msra.mxu0 %v353
    %592 = vmatprep.subr.bf16.mxu0 %v356
    %593 = vmatpush1.bf16.msra.mxu0 %v355
    %594 = vmatprep.subr.bf16.mxu0 %v358
    %595 = vmatpush1.bf16.msra.mxu0 %v357
    %596 = vmatprep.subr.bf16.mxu0 0
    %597 = vmatpush1.bf16.msra.mxu0 0
    %598 = vmatprep.subr.bf16.mxu0 0
    %599 = vmatpush1.bf16.msra.mxu0 0
    %600 = vmatprep.subr.bf16.mxu0 0
    %601 = vmatpush1.bf16.msra.mxu0 0
    %602 = vmatprep.subr.bf16.mxu0 0
    %603 = vmatpush1.bf16.msra.mxu0 0
    %604 = vmatprep.subr.bf16.mxu0 0
    %605 = vmatpush1.bf16.msra.mxu0 0
    %606 = vmatprep.subr.bf16.mxu0 0
    %607 = vmatpush1.bf16.msra.mxu0 0
    %608 = vmatprep.subr.bf16.mxu0 0
    %609 = vmatpush1.bf16.msra.mxu0 0
    %610 = vmatprep.subr.bf16.mxu0 0
    %611 = vmatpush1.bf16.msra.mxu0 0
    %612 = vmatprep.subr.bf16.mxu0 0
    %613 = vmatpush1.bf16.msra.mxu0 0
    %614 = vmatprep.subr.bf16.mxu0 0
    %615 = vmatpush1.bf16.msra.mxu0 0
    %616 = vmatprep.subr.bf16.mxu0 0
    %617 = vmatpush1.bf16.msra.mxu0 0
    %618 = vmatprep.subr.bf16.mxu0 0
    %619 = vmatpush1.bf16.msra.mxu0 0
    %620 = vmatprep.mubr.bf16.mxu0 0
    %621 = vmatmul.mubr.bf16.gmra.mrb[0].mxu0 %v586
    %v622 = vpop.f32.mrb[0].mxu0
    %v623 = vadd.f32 %v320, %v622
    %v624 = vpop.f32.mrb[0].mxu0
    %v625 = vadd.f32 %v324, %v624
    %v626 = vpop.f32.mrb[0].mxu0
    %v627 = vpop.f32.mrb[0].mxu0
    %628 = vdwg.mxu0
    %v629 = vadd.f32 %v579, %v623
    %v630 = vmul.f32 %v629, 0.5
    %v631 = vtanh.pop %v630
    %v632 = vmul.f32 %v631, 0.5
    %v633 = vadd.f32 %v632, 0.5
    %v634 = vmul.f32 %v633, %v625
    %v635 = vadd.f32 %v580, %v634
    %v636 = vtanh.pop %v635
    %v637 = vsub.f32 1.0, %v633
    %639 = vrot.lane.b32.xlu0 %v636, 64
    %v640 = vpop.permute.xlu0 %639
    %v642 = vmul.f32 %v637, %v640
    %v643 = vmul.f32 %v633, %v572
    %v644 = vadd.f32 %v642, %v643
    %646 = vrot.lane.b32.xlu0 %v644, 64
    %v647 = vpop.permute.xlu0 %646
    %649 = vst.msk [vmem:[#allocation3 + $0x20] sm:$0xff] %vm431, %v647
    %650 = vst.msk [vmem:[#allocation3 + $0x68] sm:$0xff] %vm433, %v647
    %v651 = vld [vmem:[#allocation2 + $0x40] sm:$0xff]
    %v652 = vld [vmem:[#allocation2 + $0x48] sm:$0xff]
    %v653 = vpack.c.bf16 %v644, %v644
    %655 = vrot.lane.b32.xlu0 %v653, 64
    %v656 = vpop.permute.xlu0 %655
    %v658 = vsel %vm271, %v656, 0
    %660 = vmatprep.subr.bf16.mxu0 %v352
    %661 = vmatpush1.bf16.msra.mxu0 %v351
    %662 = vmatprep.subr.bf16.mxu0 %v354
    %663 = vmatpush1.bf16.msra.mxu0 %v353
    %664 = vmatprep.subr.bf16.mxu0 %v356
    %665 = vmatpush1.bf16.msra.mxu0 %v355
    %666 = vmatprep.subr.bf16.mxu0 %v358
    %667 = vmatpush1.bf16.msra.mxu0 %v357
    %668 = vmatprep.subr.bf16.mxu0 0
    %669 = vmatpush1.bf16.msra.mxu0 0
    %670 = vmatprep.subr.bf16.mxu0 0
    %671 = vmatpush1.bf16.msra.mxu0 0
    %672 = vmatprep.subr.bf16.mxu0 0
    %673 = vmatpush1.bf16.msra.mxu0 0
    %674 = vmatprep.subr.bf16.mxu0 0
    %675 = vmatpush1.bf16.msra.mxu0 0
    %676 = vmatprep.subr.bf16.mxu0 0
    %677 = vmatpush1.bf16.msra.mxu0 0
    %678 = vmatprep.subr.bf16.mxu0 0
    %679 = vmatpush1.bf16.msra.mxu0 0
    %680 = vmatprep.subr.bf16.mxu0 0
    %681 = vmatpush1.bf16.msra.mxu0 0
    %682 = vmatprep.subr.bf16.mxu0 0
    %683 = vmatpush1.bf16.msra.mxu0 0
    %684 = vmatprep.subr.bf16.mxu0 0
    %685 = vmatpush1.bf16.msra.mxu0 0
    %686 = vmatprep.subr.bf16.mxu0 0
    %687 = vmatpush1.bf16.msra.mxu0 0
    %688 = vmatprep.subr.bf16.mxu0 0
    %689 = vmatpush1.bf16.msra.mxu0 0
    %690 = vmatprep.subr.bf16.mxu0 0
    %691 = vmatpush1.bf16.msra.mxu0 0
    %692 = vmatprep.mubr.bf16.mxu0 0
    %693 = vmatmul.mubr.bf16.gmra.mrb[0].mxu0 %v658
    %v694 = vpop.f32.mrb[0].mxu0
    %v695 = vadd.f32 %v320, %v694
    %v696 = vpop.f32.mrb[0].mxu0
    %v697 = vadd.f32 %v324, %v696
    %v698 = vpop.f32.mrb[0].mxu0
    %v699 = vpop.f32.mrb[0].mxu0
    %700 = vdwg.mxu0
    %v701 = vadd.f32 %v651, %v695
    %v702 = vmul.f32 %v701, 0.5
    %v703 = vtanh.pop %v702
    %v704 = vmul.f32 %v703, 0.5
    %v705 = vadd.f32 %v704, 0.5
    %v706 = vmul.f32 %v705, %v697
    %v707 = vadd.f32 %v652, %v706
    %v708 = vtanh.pop %v707
    %v709 = vsub.f32 1.0, %v705
    %711 = vrot.lane.b32.xlu0 %v708, 64
    %v712 = vpop.permute.xlu0 %711
    %v714 = vmul.f32 %v709, %v712
    %v715 = vmul.f32 %v705, %v644
    %v716 = vadd.f32 %v714, %v715
    %718 = vrot.lane.b32.xlu0 %v716, 64
    %v719 = vpop.permute.xlu0 %718
    %721 = vst.msk [vmem:[#allocation3 + $0x28] sm:$0xff] %vm431, %v719
    %722 = vst.msk [vmem:[#allocation3 + $0x60] sm:$0xff] %vm433, %v719
    %v723 = vld [vmem:[#allocation2 + $0x50] sm:$0xff]
    %v724 = vld [vmem:[#allocation2 + $0x58] sm:$0xff]
    %v725 = vpack.c.bf16 %v716, %v716
    %727 = vrot.lane.b32.xlu0 %v725, 64
    %v728 = vpop.permute.xlu0 %727
    %v730 = vsel %vm271, %v728, 0
    %732 = vmatprep.subr.bf16.mxu0 %v352
    %733 = vmatpush1.bf16.msra.mxu0 %v351
    %734 = vmatprep.subr.bf16.mxu0 %v354
    %735 = vmatpush1.bf16.msra.mxu0 %v353
    %736 = vmatprep.subr.bf16.mxu0 %v356
    %737 = vmatpush1.bf16.msra.mxu0 %v355
    %738 = vmatprep.subr.bf16.mxu0 %v358
    %739 = vmatpush1.bf16.msra.mxu0 %v357
    %740 = vmatprep.subr.bf16.mxu0 0
    %741 = vmatpush1.bf16.msra.mxu0 0
    %742 = vmatprep.subr.bf16.mxu0 0
    %743 = vmatpush1.bf16.msra.mxu0 0
    %744 = vmatprep.subr.bf16.mxu0 0
    %745 = vmatpush1.bf16.msra.mxu0 0
    %746 = vmatprep.subr.bf16.mxu0 0
    %747 = vmatpush1.bf16.msra.mxu0 0
    %748 = vmatprep.subr.bf16.mxu0 0
    %749 = vmatpush1.bf16.msra.mxu0 0
    %750 = vmatprep.subr.bf16.mxu0 0
    %751 = vmatpush1.bf16.msra.mxu0 0
    %752 = vmatprep.subr.bf16.mxu0 0
    %753 = vmatpush1.bf16.msra.mxu0 0
    %754 = vmatprep.subr.bf16.mxu0 0
    %755 = vmatpush1.bf16.msra.mxu0 0
    %756 = vmatprep.subr.bf16.mxu0 0
    %757 = vmatpush1.bf16.msra.mxu0 0
    %758 = vmatprep.subr.bf16.mxu0 0
    %759 = vmatpush1.bf16.msra.mxu0 0
    %760 = vmatprep.subr.bf16.mxu0 0
    %761 = vmatpush1.bf16.msra.mxu0 0
    %762 = vmatprep.subr.bf16.mxu0 0
    %763 = vmatpush1.bf16.msra.mxu0 0
    %764 = vmatprep.mubr.bf16.mxu0 0
    %765 = vmatmul.mubr.bf16.gmra.mrb[0].mxu0 %v730
    %v766 = vpop.f32.mrb[0].mxu0
    %v767 = vadd.f32 %v320, %v766
    %v768 = vpop.f32.mrb[0].mxu0
    %v769 = vadd.f32 %v324, %v768
    %v770 = vpop.f32.mrb[0].mxu0
    %v771 = vpop.f32.mrb[0].mxu0
    %772 = vdwg.mxu0
    %v773 = vadd.f32 %v723, %v767
    %v774 = vmul.f32 %v773, 0.5
    %v775 = vtanh.pop %v774
    %v776 = vmul.f32 %v775, 0.5
    %v777 = vadd.f32 %v776, 0.5
    %v778 = vmul.f32 %v777, %v769
    %v779 = vadd.f32 %v724, %v778
    %v780 = vtanh.pop %v779
    %v781 = vsub.f32 1.0, %v777
    %783 = vrot.lane.b32.xlu0 %v780, 64
    %v784 = vpop.permute.xlu0 %783
    %v786 = vmul.f32 %v781, %v784
    %v787 = vmul.f32 %v777, %v716
    %v788 = vadd.f32 %v786, %v787
    %790 = vrot.lane.b32.xlu0 %v788, 64
    %v791 = vpop.permute.xlu0 %790
    %793 = vst.msk [vmem:[#allocation3 + $0x30] sm:$0xff] %vm431, %v791
    %794 = vst.msk [vmem:[#allocation3 + $0x58] sm:$0xff] %vm433, %v791
    %v795 = vld [vmem:[#allocation2 + $0x60] sm:$0xff]
    %v796 = vld [vmem:[#allocation2 + $0x68] sm:$0xff]
    %v797 = vpack.c.bf16 %v788, %v788
    %799 = vrot.lane.b32.xlu0 %v797, 64
    %v800 = vpop.permute.xlu0 %799
    %v802 = vsel %vm271, %v800, 0
    %804 = vmatprep.subr.bf16.mxu0 %v352
    %805 = vmatpush1.bf16.msra.mxu0 %v351
    %806 = vmatprep.subr.bf16.mxu0 %v354
    %807 = vmatpush1.bf16.msra.mxu0 %v353
    %808 = vmatprep.subr.bf16.mxu0 %v356
    %809 = vmatpush1.bf16.msra.mxu0 %v355
    %810 = vmatprep.subr.bf16.mxu0 %v358
    %811 = vmatpush1.bf16.msra.mxu0 %v357
    %812 = vmatprep.subr.bf16.mxu0 0
    %813 = vmatpush1.bf16.msra.mxu0 0
    %814 = vmatprep.subr.bf16.mxu0 0
    %815 = vmatpush1.bf16.msra.mxu0 0
    %816 = vmatprep.subr.bf16.mxu0 0
    %817 = vmatpush1.bf16.msra.mxu0 0
    %818 = vmatprep.subr.bf16.mxu0 0
    %819 = vmatpush1.bf16.msra.mxu0 0
    %820 = vmatprep.subr.bf16.mxu0 0
    %821 = vmatpush1.bf16.msra.mxu0 0
    %822 = vmatprep.subr.bf16.mxu0 0
    %823 = vmatpush1.bf16.msra.mxu0 0
    %824 = vmatprep.subr.bf16.mxu0 0
    %825 = vmatpush1.bf16.msra.mxu0 0
    %826 = vmatprep.subr.bf16.mxu0 0
    %827 = vmatpush1.bf16.msra.mxu0 0
    %828 = vmatprep.subr.bf16.mxu0 0
    %829 = vmatpush1.bf16.msra.mxu0 0
    %830 = vmatprep.subr.bf16.mxu0 0
    %831 = vmatpush1.bf16.msra.mxu0 0
    %832 = vmatprep.subr.bf16.mxu0 0
    %833 = vmatpush1.bf16.msra.mxu0 0
    %834 = vmatprep.subr.bf16.mxu0 0
    %835 = vmatpush1.bf16.msra.mxu0 0
    %836 = vmatprep.mubr.bf16.mxu0 0
    %837 = vmatmul.mubr.bf16.gmra.mrb[0].mxu0 %v802
    %v838 = vpop.f32.mrb[0].mxu0
    %v839 = vadd.f32 %v320, %v838
    %v840 = vpop.f32.mrb[0].mxu0
    %v841 = vadd.f32 %v324, %v840
    %v842 = vpop.f32.mrb[0].mxu0
    %v843 = vpop.f32.mrb[0].mxu0
    %844 = vdwg.mxu0
    %v845 = vadd.f32 %v795, %v839
    %v846 = vmul.f32 %v845, 0.5
    %v847 = vtanh.pop %v846
    %v848 = vmul.f32 %v847, 0.5
    %v849 = vadd.f32 %v848, 0.5
    %v850 = vmul.f32 %v849, %v841
    %v851 = vadd.f32 %v796, %v850
    %v852 = vtanh.pop %v851
    %v853 = vsub.f32 1.0, %v849
    %855 = vrot.lane.b32.xlu0 %v852, 64
    %v856 = vpop.permute.xlu0 %855
    %v858 = vmul.f32 %v853, %v856
    %v859 = vmul.f32 %v849, %v788
    %v860 = vadd.f32 %v858, %v859
    %862 = vrot.lane.b32.xlu0 %v860, 64
    %v863 = vpop.permute.xlu0 %862
    %865 = vst.msk [vmem:[#allocation3 + $0x38] sm:$0xff] %vm431, %v863
    %866 = vst.msk [vmem:[#allocation3 + $0x50] sm:$0xff] %vm433, %v863
    %v867 = vld [vmem:[#allocation2 + $0x70] sm:$0xff]
    %v868 = vld [vmem:[#allocation2 + $0x78] sm:$0xff]
    %v869 = vpack.c.bf16 %v860, %v860
    %871 = vrot.lane.b32.xlu0 %v869, 64
    %v872 = vpop.permute.xlu0 %871
    %v874 = vsel %vm271, %v872, 0
    %876 = vmatprep.subr.bf16.mxu0 %v352
    %877 = vmatpush1.bf16.msra.mxu0 %v351
    %878 = vmatprep.subr.bf16.mxu0 %v354
    %879 = vmatpush1.bf16.msra.mxu0 %v353
    %880 = vmatprep.subr.bf16.mxu0 %v356
    %881 = vmatpush1.bf16.msra.mxu0 %v355
    %882 = vmatprep.subr.bf16.mxu0 %v358
    %883 = vmatpush1.bf16.msra.mxu0 %v357
    %884 = vmatprep.subr.bf16.mxu0 0
    %885 = vmatpush1.bf16.msra.mxu0 0
    %886 = vmatprep.subr.bf16.mxu0 0
    %887 = vmatpush1.bf16.msra.mxu0 0
    %888 = vmatprep.subr.bf16.mxu0 0
    %889 = vmatpush1.bf16.msra.mxu0 0
    %890 = vmatprep.subr.bf16.mxu0 0
    %891 = vmatpush1.bf16.msra.mxu0 0
    %892 = vmatprep.subr.bf16.mxu0 0
    %893 = vmatpush1.bf16.msra.mxu0 0
    %894 = vmatprep.subr.bf16.mxu0 0
    %895 = vmatpush1.bf16.msra.mxu0 0
    %896 = vmatprep.subr.bf16.mxu0 0
    %897 = vmatpush1.bf16.msra.mxu0 0
    %898 = vmatprep.subr.bf16.mxu0 0
    %899 = vmatpush1.bf16.msra.mxu0 0
    %900 = vmatprep.subr.bf16.mxu0 0
    %901 = vmatpush1.bf16.msra.mxu0 0
    %902 = vmatprep.subr.bf16.mxu0 0
    %903 = vmatpush1.bf16.msra.mxu0 0
    %904 = vmatprep.subr.bf16.mxu0 0
    %905 = vmatpush1.bf16.msra.mxu0 0
    %906 = vmatprep.subr.bf16.mxu0 0
    %907 = vmatpush1.bf16.msra.mxu0 0
    %908 = vmatprep.mubr.bf16.mxu0 0
    %909 = vmatmul.mubr.bf16.gmra.mrb[0].mxu0 %v874
    %v910 = vpop.f32.mrb[0].mxu0
    %v911 = vadd.f32 %v320, %v910
    %v912 = vpop.f32.mrb[0].mxu0
    %v913 = vadd.f32 %v324, %v912
    %v914 = vpop.f32.mrb[0].mxu0
    %v915 = vpop.f32.mrb[0].mxu0
    %916 = vdwg.mxu0
    %v917 = vadd.f32 %v867, %v911
    %v918 = vmul.f32 %v917, 0.5
    %v919 = vtanh.pop %v918
    %v920 = vmul.f32 %v919, 0.5
    %v921 = vadd.f32 %v920, 0.5
    %v922 = vmul.f32 %v921, %v913
    %v923 = vadd.f32 %v868, %v922
    %v924 = vtanh.pop %v923
    %v925 = vsub.f32 1.0, %v921
    %927 = vrot.lane.b32.xlu0 %v924, 64
    %v928 = vpop.permute.xlu0 %927
    %v930 = vmul.f32 %v925, %v928
    %v931 = vmul.f32 %v921, %v860
    %v932 = vadd.f32 %v930, %v931
    %934 = vrot.lane.b32.xlu0 %v932, 64
    %v935 = vpop.permute.xlu0 %934
    %937 = vst.msk [vmem:[#allocation3 + $0x40] sm:$0xff] %vm431, %v935
    %938 = vst.msk [vmem:[#allocation3 + $0x48] sm:$0xff] %vm433, %v935
    %v939 = vld [vmem:[#allocation2 + $0x80] sm:$0xff]
    %v940 = vld [vmem:[#allocation2 + $0x88] sm:$0xff]
    %v941 = vpack.c.bf16 %v932, %v932
    %943 = vrot.lane.b32.xlu0 %v941, 64
    %v944 = vpop.permute.xlu0 %943
    %v946 = vsel %vm271, %v944, 0
    %948 = vmatprep.subr.bf16.mxu0 %v352
    %949 = vmatpush1.bf16.msra.mxu0 %v351
    %950 = vmatprep.subr.bf16.mxu0 %v354
    %951 = vmatpush1.bf16.msra.mxu0 %v353
    %952 = vmatprep.subr.bf16.mxu0 %v356
    %953 = vmatpush1.bf16.msra.mxu0 %v355
    %954 = vmatprep.subr.bf16.mxu0 %v358
    %955 = vmatpush1.bf16.msra.mxu0 %v357
    %956 = vmatprep.subr.bf16.mxu0 0
    %957 = vmatpush1.bf16.msra.mxu0 0
    %958 = vmatprep.subr.bf16.mxu0 0
    %959 = vmatpush1.bf16.msra.mxu0 0
    %960 = vmatprep.subr.bf16.mxu0 0
    %961 = vmatpush1.bf16.msra.mxu0 0
    %962 = vmatprep.subr.bf16.mxu0 0
    %963 = vmatpush1.bf16.msra.mxu0 0
    %964 = vmatprep.subr.bf16.mxu0 0
    %965 = vmatpush1.bf16.msra.mxu0 0
    %966 = vmatprep.subr.bf16.mxu0 0
    %967 = vmatpush1.bf16.msra.mxu0 0
    %968 = vmatprep.subr.bf16.mxu0 0
    %969 = vmatpush1.bf16.msra.mxu0 0
    %970 = vmatprep.subr.bf16.mxu0 0
    %971 = vmatpush1.bf16.msra.mxu0 0
    %972 = vmatprep.subr.bf16.mxu0 0
    %973 = vmatpush1.bf16.msra.mxu0 0
    %974 = vmatprep.subr.bf16.mxu0 0
    %975 = vmatpush1.bf16.msra.mxu0 0
    %976 = vmatprep.subr.bf16.mxu0 0
    %977 = vmatpush1.bf16.msra.mxu0 0
    %978 = vmatprep.subr.bf16.mxu0 0
    %979 = vmatpush1.bf16.msra.mxu0 0
    %980 = vmatprep.mubr.bf16.mxu0 0
    %981 = vmatmul.mubr.bf16.gmra.mrb[0].mxu0 %v946
    %v982 = vpop.f32.mrb[0].mxu0
    %v983 = vadd.f32 %v320, %v982
    %v984 = vpop.f32.mrb[0].mxu0
    %v985 = vadd.f32 %v324, %v984
    %v986 = vpop.f32.mrb[0].mxu0
    %v987 = vpop.f32.mrb[0].mxu0
    %988 = vdwg.mxu0
    %v989 = vadd.f32 %v939, %v983
    %v990 = vmul.f32 %v989, 0.5
    %v991 = vtanh.pop %v990
    %v992 = vmul.f32 %v991, 0.5
    %v993 = vadd.f32 %v992, 0.5
    %v994 = vmul.f32 %v993, %v985
    %v995 = vadd.f32 %v940, %v994
    %v996 = vtanh.pop %v995
    %v997 = vsub.f32 1.0, %v993
    %999 = vrot.lane.b32.xlu0 %v996, 64
    %v1000 = vpop.permute.xlu0 %999
    %v1002 = vmul.f32 %v997, %v1000
    %v1003 = vmul.f32 %v993, %v932
    %v1004 = vadd.f32 %v1002, %v1003
    %1006 = vrot.lane.b32.xlu0 %v1004, 64
    %v1007 = vpop.permute.xlu0 %1006
    %1009 = vst.msk [vmem:[#allocation3 + $0x48] sm:$0xff] %vm431, %v1007
    %1010 = vst.msk [vmem:[#allocation3 + $0x40] sm:$0xff] %vm433, %v1007
    %v1011 = vld [vmem:[#allocation2 + $0x90] sm:$0xff]
    %v1012 = vld [vmem:[#allocation2 + $0x98] sm:$0xff]
    %v1013 = vpack.c.bf16 %v1004, %v1004
    %1015 = vrot.lane.b32.xlu0 %v1013, 64
    %v1016 = vpop.permute.xlu0 %1015
    %v1018 = vsel %vm271, %v1016, 0
    %1020 = vmatprep.subr.bf16.mxu0 %v352
    %1021 = vmatpush1.bf16.msra.mxu0 %v351
    %1022 = vmatprep.subr.bf16.mxu0 %v354
    %1023 = vmatpush1.bf16.msra.mxu0 %v353
    %1024 = vmatprep.subr.bf16.mxu0 %v356
    %1025 = vmatpush1.bf16.msra.mxu0 %v355
    %1026 = vmatprep.subr.bf16.mxu0 %v358
    %1027 = vmatpush1.bf16.msra.mxu0 %v357
    %1028 = vmatprep.subr.bf16.mxu0 0
    %1029 = vmatpush1.bf16.msra.mxu0 0
    %1030 = vmatprep.subr.bf16.mxu0 0
    %1031 = vmatpush1.bf16.msra.mxu0 0
    %1032 = vmatprep.subr.bf16.mxu0 0
    %1033 = vmatpush1.bf16.msra.mxu0 0
    %1034 = vmatprep.subr.bf16.mxu0 0
    %1035 = vmatpush1.bf16.msra.mxu0 0
    %1036 = vmatprep.subr.bf16.mxu0 0
    %1037 = vmatpush1.bf16.msra.mxu0 0
    %1038 = vmatprep.subr.bf16.mxu0 0
    %1039 = vmatpush1.bf16.msra.mxu0 0
    %1040 = vmatprep.subr.bf16.mxu0 0
    %1041 = vmatpush1.bf16.msra.mxu0 0
    %1042 = vmatprep.subr.bf16.mxu0 0
    %1043 = vmatpush1.bf16.msra.mxu0 0
    %1044 = vmatprep.subr.bf16.mxu0 0
    %1045 = vmatpush1.bf16.msra.mxu0 0
    %1046 = vmatprep.subr.bf16.mxu0 0
    %1047 = vmatpush1.bf16.msra.mxu0 0
    %1048 = vmatprep.subr.bf16.mxu0 0
    %1049 = vmatpush1.bf16.msra.mxu0 0
    %1050 = vmatprep.subr.bf16.mxu0 0
    %1051 = vmatpush1.bf16.msra.mxu0 0
    %1052 = vmatprep.mubr.bf16.mxu0 0
    %1053 = vmatmul.mubr.bf16.gmra.mrb[0].mxu0 %v1018
    %v1054 = vpop.f32.mrb[0].mxu0
    %v1055 = vadd.f32 %v320, %v1054
    %v1056 = vpop.f32.mrb[0].mxu0
    %v1057 = vadd.f32 %v324, %v1056
    %v1058 = vpop.f32.mrb[0].mxu0
    %v1059 = vpop.f32.mrb[0].mxu0
    %1060 = vdwg.mxu0
    %v1061 = vadd.f32 %v1011, %v1055
    %v1062 = vmul.f32 %v1061, 0.5
    %v1063 = vtanh.pop %v1062
    %v1064 = vmul.f32 %v1063, 0.5
    %v1065 = vadd.f32 %v1064, 0.5
    %v1066 = vmul.f32 %v1065, %v1057
    %v1067 = vadd.f32 %v1012, %v1066
    %v1068 = vtanh.pop %v1067
    %v1069 = vsub.f32 1.0, %v1065
    %1071 = vrot.lane.b32.xlu0 %v1068, 64
    %v1072 = vpop.permute.xlu0 %1071
    %v1074 = vmul.f32 %v1069, %v1072
    %v1075 = vmul.f32 %v1065, %v1004
    %v1076 = vadd.f32 %v1074, %v1075
    %1078 = vrot.lane.b32.xlu0 %v1076, 64
    %v1079 = vpop.permute.xlu0 %1078
    %1081 = vst.msk [vmem:[#allocation3 + $0x50] sm:$0xff] %vm431, %v1079
    %1082 = vst.msk [vmem:[#allocation3 + $0x38] sm:$0xff] %vm433, %v1079
    %v1083 = vld [vmem:[#allocation2 + $0xa0] sm:$0xff]
    %v1084 = vld [vmem:[#allocation2 + $0xa8] sm:$0xff]
    %v1085 = vpack.c.bf16 %v1076, %v1076
    %1087 = vrot.lane.b32.xlu0 %v1085, 64
    %v1088 = vpop.permute.xlu0 %1087
    %v1090 = vsel %vm271, %v1088, 0
    %1092 = vmatprep.subr.bf16.mxu0 %v352
    %1093 = vmatpush1.bf16.msra.mxu0 %v351
    %1094 = vmatprep.subr.bf16.mxu0 %v354
    %1095 = vmatpush1.bf16.msra.mxu0 %v353
    %1096 = vmatprep.subr.bf16.mxu0 %v356
    %1097 = vmatpush1.bf16.msra.mxu0 %v355
    %1098 = vmatprep.subr.bf16.mxu0 %v358
    %1099 = vmatpush1.bf16.msra.mxu0 %v357
    %1100 = vmatprep.subr.bf16.mxu0 0
    %1101 = vmatpush1.bf16.msra.mxu0 0
    %1102 = vmatprep.subr.bf16.mxu0 0
    %1103 = vmatpush1.bf16.msra.mxu0 0
    %1104 = vmatprep.subr.bf16.mxu0 0
    %1105 = vmatpush1.bf16.msra.mxu0 0
    %1106 = vmatprep.subr.bf16.mxu0 0
    %1107 = vmatpush1.bf16.msra.mxu0 0
    %1108 = vmatprep.subr.bf16.mxu0 0
    %1109 = vmatpush1.bf16.msra.mxu0 0
    %1110 = vmatprep.subr.bf16.mxu0 0
    %1111 = vmatpush1.bf16.msra.mxu0 0
    %1112 = vmatprep.subr.bf16.mxu0 0
    %1113 = vmatpush1.bf16.msra.mxu0 0
    %1114 = vmatprep.subr.bf16.mxu0 0
    %1115 = vmatpush1.bf16.msra.mxu0 0
    %1116 = vmatprep.subr.bf16.mxu0 0
    %1117 = vmatpush1.bf16.msra.mxu0 0
    %1118 = vmatprep.subr.bf16.mxu0 0
    %1119 = vmatpush1.bf16.msra.mxu0 0
    %1120 = vmatprep.subr.bf16.mxu0 0
    %1121 = vmatpush1.bf16.msra.mxu0 0
    %1122 = vmatprep.subr.bf16.mxu0 0
    %1123 = vmatpush1.bf16.msra.mxu0 0
    %1124 = vmatprep.mubr.bf16.mxu0 0
    %1125 = vmatmul.mubr.bf16.gmra.mrb[0].mxu0 %v1090
    %v1126 = vpop.f32.mrb[0].mxu0
    %v1127 = vadd.f32 %v320, %v1126
    %v1128 = vpop.f32.mrb[0].mxu0
    %v1129 = vadd.f32 %v324, %v1128
    %v1130 = vpop.f32.mrb[0].mxu0
    %v1131 = vpop.f32.mrb[0].mxu0
    %1132 = vdwg.mxu0
    %v1133 = vadd.f32 %v1083, %v1127
    %v1134 = vmul.f32 %v1133, 0.5
    %v1135 = vtanh.pop %v1134
    %v1136 = vmul.f32 %v1135, 0.5
    %v1137 = vadd.f32 %v1136, 0.5
    %v1138 = vmul.f32 %v1137, %v1129
    %v1139 = vadd.f32 %v1084, %v1138
    %v1140 = vtanh.pop %v1139
    %v1141 = vsub.f32 1.0, %v1137
    %1143 = vrot.lane.b32.xlu0 %v1140, 64
    %v1144 = vpop.permute.xlu0 %1143
    %v1146 = vmul.f32 %v1141, %v1144
    %v1147 = vmul.f32 %v1137, %v1076
    %v1148 = vadd.f32 %v1146, %v1147
    %1150 = vrot.lane.b32.xlu0 %v1148, 64
    %v1151 = vpop.permute.xlu0 %1150
    %1153 = vst.msk [vmem:[#allocation3 + $0x58] sm:$0xff] %vm431, %v1151
    %1154 = vst.msk [vmem:[#allocation3 + $0x30] sm:$0xff] %vm433, %v1151
    %v1155 = vld [vmem:[#allocation2 + $0xb0] sm:$0xff]
    %v1156 = vld [vmem:[#allocation2 + $0xb8] sm:$0xff]
    %v1157 = vpack.c.bf16 %v1148, %v1148
    %1159 = vrot.lane.b32.xlu0 %v1157, 64
    %v1160 = vpop.permute.xlu0 %1159
    %v1162 = vsel %vm271, %v1160, 0
    %1164 = vmatprep.subr.bf16.mxu0 %v352
    %1165 = vmatpush1.bf16.msra.mxu0 %v351
    %1166 = vmatprep.subr.bf16.mxu0 %v354
    %1167 = vmatpush1.bf16.msra.mxu0 %v353
    %1168 = vmatprep.subr.bf16.mxu0 %v356
    %1169 = vmatpush1.bf16.msra.mxu0 %v355
    %1170 = vmatprep.subr.bf16.mxu0 %v358
    %1171 = vmatpush1.bf16.msra.mxu0 %v357
    %1172 = vmatprep.subr.bf16.mxu0 0
    %1173 = vmatpush1.bf16.msra.mxu0 0
    %1174 = vmatprep.subr.bf16.mxu0 0
    %1175 = vmatpush1.bf16.msra.mxu0 0
    %1176 = vmatprep.subr.bf16.mxu0 0
    %1177 = vmatpush1.bf16.msra.mxu0 0
    %1178 = vmatprep.subr.bf16.mxu0 0
    %1179 = vmatpush1.bf16.msra.mxu0 0
    %1180 = vmatprep.subr.bf16.mxu0 0
    %1181 = vmatpush1.bf16.msra.mxu0 0
    %1182 = vmatprep.subr.bf16.mxu0 0
    %1183 = vmatpush1.bf16.msra.mxu0 0
    %1184 = vmatprep.subr.bf16.mxu0 0
    %1185 = vmatpush1.bf16.msra.mxu0 0
    %1186 = vmatprep.subr.bf16.mxu0 0
    %1187 = vmatpush1.bf16.msra.mxu0 0
    %1188 = vmatprep.subr.bf16.mxu0 0
    %1189 = vmatpush1.bf16.msra.mxu0 0
    %1190 = vmatprep.subr.bf16.mxu0 0
    %1191 = vmatpush1.bf16.msra.mxu0 0
    %1192 = vmatprep.subr.bf16.mxu0 0
    %1193 = vmatpush1.bf16.msra.mxu0 0
    %1194 = vmatprep.subr.bf16.mxu0 0
    %1195 = vmatpush1.bf16.msra.mxu0 0
    %1196 = vmatprep.mubr.bf16.mxu0 0
    %1197 = vmatmul.mubr.bf16.gmra.mrb[0].mxu0 %v1162
    %v1198 = vpop.f32.mrb[0].mxu0
    %v1199 = vadd.f32 %v320, %v1198
    %v1200 = vpop.f32.mrb[0].mxu0
    %v1201 = vadd.f32 %v324, %v1200
    %v1202 = vpop.f32.mrb[0].mxu0
    %v1203 = vpop.f32.mrb[0].mxu0
    %1204 = vdwg.mxu0
    %v1205 = vadd.f32 %v1155, %v1199
    %v1206 = vmul.f32 %v1205, 0.5
    %v1207 = vtanh.pop %v1206
    %v1208 = vmul.f32 %v1207, 0.5
    %v1209 = vadd.f32 %v1208, 0.5
    %v1210 = vmul.f32 %v1209, %v1201
    %v1211 = vadd.f32 %v1156, %v1210
    %v1212 = vtanh.pop %v1211
    %v1213 = vsub.f32 1.0, %v1209
    %1215 = vrot.lane.b32.xlu0 %v1212, 64
    %v1216 = vpop.permute.xlu0 %1215
    %v1218 = vmul.f32 %v1213, %v1216
    %v1219 = vmul.f32 %v1209, %v1148
    %v1220 = vadd.f32 %v1218, %v1219
    %1222 = vrot.lane.b32.xlu0 %v1220, 64
    %v1223 = vpop.permute.xlu0 %1222
    %1225 = vst.msk [vmem:[#allocation3 + $0x60] sm:$0xff] %vm431, %v1223
    %1226 = vst.msk [vmem:[#allocation3 + $0x28] sm:$0xff] %vm433, %v1223
    %v1227 = vld [vmem:[#allocation2 + $0xc0] sm:$0xff]
    %v1228 = vld [vmem:[#allocation2 + $0xc8] sm:$0xff]
    %v1229 = vpack.c.bf16 %v1220, %v1220
    %1231 = vrot.lane.b32.xlu0 %v1229, 64
    %v1232 = vpop.permute.xlu0 %1231
    %v1234 = vsel %vm271, %v1232, 0
    %1236 = vmatprep.subr.bf16.mxu0 %v352
    %1237 = vmatpush1.bf16.msra.mxu0 %v351
    %1238 = vmatprep.subr.bf16.mxu0 %v354
    %1239 = vmatpush1.bf16.msra.mxu0 %v353
    %1240 = vmatprep.subr.bf16.mxu0 %v356
    %1241 = vmatpush1.bf16.msra.mxu0 %v355
    %1242 = vmatprep.subr.bf16.mxu0 %v358
    %1243 = vmatpush1.bf16.msra.mxu0 %v357
    %1244 = vmatprep.subr.bf16.mxu0 0
    %1245 = vmatpush1.bf16.msra.mxu0 0
    %1246 = vmatprep.subr.bf16.mxu0 0
    %1247 = vmatpush1.bf16.msra.mxu0 0
    %1248 = vmatprep.subr.bf16.mxu0 0
    %1249 = vmatpush1.bf16.msra.mxu0 0
    %1250 = vmatprep.subr.bf16.mxu0 0
    %1251 = vmatpush1.bf16.msra.mxu0 0
    %1252 = vmatprep.subr.bf16.mxu0 0
    %1253 = vmatpush1.bf16.msra.mxu0 0
    %1254 = vmatprep.subr.bf16.mxu0 0
    %1255 = vmatpush1.bf16.msra.mxu0 0
    %1256 = vmatprep.subr.bf16.mxu0 0
    %1257 = vmatpush1.bf16.msra.mxu0 0
    %1258 = vmatprep.subr.bf16.mxu0 0
    %1259 = vmatpush1.bf16.msra.mxu0 0
    %1260 = vmatprep.subr.bf16.mxu0 0
    %1261 = vmatpush1.bf16.msra.mxu0 0
    %1262 = vmatprep.subr.bf16.mxu0 0
    %1263 = vmatpush1.bf16.msra.mxu0 0
    %1264 = vmatprep.subr.bf16.mxu0 0
    %1265 = vmatpush1.bf16.msra.mxu0 0
    %1266 = vmatprep.subr.bf16.mxu0 0
    %1267 = vmatpush1.bf16.msra.mxu0 0
    %1268 = vmatprep.mubr.bf16.mxu0 0
    %1269 = vmatmul.mubr.bf16.gmra.mrb[0].mxu0 %v1234
    %v1270 = vpop.f32.mrb[0].mxu0
    %v1271 = vadd.f32 %v320, %v1270
    %v1272 = vpop.f32.mrb[0].mxu0
    %v1273 = vadd.f32 %v324, %v1272
    %v1274 = vpop.f32.mrb[0].mxu0
    %v1275 = vpop.f32.mrb[0].mxu0
    %1276 = vdwg.mxu0
    %v1277 = vadd.f32 %v1227, %v1271
    %v1278 = vmul.f32 %v1277, 0.5
    %v1279 = vtanh.pop %v1278
    %v1280 = vmul.f32 %v1279, 0.5
    %v1281 = vadd.f32 %v1280, 0.5
    %v1282 = vmul.f32 %v1281, %v1273
    %v1283 = vadd.f32 %v1228, %v1282
    %v1284 = vtanh.pop %v1283
    %v1285 = vsub.f32 1.0, %v1281
    %1287 = vrot.lane.b32.xlu0 %v1284, 64
    %v1288 = vpop.permute.xlu0 %1287
    %v1290 = vmul.f32 %v1285, %v1288
    %v1291 = vmul.f32 %v1281, %v1220
    %v1292 = vadd.f32 %v1290, %v1291
    %1294 = vrot.lane.b32.xlu0 %v1292, 64
    %v1295 = vpop.permute.xlu0 %1294
    %1297 = vst.msk [vmem:[#allocation3 + $0x68] sm:$0xff] %vm431, %v1295
    %1298 = vst.msk [vmem:[#allocation3 + $0x20] sm:$0xff] %vm433, %v1295
    %v1299 = vld [vmem:[#allocation2 + $0xd0] sm:$0xff]
    %v1300 = vld [vmem:[#allocation2 + $0xd8] sm:$0xff]
    %v1301 = vpack.c.bf16 %v1292, %v1292
    %1303 = vrot.lane.b32.xlu0 %v1301, 64
    %v1304 = vpop.permute.xlu0 %1303
    %v1306 = vsel %vm271, %v1304, 0
    %1308 = vmatprep.subr.bf16.mxu0 %v352
    %1309 = vmatpush1.bf16.msra.mxu0 %v351
    %1310 = vmatprep.subr.bf16.mxu0 %v354
    %1311 = vmatpush1.bf16.msra.mxu0 %v353
    %1312 = vmatprep.subr.bf16.mxu0 %v356
    %1313 = vmatpush1.bf16.msra.mxu0 %v355
    %1314 = vmatprep.subr.bf16.mxu0 %v358
    %1315 = vmatpush1.bf16.msra.mxu0 %v357
    %1316 = vmatprep.subr.bf16.mxu0 0
    %1317 = vmatpush1.bf16.msra.mxu0 0
    %1318 = vmatprep.subr.bf16.mxu0 0
    %1319 = vmatpush1.bf16.msra.mxu0 0
    %1320 = vmatprep.subr.bf16.mxu0 0
    %1321 = vmatpush1.bf16.msra.mxu0 0
    %1322 = vmatprep.subr.bf16.mxu0 0
    %1323 = vmatpush1.bf16.msra.mxu0 0
    %1324 = vmatprep.subr.bf16.mxu0 0
    %1325 = vmatpush1.bf16.msra.mxu0 0
    %1326 = vmatprep.subr.bf16.mxu0 0
    %1327 = vmatpush1.bf16.msra.mxu0 0
    %1328 = vmatprep.subr.bf16.mxu0 0
    %1329 = vmatpush1.bf16.msra.mxu0 0
    %1330 = vmatprep.subr.bf16.mxu0 0
    %1331 = vmatpush1.bf16.msra.mxu0 0
    %1332 = vmatprep.subr.bf16.mxu0 0
    %1333 = vmatpush1.bf16.msra.mxu0 0
    %1334 = vmatprep.subr.bf16.mxu0 0
    %1335 = vmatpush1.bf16.msra.mxu0 0
    %1336 = vmatprep.subr.bf16.mxu0 0
    %1337 = vmatpush1.bf16.msra.mxu0 0
    %1338 = vmatprep.subr.bf16.mxu0 0
    %1339 = vmatpush1.bf16.msra.mxu0 0
    %1340 = vmatprep.mubr.bf16.mxu0 0
    %1341 = vmatmul.mubr.bf16.gmra.mrb[0].mxu0 %v1306
    %v1342 = vpop.f32.mrb[0].mxu0
    %v1343 = vadd.f32 %v320, %v1342
    %v1344 = vpop.f32.mrb[0].mxu0
    %v1345 = vadd.f32 %v324, %v1344
    %v1346 = vpop.f32.mrb[0].mxu0
    %v1347 = vpop.f32.mrb[0].mxu0
    %1348 = vdwg.mxu0
    %v1349 = vadd.f32 %v1299, %v1343
    %v1350 = vmul.f32 %v1349, 0.5
    %v1351 = vtanh.pop %v1350
    %v1352 = vmul.f32 %v1351, 0.5
    %v1353 = vadd.f32 %v1352, 0.5
    %v1354 = vmul.f32 %v1353, %v1345
    %v1355 = vadd.f32 %v1300, %v1354
    %v1356 = vtanh.pop %v1355
    %v1357 = vsub.f32 1.0, %v1353
    %1359 = vrot.lane.b32.xlu0 %v1356, 64
    %v1360 = vpop.permute.xlu0 %1359
    %v1362 = vmul.f32 %v1357, %v1360
    %v1363 = vmul.f32 %v1353, %v1292
    %v1364 = vadd.f32 %v1362, %v1363
    %1366 = vrot.lane.b32.xlu0 %v1364, 64
    %v1367 = vpop.permute.xlu0 %1366
    %1369 = vst.msk [vmem:[#allocation3 + $0x70] sm:$0xff] %vm431, %v1367
    %1370 = vst.msk [vmem:[#allocation3 + $0x18] sm:$0xff] %vm433, %v1367
    %v1371 = vld [vmem:[#allocation2 + $0xe0] sm:$0xff]
    %v1372 = vld [vmem:[#allocation2 + $0xe8] sm:$0xff]
    %v1373 = vpack.c.bf16 %v1364, %v1364
    %1375 = vrot.lane.b32.xlu0 %v1373, 64
    %v1376 = vpop.permute.xlu0 %1375
    %v1378 = vsel %vm271, %v1376, 0
    %1380 = vmatprep.subr.bf16.mxu0 %v352
    %1381 = vmatpush1.bf16.msra.mxu0 %v351
    %1382 = vmatprep.subr.bf16.mxu0 %v354
    %1383 = vmatpush1.bf16.msra.mxu0 %v353
    %1384 = vmatprep.subr.bf16.mxu0 %v356
    %1385 = vmatpush1.bf16.msra.mxu0 %v355
    %1386 = vmatprep.subr.bf16.mxu0 %v358
    %1387 = vmatpush1.bf16.msra.mxu0 %v357
    %1388 = vmatprep.subr.bf16.mxu0 0
    %1389 = vmatpush1.bf16.msra.mxu0 0
    %1390 = vmatprep.subr.bf16.mxu0 0
    %1391 = vmatpush1.bf16.msra.mxu0 0
    %1392 = vmatprep.subr.bf16.mxu0 0
    %1393 = vmatpush1.bf16.msra.mxu0 0
    %1394 = vmatprep.subr.bf16.mxu0 0
    %1395 = vmatpush1.bf16.msra.mxu0 0
    %1396 = vmatprep.subr.bf16.mxu0 0
    %1397 = vmatpush1.bf16.msra.mxu0 0
    %1398 = vmatprep.subr.bf16.mxu0 0
    %1399 = vmatpush1.bf16.msra.mxu0 0
    %1400 = vmatprep.subr.bf16.mxu0 0
    %1401 = vmatpush1.bf16.msra.mxu0 0
    %1402 = vmatprep.subr.bf16.mxu0 0
    %1403 = vmatpush1.bf16.msra.mxu0 0
    %1404 = vmatprep.subr.bf16.mxu0 0
    %1405 = vmatpush1.bf16.msra.mxu0 0
    %1406 = vmatprep.subr.bf16.mxu0 0
    %1407 = vmatpush1.bf16.msra.mxu0 0
    %1408 = vmatprep.subr.bf16.mxu0 0
    %1409 = vmatpush1.bf16.msra.mxu0 0
    %1410 = vmatprep.subr.bf16.mxu0 0
    %1411 = vmatpush1.bf16.msra.mxu0 0
    %1412 = vmatprep.mubr.bf16.mxu0 0
    %1413 = vmatmul.mubr.bf16.gmra.mrb[0].mxu0 %v1378
    %v1414 = vpop.f32.mrb[0].mxu0
    %v1415 = vadd.f32 %v320, %v1414
    %v1416 = vpop.f32.mrb[0].mxu0
    %v1417 = vadd.f32 %v324, %v1416
    %v1418 = vpop.f32.mrb[0].mxu0
    %v1419 = vpop.f32.mrb[0].mxu0
    %1420 = vdwg.mxu0
    %v1421 = vadd.f32 %v1371, %v1415
    %v1422 = vmul.f32 %v1421, 0.5
    %v1423 = vtanh.pop %v1422
    %v1424 = vmul.f32 %v1423, 0.5
    %v1425 = vadd.f32 %v1424, 0.5
    %v1426 = vmul.f32 %v1425, %v1417
    %v1427 = vadd.f32 %v1372, %v1426
    %v1428 = vtanh.pop %v1427
    %v1429 = vsub.f32 1.0, %v1425
    %1431 = vrot.lane.b32.xlu0 %v1428, 64
    %v1432 = vpop.permute.xlu0 %1431
    %v1434 = vmul.f32 %v1429, %v1432
    %v1435 = vmul.f32 %v1425, %v1364
    %v1436 = vadd.f32 %v1434, %v1435
    %1438 = vrot.lane.b32.xlu0 %v1436, 64
    %v1439 = vpop.permute.xlu0 %1438
    %1441 = vst.msk [vmem:[#allocation3 + $0x78] sm:$0xff] %vm431, %v1439
    %1442 = vst.msk [vmem:[#allocation3 + $0x10] sm:$0xff] %vm433, %v1439
    %v1443 = vld [vmem:[#allocation2 + $0xf0] sm:$0xff]
    %v1444 = vld [vmem:[#allocation2 + $0xf8] sm:$0xff]
    %v1445 = vpack.c.bf16 %v1436, %v1436
    %1447 = vrot.lane.b32.xlu0 %v1445, 64
    %v1448 = vpop.permute.xlu0 %1447
    %v1450 = vsel %vm271, %v1448, 0
    %1452 = vmatprep.subr.bf16.mxu0 %v352
    %1453 = vmatpush1.bf16.msra.mxu0 %v351
    %1454 = vmatprep.subr.bf16.mxu0 %v354
    %1455 = vmatpush1.bf16.msra.mxu0 %v353
    %1456 = vmatprep.subr.bf16.mxu0 %v356
    %1457 = vmatpush1.bf16.msra.mxu0 %v355
    %1458 = vmatprep.subr.bf16.mxu0 %v358
    %1459 = vmatpush1.bf16.msra.mxu0 %v357
    %1460 = vmatprep.subr.bf16.mxu0 0
    %1461 = vmatpush1.bf16.msra.mxu0 0
    %1462 = vmatprep.subr.bf16.mxu0 0
    %1463 = vmatpush1.bf16.msra.mxu0 0
    %1464 = vmatprep.subr.bf16.mxu0 0
    %1465 = vmatpush1.bf16.msra.mxu0 0
    %1466 = vmatprep.subr.bf16.mxu0 0
    %1467 = vmatpush1.bf16.msra.mxu0 0
    %1468 = vmatprep.subr.bf16.mxu0 0
    %1469 = vmatpush1.bf16.msra.mxu0 0
    %1470 = vmatprep.subr.bf16.mxu0 0
    %1471 = vmatpush1.bf16.msra.mxu0 0
    %1472 = vmatprep.subr.bf16.mxu0 0
    %1473 = vmatpush1.bf16.msra.mxu0 0
    %1474 = vmatprep.subr.bf16.mxu0 0
    %1475 = vmatpush1.bf16.msra.mxu0 0
    %1476 = vmatprep.subr.bf16.mxu0 0
    %1477 = vmatpush1.bf16.msra.mxu0 0
    %1478 = vmatprep.subr.bf16.mxu0 0
    %1479 = vmatpush1.bf16.msra.mxu0 0
    %1480 = vmatprep.subr.bf16.mxu0 0
    %1481 = vmatpush1.bf16.msra.mxu0 0
    %1482 = vmatprep.subr.bf16.mxu0 0
    %1483 = vmatpush1.bf16.msra.mxu0 0
    %1484 = vmatprep.mubr.bf16.mxu0 0
    %1485 = vmatmul.mubr.bf16.gmra.mrb[0].mxu0 %v1450
    %v1486 = vpop.f32.mrb[0].mxu0
    %v1487 = vadd.f32 %v320, %v1486
    %v1488 = vpop.f32.mrb[0].mxu0
    %v1489 = vadd.f32 %v324, %v1488
    %v1490 = vpop.f32.mrb[0].mxu0
    %v1491 = vpop.f32.mrb[0].mxu0
    %1492 = vdwg.mxu0
    %v1493 = vadd.f32 %v1443, %v1487
    %v1494 = vmul.f32 %v1493, 0.5
    %v1495 = vtanh.pop %v1494
    %v1496 = vmul.f32 %v1495, 0.5
    %v1497 = vadd.f32 %v1496, 0.5
    %v1498 = vmul.f32 %v1497, %v1489
    %v1499 = vadd.f32 %v1444, %v1498
    %v1500 = vtanh.pop %v1499
    %v1501 = vsub.f32 1.0, %v1497
    %1503 = vrot.lane.b32.xlu0 %v1500, 64
    %v1504 = vpop.permute.xlu0 %1503
    %v1506 = vmul.f32 %v1501, %v1504
    %v1507 = vmul.f32 %v1497, %v1436
    %v1508 = vadd.f32 %v1506, %v1507
    %1510 = vrot.lane.b32.xlu0 %v1508, 64
    %v1511 = vpop.permute.xlu0 %1510
    %1513 = vst.msk [vmem:[#allocation3 + $0x80] sm:$0xff] %vm431, %v1511
    %1514 = vst.msk [vmem:[#allocation3 + $0x8] sm:$0xff] %vm433, %v1511
    %v1515 = vld [vmem:[%s6] sm:$0x1]
    %v1517 = vlaneseq
    %v1518 = vshrl.u32 %v1517, 7
    %v1519 = vsub.s32 0, %v1518
    %v1520 = vrot.slane %v1515, %v1519
    %v1522 = vadd.f32 %v1520, 0.0
    %v1523 = vld [vmem:[#allocation3] sm:$0xff]
    %v1524 = vld [vmem:[#allocation3 + $0x8] sm:$0xff]
    %v1525 = vld [vmem:[#allocation3 + $0x10] sm:$0xff]
    %v1526 = vld [vmem:[#allocation3 + $0x18] sm:$0xff]
    %v1527 = vld [vmem:[#allocation3 + $0x20] sm:$0xff]
    %v1528 = vld [vmem:[#allocation3 + $0x28] sm:$0xff]
    %v1529 = vld [vmem:[#allocation3 + $0x30] sm:$0xff]
    %v1530 = vld [vmem:[#allocation3 + $0x38] sm:$0xff]
    %v1531 = vld [vmem:[#allocation3 + $0x40] sm:$0xff]
    %v1532 = vld [vmem:[#allocation3 + $0x48] sm:$0xff]
    %v1533 = vld [vmem:[#allocation3 + $0x50] sm:$0xff]
    %v1534 = vld [vmem:[#allocation3 + $0x58] sm:$0xff]
    %v1535 = vld [vmem:[#allocation3 + $0x60] sm:$0xff]
    %v1536 = vld [vmem:[#allocation3 + $0x68] sm:$0xff]
    %v1537 = vld [vmem:[#allocation3 + $0x70] sm:$0xff]
    %v1538 = vld [vmem:[#allocation3 + $0x78] sm:$0xff]
    %v1539 = vpack.c.bf16 %v1524, %v1523
    %v1540 = vpack.c.bf16 %v1526, %v1525
    %v1541 = vpack.c.bf16 %v1528, %v1527
    %v1542 = vpack.c.bf16 %v1530, %v1529
    %v1543 = vpack.c.bf16 %v1532, %v1531
    %v1544 = vpack.c.bf16 %v1534, %v1533
    %v1545 = vpack.c.bf16 %v1536, %v1535
    %v1546 = vpack.c.bf16 %v1538, %v1537
    %v1547 = vld [vmem:[%s5] sm:$0xf]
    %v1548 = vld [vmem:[%s5 + $0x4] sm:$0xf]
    %v1549 = vld [vmem:[%s5 + $0x8] sm:$0xf]
    %v1550 = vld [vmem:[%s5 + $0xc] sm:$0xf]
    %v1551 = vld [vmem:[%s5 + $0x10] sm:$0xf]
    %v1552 = vld [vmem:[%s5 + $0x14] sm:$0xf]
    %v1553 = vld [vmem:[%s5 + $0x18] sm:$0xf]
    %v1554 = vld [vmem:[%s5 + $0x1c] sm:$0xf]
    %v1563 = vunpack.c.l.b16 %v1547
    %v1564 = vunpack.c.l.b16 %v1548
    %v1565 = vunpack.c.l.b16 %v1549
    %v1566 = vunpack.c.l.b16 %v1550
    %v1567 = vunpack.c.l.b16 %v1551
    %v1568 = vunpack.c.l.b16 %v1552
    %v1569 = vunpack.c.l.b16 %v1553
    %v1570 = vunpack.c.l.b16 %v1554
    %v1571 = vpack.c.b16 %v1564, %v1563
    %v1572 = vpack.c.b16 %v1566, %v1565
    %v1573 = vpack.c.b16 %v1568, %v1567
    %v1574 = vpack.c.b16 %v1570, %v1569
    %v1580 = vsel %vm271, %v1539, 0
    %v1583 = vsel %vm271, %v1540, 0
    %v1586 = vsel %vm271, %v1541, 0
    %v1589 = vsel %vm271, %v1542, 0
    %v1592 = vsel %vm271, %v1543, 0
    %v1595 = vsel %vm271, %v1544, 0
    %v1598 = vsel %vm271, %v1545, 0
    %v1601 = vsel %vm271, %v1546, 0
    %1603 = vmatprep.subr.bf16.mxu0 0
    %1604 = vmatpush1.bf16.msra.mxu0 %v1571
    %1605 = vmatprep.subr.bf16.mxu0 0
    %1606 = vmatpush1.bf16.msra.mxu0 %v1572
    %1607 = vmatprep.subr.bf16.mxu0 0
    %1608 = vmatpush1.bf16.msra.mxu0 %v1573
    %1609 = vmatprep.subr.bf16.mxu0 0
    %1610 = vmatpush1.bf16.msra.mxu0 %v1574
    %1611 = vmatprep.subr.bf16.mxu0 0
    %1612 = vmatpush1.bf16.msra.mxu0 0
    %1613 = vmatprep.subr.bf16.mxu0 0
    %1614 = vmatpush1.bf16.msra.mxu0 0
    %1615 = vmatprep.subr.bf16.mxu0 0
    %1616 = vmatpush1.bf16.msra.mxu0 0
    %1617 = vmatprep.subr.bf16.mxu0 0
    %1618 = vmatpush1.bf16.msra.mxu0 0
    %1619 = vmatprep.subr.bf16.mxu0 0
    %1620 = vmatpush1.bf16.msra.mxu0 0
    %1621 = vmatprep.subr.bf16.mxu0 0
    %1622 = vmatpush1.bf16.msra.mxu0 0
    %1623 = vmatprep.subr.bf16.mxu0 0
    %1624 = vmatpush1.bf16.msra.mxu0 0
    %1625 = vmatprep.subr.bf16.mxu0 0
    %1626 = vmatpush1.bf16.msra.mxu0 0
    %1627 = vmatprep.subr.bf16.mxu0 0
    %1628 = vmatpush1.bf16.msra.mxu0 0
    %1629 = vmatprep.subr.bf16.mxu0 0
    %1630 = vmatpush1.bf16.msra.mxu0 0
    %1631 = vmatprep.subr.bf16.mxu0 0
    %1632 = vmatpush1.bf16.msra.mxu0 0
    %1633 = vmatprep.subr.bf16.mxu0 0
    %1634 = vmatpush1.bf16.msra.mxu0 0
    %1635 = vmatprep.mubr.bf16.mxu0 0
    %1636 = vmatmul.mubr.bf16.gmra.mrb[0].mxu0 %v1580
    %v1637 = vpop.f32.mrb[0].mxu0
    %v1638 = vadd.f32 0.0, %v1637
    %v1639 = vpop.f32.mrb[0].mxu0
    %v1640 = vpop.f32.mrb[0].mxu0
    %v1641 = vadd.f32 0.0, %v1640
    %v1642 = vpop.f32.mrb[0].mxu0
    %1643 = vmatprep.mubr.bf16.mxu0 0
    %1644 = vmatmul.mubr.bf16.gmra.mrb[0].mxu0 %v1583
    %v1645 = vpop.f32.mrb[0].mxu0
    %v1646 = vadd.f32 0.0, %v1645
    %v1647 = vpop.f32.mrb[0].mxu0
    %v1648 = vpop.f32.mrb[0].mxu0
    %v1649 = vadd.f32 0.0, %v1648
    %v1650 = vpop.f32.mrb[0].mxu0
    %1651 = vmatprep.mubr.bf16.mxu0 0
    %1652 = vmatmul.mubr.bf16.gmra.mrb[0].mxu0 %v1586
    %v1653 = vpop.f32.mrb[0].mxu0
    %v1654 = vadd.f32 0.0, %v1653
    %v1655 = vpop.f32.mrb[0].mxu0
    %v1656 = vpop.f32.mrb[0].mxu0
    %v1657 = vadd.f32 0.0, %v1656
    %v1658 = vpop.f32.mrb[0].mxu0
    %1659 = vmatprep.mubr.bf16.mxu0 0
    %1660 = vmatmul.mubr.bf16.gmra.mrb[0].mxu0 %v1589
    %v1661 = vpop.f32.mrb[0].mxu0
    %v1662 = vadd.f32 0.0, %v1661
    %v1663 = vpop.f32.mrb[0].mxu0
    %v1664 = vpop.f32.mrb[0].mxu0
    %v1665 = vadd.f32 0.0, %v1664
    %v1666 = vpop.f32.mrb[0].mxu0
    %1667 = vmatprep.mubr.bf16.mxu0 0
    %1668 = vmatmul.mubr.bf16.gmra.mrb[0].mxu0 %v1592
    %v1669 = vpop.f32.mrb[0].mxu0
    %v1670 = vadd.f32 0.0, %v1669
    %v1671 = vpop.f32.mrb[0].mxu0
    %v1672 = vpop.f32.mrb[0].mxu0
    %v1673 = vadd.f32 0.0, %v1672
    %v1674 = vpop.f32.mrb[0].mxu0
    %1675 = vmatprep.mubr.bf16.mxu0 0
    %1676 = vmatmul.mubr.bf16.gmra.mrb[0].mxu0 %v1595
    %v1677 = vpop.f32.mrb[0].mxu0
    %v1678 = vadd.f32 0.0, %v1677
    %v1679 = vpop.f32.mrb[0].mxu0
    %v1680 = vpop.f32.mrb[0].mxu0
    %v1681 = vadd.f32 0.0, %v1680
    %v1682 = vpop.f32.mrb[0].mxu0
    %1683 = vmatprep.mubr.bf16.mxu0 0
    %1684 = vmatmul.mubr.bf16.gmra.mrb[0].mxu0 %v1598
    %v1685 = vpop.f32.mrb[0].mxu0
    %v1686 = vadd.f32 0.0, %v1685
    %v1687 = vpop.f32.mrb[0].mxu0
    %v1688 = vpop.f32.mrb[0].mxu0
    %v1689 = vadd.f32 0.0, %v1688
    %v1690 = vpop.f32.mrb[0].mxu0
    %1691 = vmatprep.mubr.bf16.mxu0 0
    %1692 = vmatmul.mubr.bf16.gmra.mrb[0].mxu0 %v1601
    %v1693 = vpop.f32.mrb[0].mxu0
    %v1694 = vadd.f32 0.0, %v1693
    %v1695 = vpop.f32.mrb[0].mxu0
    %v1696 = vpop.f32.mrb[0].mxu0
    %v1697 = vadd.f32 0.0, %v1696
    %v1698 = vpop.f32.mrb[0].mxu0
    %1699 = vdwg.mxu0
    %v1700 = vadd.f32 %v1522, %v1638
    %v1701 = vadd.f32 %v1522, %v1641
    %v1702 = vadd.f32 %v1522, %v1646
    %v1703 = vadd.f32 %v1522, %v1649
    %v1704 = vadd.f32 %v1522, %v1654
    %v1705 = vadd.f32 %v1522, %v1657
    %v1706 = vadd.f32 %v1522, %v1662
    %v1707 = vadd.f32 %v1522, %v1665
    %v1708 = vadd.f32 %v1522, %v1670
    %v1709 = vadd.f32 %v1522, %v1673
    %v1710 = vadd.f32 %v1522, %v1678
    %v1711 = vadd.f32 %v1522, %v1681
    %v1712 = vadd.f32 %v1522, %v1686
    %v1713 = vadd.f32 %v1522, %v1689
    %v1714 = vadd.f32 %v1522, %v1694
    %v1715 = vadd.f32 %v1522, %v1697
    %v1716 = vld [vmem:[#allocation3 + $0x8] sm:$0xff]
    %v1717 = vld [vmem:[#allocation3 + $0x10] sm:$0xff]
    %v1718 = vld [vmem:[#allocation3 + $0x18] sm:$0xff]
    %v1719 = vld [vmem:[#allocation3 + $0x20] sm:$0xff]
    %v1720 = vld [vmem:[#allocation3 + $0x28] sm:$0xff]
    %v1721 = vld [vmem:[#allocation3 + $0x30] sm:$0xff]
    %v1722 = vld [vmem:[#allocation3 + $0x38] sm:$0xff]
    %v1723 = vld [vmem:[#allocation3 + $0x40] sm:$0xff]
    %v1724 = vld [vmem:[#allocation3 + $0x48] sm:$0xff]
    %v1725 = vld [vmem:[#allocation3 + $0x50] sm:$0xff]
    %v1726 = vld [vmem:[#allocation3 + $0x58] sm:$0xff]
    %v1727 = vld [vmem:[#allocation3 + $0x60] sm:$0xff]
    %v1728 = vld [vmem:[#allocation3 + $0x68] sm:$0xff]
    %v1729 = vld [vmem:[#allocation3 + $0x70] sm:$0xff]
    %v1730 = vld [vmem:[#allocation3 + $0x78] sm:$0xff]
    %v1731 = vld [vmem:[#allocation3 + $0x80] sm:$0xff]
    %v1732 = vpack.c.bf16 %v1717, %v1716
    %v1733 = vpack.c.bf16 %v1719, %v1718
    %v1734 = vpack.c.bf16 %v1721, %v1720
    %v1735 = vpack.c.bf16 %v1723, %v1722
    %v1736 = vpack.c.bf16 %v1725, %v1724
    %v1737 = vpack.c.bf16 %v1727, %v1726
    %v1738 = vpack.c.bf16 %v1729, %v1728
    %v1739 = vpack.c.bf16 %v1731, %v1730
    %s1740 = scalar_lea.vmem %s5, 32
    %v1741 = vld [vmem:[%s1740] sm:$0xf]
    %v1742 = vld [vmem:[%s1740 + $0x4] sm:$0xf]
    %v1743 = vld [vmem:[%s1740 + $0x8] sm:$0xf]
    %v1744 = vld [vmem:[%s1740 + $0xc] sm:$0xf]
    %v1745 = vld [vmem:[%s1740 + $0x10] sm:$0xf]
    %v1746 = vld [vmem:[%s1740 + $0x14] sm:$0xf]
    %v1747 = vld [vmem:[%s1740 + $0x18] sm:$0xf]
    %v1748 = vld [vmem:[%s1740 + $0x1c] sm:$0xf]
    %v1757 = vunpack.c.l.b16 %v1741
    %v1758 = vunpack.c.l.b16 %v1742
    %v1759 = vunpack.c.l.b16 %v1743
    %v1760 = vunpack.c.l.b16 %v1744
    %v1761 = vunpack.c.l.b16 %v1745
    %v1762 = vunpack.c.l.b16 %v1746
    %v1763 = vunpack.c.l.b16 %v1747
    %v1764 = vunpack.c.l.b16 %v1748
    %v1765 = vpack.c.b16 %v1758, %v1757
    %v1766 = vpack.c.b16 %v1760, %v1759
    %v1767 = vpack.c.b16 %v1762, %v1761
    %v1768 = vpack.c.b16 %v1764, %v1763
    %v1774 = vsel %vm271, %v1732, 0
    %v1777 = vsel %vm271, %v1733, 0
    %v1780 = vsel %vm271, %v1734, 0
    %v1783 = vsel %vm271, %v1735, 0
    %v1786 = vsel %vm271, %v1736, 0
    %v1789 = vsel %vm271, %v1737, 0
    %v1792 = vsel %vm271, %v1738, 0
    %v1795 = vsel %vm271, %v1739, 0
    %1797 = vmatprep.subr.bf16.mxu0 0
    %1798 = vmatpush1.bf16.msra.mxu0 %v1765
    %1799 = vmatprep.subr.bf16.mxu0 0
    %1800 = vmatpush1.bf16.msra.mxu0 %v1766
    %1801 = vmatprep.subr.bf16.mxu0 0
    %1802 = vmatpush1.bf16.msra.mxu0 %v1767
    %1803 = vmatprep.subr.bf16.mxu0 0
    %1804 = vmatpush1.bf16.msra.mxu0 %v1768
    %1805 = vmatprep.subr.bf16.mxu0 0
    %1806 = vmatpush1.bf16.msra.mxu0 0
    %1807 = vmatprep.subr.bf16.mxu0 0
    %1808 = vmatpush1.bf16.msra.mxu0 0
    %1809 = vmatprep.subr.bf16.mxu0 0
    %1810 = vmatpush1.bf16.msra.mxu0 0
    %1811 = vmatprep.subr.bf16.mxu0 0
    %1812 = vmatpush1.bf16.msra.mxu0 0
    %1813 = vmatprep.subr.bf16.mxu0 0
    %1814 = vmatpush1.bf16.msra.mxu0 0
    %1815 = vmatprep.subr.bf16.mxu0 0
    %1816 = vmatpush1.bf16.msra.mxu0 0
    %1817 = vmatprep.subr.bf16.mxu0 0
    %1818 = vmatpush1.bf16.msra.mxu0 0
    %1819 = vmatprep.subr.bf16.mxu0 0
    %1820 = vmatpush1.bf16.msra.mxu0 0
    %1821 = vmatprep.subr.bf16.mxu0 0
    %1822 = vmatpush1.bf16.msra.mxu0 0
    %1823 = vmatprep.subr.bf16.mxu0 0
    %1824 = vmatpush1.bf16.msra.mxu0 0
    %1825 = vmatprep.subr.bf16.mxu0 0
    %1826 = vmatpush1.bf16.msra.mxu0 0
    %1827 = vmatprep.subr.bf16.mxu0 0
    %1828 = vmatpush1.bf16.msra.mxu0 0
    %1829 = vmatprep.mubr.bf16.mxu0 0
    %1830 = vmatmul.mubr.bf16.gmra.mrb[0].mxu0 %v1774
    %v1831 = vpop.f32.mrb[0].mxu0
    %v1832 = vadd.f32 0.0, %v1831
    %v1833 = vpop.f32.mrb[0].mxu0
    %v1834 = vpop.f32.mrb[0].mxu0
    %v1835 = vadd.f32 0.0, %v1834
    %v1836 = vpop.f32.mrb[0].mxu0
    %1837 = vmatprep.mubr.bf16.mxu0 0
    %1838 = vmatmul.mubr.bf16.gmra.mrb[0].mxu0 %v1777
    %v1839 = vpop.f32.mrb[0].mxu0
    %v1840 = vadd.f32 0.0, %v1839
    %v1841 = vpop.f32.mrb[0].mxu0
    %v1842 = vpop.f32.mrb[0].mxu0
    %v1843 = vadd.f32 0.0, %v1842
    %v1844 = vpop.f32.mrb[0].mxu0
    %1845 = vmatprep.mubr.bf16.mxu0 0
    %1846 = vmatmul.mubr.bf16.gmra.mrb[0].mxu0 %v1780
    %v1847 = vpop.f32.mrb[0].mxu0
    %v1848 = vadd.f32 0.0, %v1847
    %v1849 = vpop.f32.mrb[0].mxu0
    %v1850 = vpop.f32.mrb[0].mxu0
    %v1851 = vadd.f32 0.0, %v1850
    %v1852 = vpop.f32.mrb[0].mxu0
    %1853 = vmatprep.mubr.bf16.mxu0 0
    %1854 = vmatmul.mubr.bf16.gmra.mrb[0].mxu0 %v1783
    %v1855 = vpop.f32.mrb[0].mxu0
    %v1856 = vadd.f32 0.0, %v1855
    %v1857 = vpop.f32.mrb[0].mxu0
    %v1858 = vpop.f32.mrb[0].mxu0
    %v1859 = vadd.f32 0.0, %v1858
    %v1860 = vpop.f32.mrb[0].mxu0
    %1861 = vmatprep.mubr.bf16.mxu0 0
    %1862 = vmatmul.mubr.bf16.gmra.mrb[0].mxu0 %v1786
    %v1863 = vpop.f32.mrb[0].mxu0
    %v1864 = vadd.f32 0.0, %v1863
    %v1865 = vpop.f32.mrb[0].mxu0
    %v1866 = vpop.f32.mrb[0].mxu0
    %v1867 = vadd.f32 0.0, %v1866
    %v1868 = vpop.f32.mrb[0].mxu0
    %1869 = vmatprep.mubr.bf16.mxu0 0
    %1870 = vmatmul.mubr.bf16.gmra.mrb[0].mxu0 %v1789
    %v1871 = vpop.f32.mrb[0].mxu0
    %v1872 = vadd.f32 0.0, %v1871
    %v1873 = vpop.f32.mrb[0].mxu0
    %v1874 = vpop.f32.mrb[0].mxu0
    %v1875 = vadd.f32 0.0, %v1874
    %v1876 = vpop.f32.mrb[0].mxu0
    %1877 = vmatprep.mubr.bf16.mxu0 0
    %1878 = vmatmul.mubr.bf16.gmra.mrb[0].mxu0 %v1792
    %v1879 = vpop.f32.mrb[0].mxu0
    %v1880 = vadd.f32 0.0, %v1879
    %v1881 = vpop.f32.mrb[0].mxu0
    %v1882 = vpop.f32.mrb[0].mxu0
    %v1883 = vadd.f32 0.0, %v1882
    %v1884 = vpop.f32.mrb[0].mxu0
    %1885 = vmatprep.mubr.bf16.mxu0 0
    %1886 = vmatmul.mubr.bf16.gmra.mrb[0].mxu0 %v1795
    %v1887 = vpop.f32.mrb[0].mxu0
    %v1888 = vadd.f32 0.0, %v1887
    %v1889 = vpop.f32.mrb[0].mxu0
    %v1890 = vpop.f32.mrb[0].mxu0
    %v1891 = vadd.f32 0.0, %v1890
    %v1892 = vpop.f32.mrb[0].mxu0
    %1893 = vdwg.mxu0
    %v1894 = vadd.f32 %v1700, %v1832
    %v1895 = vadd.f32 %v1701, %v1835
    %v1896 = vadd.f32 %v1702, %v1840
    %v1897 = vadd.f32 %v1703, %v1843
    %v1898 = vadd.f32 %v1704, %v1848
    %v1899 = vadd.f32 %v1705, %v1851
    %v1900 = vadd.f32 %v1706, %v1856
    %v1901 = vadd.f32 %v1707, %v1859
    %v1902 = vadd.f32 %v1708, %v1864
    %v1903 = vadd.f32 %v1709, %v1867
    %v1904 = vadd.f32 %v1710, %v1872
    %v1905 = vadd.f32 %v1711, %v1875
    %v1906 = vadd.f32 %v1712, %v1880
    %v1907 = vadd.f32 %v1713, %v1883
    %v1908 = vadd.f32 %v1714, %v1888
    %v1909 = vadd.f32 %v1715, %v1891
    %v1910 = vld [vmem:[#allocation3 + $0x10] sm:$0xff]
    %v1911 = vld [vmem:[#allocation3 + $0x18] sm:$0xff]
    %v1912 = vld [vmem:[#allocation3 + $0x20] sm:$0xff]
    %v1913 = vld [vmem:[#allocation3 + $0x28] sm:$0xff]
    %v1914 = vld [vmem:[#allocation3 + $0x30] sm:$0xff]
    %v1915 = vld [vmem:[#allocation3 + $0x38] sm:$0xff]
    %v1916 = vld [vmem:[#allocation3 + $0x40] sm:$0xff]
    %v1917 = vld [vmem:[#allocation3 + $0x48] sm:$0xff]
    %v1918 = vld [vmem:[#allocation3 + $0x50] sm:$0xff]
    %v1919 = vld [vmem:[#allocation3 + $0x58] sm:$0xff]
    %v1920 = vld [vmem:[#allocation3 + $0x60] sm:$0xff]
    %v1921 = vld [vmem:[#allocation3 + $0x68] sm:$0xff]
    %v1922 = vld [vmem:[#allocation3 + $0x70] sm:$0xff]
    %v1923 = vld [vmem:[#allocation3 + $0x78] sm:$0xff]
    %v1924 = vld [vmem:[#allocation3 + $0x80] sm:$0xff]
    %v1925 = vld [vmem:[#allocation3 + $0x88] sm:$0xff]
    %v1926 = vpack.c.bf16 %v1911, %v1910
    %v1927 = vpack.c.bf16 %v1913, %v1912
    %v1928 = vpack.c.bf16 %v1915, %v1914
    %v1929 = vpack.c.bf16 %v1917, %v1916
    %v1930 = vpack.c.bf16 %v1919, %v1918
    %v1931 = vpack.c.bf16 %v1921, %v1920
    %v1932 = vpack.c.bf16 %v1923, %v1922
    %v1933 = vpack.c.bf16 %v1925, %v1924
    %s1934 = scalar_lea.vmem %s5, 64
    %v1935 = vld [vmem:[%s1934] sm:$0xf]
    %v1936 = vld [vmem:[%s1934 + $0x4] sm:$0xf]
    %v1937 = vld [vmem:[%s1934 + $0x8] sm:$0xf]
    %v1938 = vld [vmem:[%s1934 + $0xc] sm:$0xf]
    %v1939 = vld [vmem:[%s1934 + $0x10] sm:$0xf]
    %v1940 = vld [vmem:[%s1934 + $0x14] sm:$0xf]
    %v1941 = vld [vmem:[%s1934 + $0x18] sm:$0xf]
    %v1942 = vld [vmem:[%s1934 + $0x1c] sm:$0xf]
    %v1951 = vunpack.c.l.b16 %v1935
    %v1952 = vunpack.c.l.b16 %v1936
    %v1953 = vunpack.c.l.b16 %v1937
    %v1954 = vunpack.c.l.b16 %v1938
    %v1955 = vunpack.c.l.b16 %v1939
    %v1956 = vunpack.c.l.b16 %v1940
    %v1957 = vunpack.c.l.b16 %v1941
    %v1958 = vunpack.c.l.b16 %v1942
    %v1959 = vpack.c.b16 %v1952, %v1951
    %v1960 = vpack.c.b16 %v1954, %v1953
    %v1961 = vpack.c.b16 %v1956, %v1955
    %v1962 = vpack.c.b16 %v1958, %v1957
    %v1968 = vsel %vm271, %v1926, 0
    %v1971 = vsel %vm271, %v1927, 0
    %v1974 = vsel %vm271, %v1928, 0
    %v1977 = vsel %vm271, %v1929, 0
    %v1980 = vsel %vm271, %v1930, 0
    %v1983 = vsel %vm271, %v1931, 0
    %v1986 = vsel %vm271, %v1932, 0
    %v1989 = vsel %vm271, %v1933, 0
    %1991 = vmatprep.subr.bf16.mxu0 0
    %1992 = vmatpush1.bf16.msra.mxu0 %v1959
    %1993 = vmatprep.subr.bf16.mxu0 0
    %1994 = vmatpush1.bf16.msra.mxu0 %v1960
    %1995 = vmatprep.subr.bf16.mxu0 0
    %1996 = vmatpush1.bf16.msra.mxu0 %v1961
    %1997 = vmatprep.subr.bf16.mxu0 0
    %1998 = vmatpush1.bf16.msra.mxu0 %v1962
    %1999 = vmatprep.subr.bf16.mxu0 0
    %2000 = vmatpush1.bf16.msra.mxu0 0
    %2001 = vmatprep.subr.bf16.mxu0 0
    %2002 = vmatpush1.bf16.msra.mxu0 0
    %2003 = vmatprep.subr.bf16.mxu0 0
    %2004 = vmatpush1.bf16.msra.mxu0 0
    %2005 = vmatprep.subr.bf16.mxu0 0
    %2006 = vmatpush1.bf16.msra.mxu0 0
    %2007 = vmatprep.subr.bf16.mxu0 0
    %2008 = vmatpush1.bf16.msra.mxu0 0
    %2009 = vmatprep.subr.bf16.mxu0 0
    %2010 = vmatpush1.bf16.msra.mxu0 0
    %2011 = vmatprep.subr.bf16.mxu0 0
    %2012 = vmatpush1.bf16.msra.mxu0 0
    %2013 = vmatprep.subr.bf16.mxu0 0
    %2014 = vmatpush1.bf16.msra.mxu0 0
    %2015 = vmatprep.subr.bf16.mxu0 0
    %2016 = vmatpush1.bf16.msra.mxu0 0
    %2017 = vmatprep.subr.bf16.mxu0 0
    %2018 = vmatpush1.bf16.msra.mxu0 0
    %2019 = vmatprep.subr.bf16.mxu0 0
    %2020 = vmatpush1.bf16.msra.mxu0 0
    %2021 = vmatprep.subr.bf16.mxu0 0
    %2022 = vmatpush1.bf16.msra.mxu0 0
    %2023 = vmatprep.mubr.bf16.mxu0 0
    %2024 = vmatmul.mubr.bf16.gmra.mrb[0].mxu0 %v1968
    %v2025 = vpop.f32.mrb[0].mxu0
    %v2026 = vadd.f32 0.0, %v2025
    %v2027 = vpop.f32.mrb[0].mxu0
    %v2028 = vpop.f32.mrb[0].mxu0
    %v2029 = vadd.f32 0.0, %v2028
    %v2030 = vpop.f32.mrb[0].mxu0
    %2031 = vmatprep.mubr.bf16.mxu0 0
    %2032 = vmatmul.mubr.bf16.gmra.mrb[0].mxu0 %v1971
    %v2033 = vpop.f32.mrb[0].mxu0
    %v2034 = vadd.f32 0.0, %v2033
    %v2035 = vpop.f32.mrb[0].mxu0
    %v2036 = vpop.f32.mrb[0].mxu0
    %v2037 = vadd.f32 0.0, %v2036
    %v2038 = vpop.f32.mrb[0].mxu0
    %2039 = vmatprep.mubr.bf16.mxu0 0
    %2040 = vmatmul.mubr.bf16.gmra.mrb[0].mxu0 %v1974
    %v2041 = vpop.f32.mrb[0].mxu0
    %v2042 = vadd.f32 0.0, %v2041
    %v2043 = vpop.f32.mrb[0].mxu0
    %v2044 = vpop.f32.mrb[0].mxu0
    %v2045 = vadd.f32 0.0, %v2044
    %v2046 = vpop.f32.mrb[0].mxu0
    %2047 = vmatprep.mubr.bf16.mxu0 0
    %2048 = vmatmul.mubr.bf16.gmra.mrb[0].mxu0 %v1977
    %v2049 = vpop.f32.mrb[0].mxu0
    %v2050 = vadd.f32 0.0, %v2049
    %v2051 = vpop.f32.mrb[0].mxu0
    %v2052 = vpop.f32.mrb[0].mxu0
    %v2053 = vadd.f32 0.0, %v2052
    %v2054 = vpop.f32.mrb[0].mxu0
    %2055 = vmatprep.mubr.bf16.mxu0 0
    %2056 = vmatmul.mubr.bf16.gmra.mrb[0].mxu0 %v1980
    %v2057 = vpop.f32.mrb[0].mxu0
    %v2058 = vadd.f32 0.0, %v2057
    %v2059 = vpop.f32.mrb[0].mxu0
    %v2060 = vpop.f32.mrb[0].mxu0
    %v2061 = vadd.f32 0.0, %v2060
    %v2062 = vpop.f32.mrb[0].mxu0
    %2063 = vmatprep.mubr.bf16.mxu0 0
    %2064 = vmatmul.mubr.bf16.gmra.mrb[0].mxu0 %v1983
    %v2065 = vpop.f32.mrb[0].mxu0
    %v2066 = vadd.f32 0.0, %v2065
    %v2067 = vpop.f32.mrb[0].mxu0
    %v2068 = vpop.f32.mrb[0].mxu0
    %v2069 = vadd.f32 0.0, %v2068
    %v2070 = vpop.f32.mrb[0].mxu0
    %2071 = vmatprep.mubr.bf16.mxu0 0
    %2072 = vmatmul.mubr.bf16.gmra.mrb[0].mxu0 %v1986
    %v2073 = vpop.f32.mrb[0].mxu0
    %v2074 = vadd.f32 0.0, %v2073
    %v2075 = vpop.f32.mrb[0].mxu0
    %v2076 = vpop.f32.mrb[0].mxu0
    %v2077 = vadd.f32 0.0, %v2076
    %v2078 = vpop.f32.mrb[0].mxu0
    %2079 = vmatprep.mubr.bf16.mxu0 0
    %2080 = vmatmul.mubr.bf16.gmra.mrb[0].mxu0 %v1989
    %v2081 = vpop.f32.mrb[0].mxu0
    %v2082 = vadd.f32 0.0, %v2081
    %v2083 = vpop.f32.mrb[0].mxu0
    %v2084 = vpop.f32.mrb[0].mxu0
    %v2085 = vadd.f32 0.0, %v2084
    %v2086 = vpop.f32.mrb[0].mxu0
    %2087 = vdwg.mxu0
    %v2088 = vadd.f32 %v1894, %v2026
    %v2089 = vadd.f32 %v1895, %v2029
    %v2090 = vadd.f32 %v1896, %v2034
    %v2091 = vadd.f32 %v1897, %v2037
    %v2092 = vadd.f32 %v1898, %v2042
    %v2093 = vadd.f32 %v1899, %v2045
    %v2094 = vadd.f32 %v1900, %v2050
    %v2095 = vadd.f32 %v1901, %v2053
    %v2096 = vadd.f32 %v1902, %v2058
    %v2097 = vadd.f32 %v1903, %v2061
    %v2098 = vadd.f32 %v1904, %v2066
    %v2099 = vadd.f32 %v1905, %v2069
    %v2100 = vadd.f32 %v1906, %v2074
    %v2101 = vadd.f32 %v1907, %v2077
    %v2102 = vadd.f32 %v1908, %v2082
    %v2103 = vadd.f32 %v1909, %v2085
    %v2104 = vld [vmem:[%s7] sm:$0x1]
    %v2106 = vlaneseq
    %v2107 = vshrl.u32 %v2106, 7
    %v2108 = vsub.s32 0, %v2107
    %v2109 = vrot.slane %v2104, %v2108
    %v2111 = vmul.f32 %v2088, %v2109
    %v2112 = vmul.f32 %v2089, %v2109
    %v2113 = vmul.f32 %v2090, %v2109
    %v2114 = vmul.f32 %v2091, %v2109
    %v2115 = vmul.f32 %v2092, %v2109
    %v2116 = vmul.f32 %v2093, %v2109
    %v2117 = vmul.f32 %v2094, %v2109
    %v2118 = vmul.f32 %v2095, %v2109
    %v2119 = vmul.f32 %v2096, %v2109
    %v2120 = vmul.f32 %v2097, %v2109
    %v2121 = vmul.f32 %v2098, %v2109
    %v2122 = vmul.f32 %v2099, %v2109
    %v2123 = vmul.f32 %v2100, %v2109
    %v2124 = vmul.f32 %v2101, %v2109
    %v2125 = vmul.f32 %v2102, %v2109
    %v2126 = vmul.f32 %v2103, %v2109
    %v2127 = vld [vmem:[%s8] sm:$0x1]
    %v2129 = vlaneseq
    %v2130 = vshrl.u32 %v2129, 7
    %v2131 = vsub.s32 0, %v2130
    %v2132 = vrot.slane %v2127, %v2131
    %v2134 = vadd.f32 %v2111, %v2132
    %v2135 = vadd.f32 %v2112, %v2132
    %v2136 = vadd.f32 %v2113, %v2132
    %v2137 = vadd.f32 %v2114, %v2132
    %v2138 = vadd.f32 %v2115, %v2132
    %v2139 = vadd.f32 %v2116, %v2132
    %v2140 = vadd.f32 %v2117, %v2132
    %v2141 = vadd.f32 %v2118, %v2132
    %v2142 = vadd.f32 %v2119, %v2132
    %v2143 = vadd.f32 %v2120, %v2132
    %v2144 = vadd.f32 %v2121, %v2132
    %v2145 = vadd.f32 %v2122, %v2132
    %v2146 = vadd.f32 %v2123, %v2132
    %v2147 = vadd.f32 %v2124, %v2132
    %v2148 = vadd.f32 %v2125, %v2132
    %v2149 = vadd.f32 %v2126, %v2132
    %v2150 = vmax.f32 %v2134, 0.0
    %v2151 = vmax.f32 %v2135, 0.0
    %v2152 = vmax.f32 %v2136, 0.0
    %v2153 = vmax.f32 %v2137, 0.0
    %v2154 = vmax.f32 %v2138, 0.0
    %v2155 = vmax.f32 %v2139, 0.0
    %v2156 = vmax.f32 %v2140, 0.0
    %v2157 = vmax.f32 %v2141, 0.0
    %v2158 = vmax.f32 %v2142, 0.0
    %v2159 = vmax.f32 %v2143, 0.0
    %v2160 = vmax.f32 %v2144, 0.0
    %v2161 = vmax.f32 %v2145, 0.0
    %v2162 = vmax.f32 %v2146, 0.0
    %v2163 = vmax.f32 %v2147, 0.0
    %v2164 = vmax.f32 %v2148, 0.0
    %v2165 = vmax.f32 %v2149, 0.0
    %v2166 = vmax.f32 %v2150, %v2151
    %2167 = vst.msk [vmem:[#allocation4] sm:$0xff] %vm132, %v2166
    %2169 = vrot.lane.b32.xlu0 %v2166, 16
    %v2170 = vpop.permute.xlu0 %2169
    %vm2172 = vcmask 261248
    %2173 = vst.msk [vmem:[#allocation4 + $0x38] sm:$0xff] %vm2172, %v2170
    %v2174 = vmax.f32 %v2152, %v2153
    %2175 = vst.msk [vmem:[#allocation4 + $0x8] sm:$0xff] %vm132, %v2174
    %2177 = vrot.lane.b32.xlu0 %v2174, 16
    %v2178 = vpop.permute.xlu0 %2177
    %2180 = vst.msk [vmem:[#allocation4 + $0x30] sm:$0xff] %vm2172, %v2178
    %v2181 = vmax.f32 %v2154, %v2155
    %2182 = vst.msk [vmem:[#allocation4 + $0x10] sm:$0xff] %vm132, %v2181
    %2184 = vrot.lane.b32.xlu0 %v2181, 16
    %v2185 = vpop.permute.xlu0 %2184
    %2187 = vst.msk [vmem:[#allocation4 + $0x28] sm:$0xff] %vm2172, %v2185
    %v2188 = vmax.f32 %v2156, %v2157
    %2189 = vst.msk [vmem:[#allocation4 + $0x18] sm:$0xff] %vm132, %v2188
    %2191 = vrot.lane.b32.xlu0 %v2188, 16
    %v2192 = vpop.permute.xlu0 %2191
    %2194 = vst.msk [vmem:[#allocation4 + $0x20] sm:$0xff] %vm2172, %v2192
    %v2195 = vmax.f32 %v2158, %v2159
    %2196 = vst.msk [vmem:[#allocation4 + $0x20] sm:$0xff] %vm132, %v2195
    %2198 = vrot.lane.b32.xlu0 %v2195, 16
    %v2199 = vpop.permute.xlu0 %2198
    %2201 = vst.msk [vmem:[#allocation4 + $0x18] sm:$0xff] %vm2172, %v2199
    %v2202 = vmax.f32 %v2160, %v2161
    %2203 = vst.msk [vmem:[#allocation4 + $0x28] sm:$0xff] %vm132, %v2202
    %2205 = vrot.lane.b32.xlu0 %v2202, 16
    %v2206 = vpop.permute.xlu0 %2205
    %2208 = vst.msk [vmem:[#allocation4 + $0x10] sm:$0xff] %vm2172, %v2206
    %v2209 = vmax.f32 %v2162, %v2163
    %2210 = vst.msk [vmem:[#allocation4 + $0x30] sm:$0xff] %vm132, %v2209
    %2212 = vrot.lane.b32.xlu0 %v2209, 16
    %v2213 = vpop.permute.xlu0 %2212
    %2215 = vst.msk [vmem:[#allocation4 + $0x8] sm:$0xff] %vm2172, %v2213
    %v2216 = vmax.f32 %v2164, %v2165
    %2217 = vst.msk [vmem:[#allocation4 + $0x38] sm:$0xff] %vm132, %v2216
    %2219 = vrot.lane.b32.xlu0 %v2216, 16
    %v2220 = vpop.permute.xlu0 %2219
    %2222 = vst.msk [vmem:[#allocation4] sm:$0xff] %vm2172, %v2220
    %v2223 = vld [vmem:[#allocation4] sm:$0xff]
    %v2224 = vld [vmem:[#allocation4 + $0x8] sm:$0xff]
    %v2225 = vld [vmem:[#allocation4 + $0x10] sm:$0xff]
    %v2226 = vld [vmem:[#allocation4 + $0x18] sm:$0xff]
    %v2227 = vld [vmem:[#allocation4 + $0x20] sm:$0xff]
    %v2228 = vld [vmem:[#allocation4 + $0x28] sm:$0xff]
    %v2229 = vld [vmem:[#allocation4 + $0x30] sm:$0xff]
    %v2230 = vld [vmem:[#allocation4 + $0x38] sm:$0xff]
    %v2231 = vpack.c.bf16 %v2224, %v2223
    %v2232 = vpack.c.bf16 %v2226, %v2225
    %v2233 = vpack.c.bf16 %v2228, %v2227
    %v2234 = vpack.c.bf16 %v2230, %v2229
    %v2235 = vld [vmem:[%s9] sm:$0xff]
    %v2236 = vld [vmem:[%s9 + $0x8] sm:$0xff]
    %v2237 = vld [vmem:[%s9 + $0x10] sm:$0xff]
    %v2238 = vld [vmem:[%s9 + $0x18] sm:$0xff]
    %v2239 = vld [vmem:[%s10] sm:$0x3]
    %v2241 = vlaneseq
    %v2242 = vshrl.u32 %v2241, 7
    %v2243 = vsub.s32 0, %v2242
    %v2244 = vrot.slane %v2239, %v2243
    %v2245 = vlaneseq
    %v2246 = vshrl.u32 %v2245, 7
    %v2247 = vsub.s32 1, %v2246
    %v2248 = vrot.slane %v2239, %v2247
    %v2255 = vunpack.c.l.b16 %v2235
    %v2256 = vunpack.c.h.b16 %v2235
    %v2257 = vunpack.c.l.b16 %v2236
    %v2258 = vunpack.c.h.b16 %v2236
    %v2259 = vunpack.c.l.b16 %v2237
    %v2260 = vunpack.c.h.b16 %v2237
    %v2261 = vunpack.c.l.b16 %v2238
    %v2262 = vunpack.c.h.b16 %v2238
    %v2263 = vpack.c.b16 %v2257, %v2255
    %v2264 = vpack.c.b16 %v2258, %v2256
    %v2265 = vpack.c.b16 %v2261, %v2259
    %v2266 = vpack.c.b16 %v2262, %v2260
    %v2272 = vsel %vm431, %v2231, 0
    %v2275 = vsel %vm431, %v2232, 0
    %v2278 = vsel %vm431, %v2233, 0
    %v2281 = vsel %vm431, %v2234, 0
    %2283 = vmatprep.subr.bf16.mxu0 %v2264
    %2284 = vmatpush1.bf16.msra.mxu0 %v2263
    %2285 = vmatprep.subr.bf16.mxu0 %v2266
    %2286 = vmatpush1.bf16.msra.mxu0 %v2265
    %2287 = vmatprep.subr.bf16.mxu0 0
    %2288 = vmatpush1.bf16.msra.mxu0 0
    %2289 = vmatprep.subr.bf16.mxu0 0
    %2290 = vmatpush1.bf16.msra.mxu0 0
    %2291 = vmatprep.subr.bf16.mxu0 0
    %2292 = vmatpush1.bf16.msra.mxu0 0
    %2293 = vmatprep.subr.bf16.mxu0 0
    %2294 = vmatpush1.bf16.msra.mxu0 0
    %2295 = vmatprep.subr.bf16.mxu0 0
    %2296 = vmatpush1.bf16.msra.mxu0 0
    %2297 = vmatprep.subr.bf16.mxu0 0
    %2298 = vmatpush1.bf16.msra.mxu0 0
    %2299 = vmatprep.subr.bf16.mxu0 0
    %2300 = vmatpush1.bf16.msra.mxu0 0
    %2301 = vmatprep.subr.bf16.mxu0 0
    %2302 = vmatpush1.bf16.msra.mxu0 0
    %2303 = vmatprep.subr.bf16.mxu0 0
    %2304 = vmatpush1.bf16.msra.mxu0 0
    %2305 = vmatprep.subr.bf16.mxu0 0
    %2306 = vmatpush1.bf16.msra.mxu0 0
    %2307 = vmatprep.subr.bf16.mxu0 0
    %2308 = vmatpush1.bf16.msra.mxu0 0
    %2309 = vmatprep.subr.bf16.mxu0 0
    %2310 = vmatpush1.bf16.msra.mxu0 0
    %2311 = vmatprep.subr.bf16.mxu0 0
    %2312 = vmatpush1.bf16.msra.mxu0 0
    %2313 = vmatprep.subr.bf16.mxu0 0
    %2314 = vmatpush1.bf16.msra.mxu0 0
    %2315 = vmatprep.mubr.bf16.mxu0 0
    %2316 = vmatmul.mubr.bf16.gmra.mrb[0].mxu0 %v2272
    %v2317 = vpop.f32.mrb[0].mxu0
    %v2318 = vadd.f32 %v2244, %v2317
    %v2319 = vpop.f32.mrb[0].mxu0
    %v2320 = vadd.f32 %v2248, %v2319
    %v2321 = vpop.f32.mrb[0].mxu0
    %v2322 = vadd.f32 %v2244, %v2321
    %v2323 = vpop.f32.mrb[0].mxu0
    %v2324 = vadd.f32 %v2248, %v2323
    %2325 = vmatprep.mubr.bf16.mxu0 0
    %2326 = vmatmul.mubr.bf16.gmra.mrb[0].mxu0 %v2275
    %v2327 = vpop.f32.mrb[0].mxu0
    %v2328 = vadd.f32 %v2244, %v2327
    %v2329 = vpop.f32.mrb[0].mxu0
    %v2330 = vadd.f32 %v2248, %v2329
    %v2331 = vpop.f32.mrb[0].mxu0
    %v2332 = vadd.f32 %v2244, %v2331
    %v2333 = vpop.f32.mrb[0].mxu0
    %v2334 = vadd.f32 %v2248, %v2333
    %2335 = vmatprep.mubr.bf16.mxu0 0
    %2336 = vmatmul.mubr.bf16.gmra.mrb[0].mxu0 %v2278
    %v2337 = vpop.f32.mrb[0].mxu0
    %v2338 = vadd.f32 %v2244, %v2337
    %v2339 = vpop.f32.mrb[0].mxu0
    %v2340 = vadd.f32 %v2248, %v2339
    %v2341 = vpop.f32.mrb[0].mxu0
    %v2342 = vadd.f32 %v2244, %v2341
    %v2343 = vpop.f32.mrb[0].mxu0
    %v2344 = vadd.f32 %v2248, %v2343
    %2345 = vmatprep.mubr.bf16.mxu0 0
    %2346 = vmatmul.mubr.bf16.gmra.mrb[0].mxu0 %v2281
    %v2347 = vpop.f32.mrb[0].mxu0
    %v2348 = vadd.f32 %v2244, %v2347
    %v2349 = vpop.f32.mrb[0].mxu0
    %v2350 = vadd.f32 %v2248, %v2349
    %v2351 = vpop.f32.mrb[0].mxu0
    %v2352 = vadd.f32 %v2244, %v2351
    %v2353 = vpop.f32.mrb[0].mxu0
    %v2354 = vadd.f32 %v2248, %v2353
    %2355 = vdwg.mxu0
    %2356 = vst [vmem:[#allocation5] sm:$0xff] %v2318
    %2357 = vst.msk [vmem:[#allocation5 + $0x8] sm:$0xff] %vm271, %v2320
    %2358 = vst [vmem:[#allocation5 + $0x10] sm:$0xff] %v2322
    %2359 = vst.msk [vmem:[#allocation5 + $0x18] sm:$0xff] %vm271, %v2324
    %2360 = vst [vmem:[#allocation5 + $0x20] sm:$0xff] %v2328
    %2361 = vst.msk [vmem:[#allocation5 + $0x28] sm:$0xff] %vm271, %v2330
    %2362 = vst [vmem:[#allocation5 + $0x30] sm:$0xff] %v2332
    %2363 = vst.msk [vmem:[#allocation5 + $0x38] sm:$0xff] %vm271, %v2334
    %2364 = vst [vmem:[#allocation5 + $0x40] sm:$0xff] %v2338
    %2365 = vst.msk [vmem:[#allocation5 + $0x48] sm:$0xff] %vm271, %v2340
    %2366 = vst [vmem:[#allocation5 + $0x50] sm:$0xff] %v2342
    %2367 = vst.msk [vmem:[#allocation5 + $0x58] sm:$0xff] %vm271, %v2344
    %2368 = vst [vmem:[#allocation5 + $0x60] sm:$0xff] %v2348
    %2369 = vst.msk [vmem:[#allocation5 + $0x68] sm:$0xff] %vm271, %v2350
    %2370 = vst [vmem:[#allocation5 + $0x70] sm:$0xff] %v2352
    %2371 = vst.msk [vmem:[#allocation5 + $0x78] sm:$0xff] %vm271, %v2354
    %v2372 = vld [vmem:[%s11] sm:$0xff]
    %v2373 = vld [vmem:[%s11 + $0x8] sm:$0xff]
    %v2374 = vld [vmem:[%s11 + $0x10] sm:$0xff]
    %v2375 = vld [vmem:[%s11 + $0x18] sm:$0xff]
    %v2376 = vld [vmem:[%s11 + $0x20] sm:$0xff]
    %v2377 = vld [vmem:[%s11 + $0x28] sm:$0xff]
    %v2378 = vld [vmem:[%s11 + $0x30] sm:$0xff]
    %v2379 = vld [vmem:[%s11 + $0x38] sm:$0xff]
    %v2380 = vld [vmem:[%s12] sm:$0x3]
    %v2381 = vld [vmem:[#allocation5] sm:$0xff]
    %v2382 = vld [vmem:[#allocation5 + $0x8] sm:$0xff]
    %v2384 = vlaneseq
    %v2385 = vshrl.u32 %v2384, 7
    %v2386 = vsub.s32 0, %v2385
    %v2387 = vrot.slane %v2380, %v2386
    %v2388 = vlaneseq
    %v2389 = vshrl.u32 %v2388, 7
    %v2390 = vsub.s32 1, %v2389
    %v2391 = vrot.slane %v2380, %v2390
    %v2402 = vunpack.c.l.b16 %v2372
    %v2403 = vunpack.c.h.b16 %v2372
    %v2404 = vunpack.c.l.b16 %v2373
    %v2405 = vunpack.c.h.b16 %v2373
    %v2406 = vunpack.c.l.b16 %v2374
    %v2407 = vunpack.c.h.b16 %v2374
    %v2408 = vunpack.c.l.b16 %v2375
    %v2409 = vunpack.c.h.b16 %v2375
    %v2410 = vunpack.c.l.b16 %v2376
    %v2411 = vunpack.c.h.b16 %v2376
    %v2412 = vunpack.c.l.b16 %v2377
    %v2413 = vunpack.c.h.b16 %v2377
    %v2414 = vunpack.c.l.b16 %v2378
    %v2415 = vunpack.c.h.b16 %v2378
    %v2416 = vunpack.c.l.b16 %v2379
    %v2417 = vunpack.c.h.b16 %v2379
    %v2418 = vpack.c.b16 %v2404, %v2402
    %v2419 = vpack.c.b16 %v2405, %v2403
    %v2420 = vpack.c.b16 %v2408, %v2406
    %v2421 = vpack.c.b16 %v2409, %v2407
    %v2422 = vpack.c.b16 %v2412, %v2410
    %v2423 = vpack.c.b16 %v2413, %v2411
    %v2424 = vpack.c.b16 %v2416, %v2414
    %v2425 = vpack.c.b16 %v2417, %v2415
    %2434 = vmatprep.subr.bf16.mxu0 %v2419
    %2435 = vmatpush1.bf16.msra.mxu0 %v2418
    %2436 = vmatprep.subr.bf16.mxu0 %v2421
    %2437 = vmatpush1.bf16.msra.mxu0 %v2420
    %2438 = vmatprep.subr.bf16.mxu0 %v2423
    %2439 = vmatpush1.bf16.msra.mxu0 %v2422
    %2440 = vmatprep.subr.bf16.mxu0 %v2425
    %2441 = vmatpush1.bf16.msra.mxu0 %v2424
    %2442 = vmatprep.subr.bf16.mxu0 0
    %2443 = vmatpush1.bf16.msra.mxu0 0
    %2444 = vmatprep.subr.bf16.mxu0 0
    %2445 = vmatpush1.bf16.msra.mxu0 0
    %2446 = vmatprep.subr.bf16.mxu0 0
    %2447 = vmatpush1.bf16.msra.mxu0 0
    %2448 = vmatprep.subr.bf16.mxu0 0
    %2449 = vmatpush1.bf16.msra.mxu0 0
    %2450 = vmatprep.subr.bf16.mxu0 0
    %2451 = vmatpush1.bf16.msra.mxu0 0
    %2452 = vmatprep.subr.bf16.mxu0 0
    %2453 = vmatpush1.bf16.msra.mxu0 0
    %2454 = vmatprep.subr.bf16.mxu0 0
    %2455 = vmatpush1.bf16.msra.mxu0 0
    %2456 = vmatprep.subr.bf16.mxu0 0
    %2457 = vmatpush1.bf16.msra.mxu0 0
    %2458 = vmatprep.subr.bf16.mxu0 0
    %2459 = vmatpush1.bf16.msra.mxu0 0
    %2460 = vmatprep.subr.bf16.mxu0 0
    %2461 = vmatpush1.bf16.msra.mxu0 0
    %2462 = vmatprep.subr.bf16.mxu0 0
    %2463 = vmatpush1.bf16.msra.mxu0 0
    %2464 = vmatprep.subr.bf16.mxu0 0
    %2465 = vmatpush1.bf16.msra.mxu0 0
    %2466 = vmatprep.mubr.bf16.mxu0 0
    %2467 = vmatmul.mubr.bf16.gmra.mrb[0].mxu0 %v368
    %v2468 = vpop.f32.mrb[0].mxu0
    %v2469 = vadd.f32 %v2387, %v2468
    %v2470 = vpop.f32.mrb[0].mxu0
    %v2471 = vadd.f32 %v2391, %v2470
    %v2472 = vpop.f32.mrb[0].mxu0
    %v2473 = vpop.f32.mrb[0].mxu0
    %2474 = vdwg.mxu0
    %v2475 = vadd.f32 %v2381, %v2469
    %v2476 = vmul.f32 %v2475, 0.5
    %v2477 = vtanh.pop %v2476
    %v2478 = vmul.f32 %v2477, 0.5
    %v2479 = vadd.f32 %v2478, 0.5
    %v2480 = vmul.f32 %v2479, %v2471
    %v2481 = vadd.f32 %v2382, %v2480
    %v2482 = vtanh.pop %v2481
    %v2483 = vsub.f32 1.0, %v2479
    %2485 = vrot.lane.b32.xlu0 %v2482, 64
    %v2486 = vpop.permute.xlu0 %2485
    %v2488 = vmul.f32 %v2483, %v2486
    %v2489 = vmul.f32 %v2479, 0.0
    %v2490 = vadd.f32 %v2488, %v2489
    %v2491 = vld [vmem:[#allocation5 + $0x10] sm:$0xff]
    %v2492 = vld [vmem:[#allocation5 + $0x18] sm:$0xff]
    %v2493 = vpack.c.bf16 %v2490, %v2490
    %2495 = vrot.lane.b32.xlu0 %v2493, 64
    %v2496 = vpop.permute.xlu0 %2495
    %v2498 = vsel %vm271, %v2496, 0
    %2500 = vmatprep.subr.bf16.mxu0 %v2419
    %2501 = vmatpush1.bf16.msra.mxu0 %v2418
    %2502 = vmatprep.subr.bf16.mxu0 %v2421
    %2503 = vmatpush1.bf16.msra.mxu0 %v2420
    %2504 = vmatprep.subr.bf16.mxu0 %v2423
    %2505 = vmatpush1.bf16.msra.mxu0 %v2422
    %2506 = vmatprep.subr.bf16.mxu0 %v2425
    %2507 = vmatpush1.bf16.msra.mxu0 %v2424
    %2508 = vmatprep.subr.bf16.mxu0 0
    %2509 = vmatpush1.bf16.msra.mxu0 0
    %2510 = vmatprep.subr.bf16.mxu0 0
    %2511 = vmatpush1.bf16.msra.mxu0 0
    %2512 = vmatprep.subr.bf16.mxu0 0
    %2513 = vmatpush1.bf16.msra.mxu0 0
    %2514 = vmatprep.subr.bf16.mxu0 0
    %2515 = vmatpush1.bf16.msra.mxu0 0
    %2516 = vmatprep.subr.bf16.mxu0 0
    %2517 = vmatpush1.bf16.msra.mxu0 0
    %2518 = vmatprep.subr.bf16.mxu0 0
    %2519 = vmatpush1.bf16.msra.mxu0 0
    %2520 = vmatprep.subr.bf16.mxu0 0
    %2521 = vmatpush1.bf16.msra.mxu0 0
    %2522 = vmatprep.subr.bf16.mxu0 0
    %2523 = vmatpush1.bf16.msra.mxu0 0
    %2524 = vmatprep.subr.bf16.mxu0 0
    %2525 = vmatpush1.bf16.msra.mxu0 0
    %2526 = vmatprep.subr.bf16.mxu0 0
    %2527 = vmatpush1.bf16.msra.mxu0 0
    %2528 = vmatprep.subr.bf16.mxu0 0
    %2529 = vmatpush1.bf16.msra.mxu0 0
    %2530 = vmatprep.subr.bf16.mxu0 0
    %2531 = vmatpush1.bf16.msra.mxu0 0
    %2532 = vmatprep.mubr.bf16.mxu0 0
    %2533 = vmatmul.mubr.bf16.gmra.mrb[0].mxu0 %v2498
    %v2534 = vpop.f32.mrb[0].mxu0
    %v2535 = vadd.f32 %v2387, %v2534
    %v2536 = vpop.f32.mrb[0].mxu0
    %v2537 = vadd.f32 %v2391, %v2536
    %v2538 = vpop.f32.mrb[0].mxu0
    %v2539 = vpop.f32.mrb[0].mxu0
    %2540 = vdwg.mxu0
    %v2541 = vadd.f32 %v2491, %v2535
    %v2542 = vmul.f32 %v2541, 0.5
    %v2543 = vtanh.pop %v2542
    %v2544 = vmul.f32 %v2543, 0.5
    %v2545 = vadd.f32 %v2544, 0.5
    %v2546 = vmul.f32 %v2545, %v2537
    %v2547 = vadd.f32 %v2492, %v2546
    %v2548 = vtanh.pop %v2547
    %v2549 = vsub.f32 1.0, %v2545
    %2551 = vrot.lane.b32.xlu0 %v2548, 64
    %v2552 = vpop.permute.xlu0 %2551
    %v2554 = vmul.f32 %v2549, %v2552
    %v2555 = vmul.f32 %v2545, %v2490
    %v2556 = vadd.f32 %v2554, %v2555
    %v2557 = vld [vmem:[#allocation5 + $0x20] sm:$0xff]
    %v2558 = vld [vmem:[#allocation5 + $0x28] sm:$0xff]
    %v2559 = vpack.c.bf16 %v2556, %v2556
    %2561 = vrot.lane.b32.xlu0 %v2559, 64
    %v2562 = vpop.permute.xlu0 %2561
    %v2564 = vsel %vm271, %v2562, 0
    %2566 = vmatprep.subr.bf16.mxu0 %v2419
    %2567 = vmatpush1.bf16.msra.mxu0 %v2418
    %2568 = vmatprep.subr.bf16.mxu0 %v2421
    %2569 = vmatpush1.bf16.msra.mxu0 %v2420
    %2570 = vmatprep.subr.bf16.mxu0 %v2423
    %2571 = vmatpush1.bf16.msra.mxu0 %v2422
    %2572 = vmatprep.subr.bf16.mxu0 %v2425
    %2573 = vmatpush1.bf16.msra.mxu0 %v2424
    %2574 = vmatprep.subr.bf16.mxu0 0
    %2575 = vmatpush1.bf16.msra.mxu0 0
    %2576 = vmatprep.subr.bf16.mxu0 0
    %2577 = vmatpush1.bf16.msra.mxu0 0
    %2578 = vmatprep.subr.bf16.mxu0 0
    %2579 = vmatpush1.bf16.msra.mxu0 0
    %2580 = vmatprep.subr.bf16.mxu0 0
    %2581 = vmatpush1.bf16.msra.mxu0 0
    %2582 = vmatprep.subr.bf16.mxu0 0
    %2583 = vmatpush1.bf16.msra.mxu0 0
    %2584 = vmatprep.subr.bf16.mxu0 0
    %2585 = vmatpush1.bf16.msra.mxu0 0
    %2586 = vmatprep.subr.bf16.mxu0 0
    %2587 = vmatpush1.bf16.msra.mxu0 0
    %2588 = vmatprep.subr.bf16.mxu0 0
    %2589 = vmatpush1.bf16.msra.mxu0 0
    %2590 = vmatprep.subr.bf16.mxu0 0
    %2591 = vmatpush1.bf16.msra.mxu0 0
    %2592 = vmatprep.subr.bf16.mxu0 0
    %2593 = vmatpush1.bf16.msra.mxu0 0
    %2594 = vmatprep.subr.bf16.mxu0 0
    %2595 = vmatpush1.bf16.msra.mxu0 0
    %2596 = vmatprep.subr.bf16.mxu0 0
    %2597 = vmatpush1.bf16.msra.mxu0 0
    %2598 = vmatprep.mubr.bf16.mxu0 0
    %2599 = vmatmul.mubr.bf16.gmra.mrb[0].mxu0 %v2564
    %v2600 = vpop.f32.mrb[0].mxu0
    %v2601 = vadd.f32 %v2387, %v2600
    %v2602 = vpop.f32.mrb[0].mxu0
    %v2603 = vadd.f32 %v2391, %v2602
    %v2604 = vpop.f32.mrb[0].mxu0
    %v2605 = vpop.f32.mrb[0].mxu0
    %2606 = vdwg.mxu0
    %v2607 = vadd.f32 %v2557, %v2601
    %v2608 = vmul.f32 %v2607, 0.5
    %v2609 = vtanh.pop %v2608
    %v2610 = vmul.f32 %v2609, 0.5
    %v2611 = vadd.f32 %v2610, 0.5
    %v2612 = vmul.f32 %v2611, %v2603
    %v2613 = vadd.f32 %v2558, %v2612
    %v2614 = vtanh.pop %v2613
    %v2615 = vsub.f32 1.0, %v2611
    %2617 = vrot.lane.b32.xlu0 %v2614, 64
    %v2618 = vpop.permute.xlu0 %2617
    %v2620 = vmul.f32 %v2615, %v2618
    %v2621 = vmul.f32 %v2611, %v2556
    %v2622 = vadd.f32 %v2620, %v2621
    %v2623 = vld [vmem:[#allocation5 + $0x30] sm:$0xff]
    %v2624 = vld [vmem:[#allocation5 + $0x38] sm:$0xff]
    %v2625 = vpack.c.bf16 %v2622, %v2622
    %2627 = vrot.lane.b32.xlu0 %v2625, 64
    %v2628 = vpop.permute.xlu0 %2627
    %v2630 = vsel %vm271, %v2628, 0
    %2632 = vmatprep.subr.bf16.mxu0 %v2419
    %2633 = vmatpush1.bf16.msra.mxu0 %v2418
    %2634 = vmatprep.subr.bf16.mxu0 %v2421
    %2635 = vmatpush1.bf16.msra.mxu0 %v2420
    %2636 = vmatprep.subr.bf16.mxu0 %v2423
    %2637 = vmatpush1.bf16.msra.mxu0 %v2422
    %2638 = vmatprep.subr.bf16.mxu0 %v2425
    %2639 = vmatpush1.bf16.msra.mxu0 %v2424
    %2640 = vmatprep.subr.bf16.mxu0 0
    %2641 = vmatpush1.bf16.msra.mxu0 0
    %2642 = vmatprep.subr.bf16.mxu0 0
    %2643 = vmatpush1.bf16.msra.mxu0 0
    %2644 = vmatprep.subr.bf16.mxu0 0
    %2645 = vmatpush1.bf16.msra.mxu0 0
    %2646 = vmatprep.subr.bf16.mxu0 0
    %2647 = vmatpush1.bf16.msra.mxu0 0
    %2648 = vmatprep.subr.bf16.mxu0 0
    %2649 = vmatpush1.bf16.msra.mxu0 0
    %2650 = vmatprep.subr.bf16.mxu0 0
    %2651 = vmatpush1.bf16.msra.mxu0 0
    %2652 = vmatprep.subr.bf16.mxu0 0
    %2653 = vmatpush1.bf16.msra.mxu0 0
    %2654 = vmatprep.subr.bf16.mxu0 0
    %2655 = vmatpush1.bf16.msra.mxu0 0
    %2656 = vmatprep.subr.bf16.mxu0 0
    %2657 = vmatpush1.bf16.msra.mxu0 0
    %2658 = vmatprep.subr.bf16.mxu0 0
    %2659 = vmatpush1.bf16.msra.mxu0 0
    %2660 = vmatprep.subr.bf16.mxu0 0
    %2661 = vmatpush1.bf16.msra.mxu0 0
    %2662 = vmatprep.subr.bf16.mxu0 0
    %2663 = vmatpush1.bf16.msra.mxu0 0
    %2664 = vmatprep.mubr.bf16.mxu0 0
    %2665 = vmatmul.mubr.bf16.gmra.mrb[0].mxu0 %v2630
    %v2666 = vpop.f32.mrb[0].mxu0
    %v2667 = vadd.f32 %v2387, %v2666
    %v2668 = vpop.f32.mrb[0].mxu0
    %v2669 = vadd.f32 %v2391, %v2668
    %v2670 = vpop.f32.mrb[0].mxu0
    %v2671 = vpop.f32.mrb[0].mxu0
    %2672 = vdwg.mxu0
    %v2673 = vadd.f32 %v2623, %v2667
    %v2674 = vmul.f32 %v2673, 0.5
    %v2675 = vtanh.pop %v2674
    %v2676 = vmul.f32 %v2675, 0.5
    %v2677 = vadd.f32 %v2676, 0.5
    %v2678 = vmul.f32 %v2677, %v2669
    %v2679 = vadd.f32 %v2624, %v2678
    %v2680 = vtanh.pop %v2679
    %v2681 = vsub.f32 1.0, %v2677
    %2683 = vrot.lane.b32.xlu0 %v2680, 64
    %v2684 = vpop.permute.xlu0 %2683
    %v2686 = vmul.f32 %v2681, %v2684
    %v2687 = vmul.f32 %v2677, %v2622
    %v2688 = vadd.f32 %v2686, %v2687
    %v2689 = vld [vmem:[#allocation5 + $0x40] sm:$0xff]
    %v2690 = vld [vmem:[#allocation5 + $0x48] sm:$0xff]
    %v2691 = vpack.c.bf16 %v2688, %v2688
    %2693 = vrot.lane.b32.xlu0 %v2691, 64
    %v2694 = vpop.permute.xlu0 %2693
    %v2696 = vsel %vm271, %v2694, 0
    %2698 = vmatprep.subr.bf16.mxu0 %v2419
    %2699 = vmatpush1.bf16.msra.mxu0 %v2418
    %2700 = vmatprep.subr.bf16.mxu0 %v2421
    %2701 = vmatpush1.bf16.msra.mxu0 %v2420
    %2702 = vmatprep.subr.bf16.mxu0 %v2423
    %2703 = vmatpush1.bf16.msra.mxu0 %v2422
    %2704 = vmatprep.subr.bf16.mxu0 %v2425
    %2705 = vmatpush1.bf16.msra.mxu0 %v2424
    %2706 = vmatprep.subr.bf16.mxu0 0
    %2707 = vmatpush1.bf16.msra.mxu0 0
    %2708 = vmatprep.subr.bf16.mxu0 0
    %2709 = vmatpush1.bf16.msra.mxu0 0
    %2710 = vmatprep.subr.bf16.mxu0 0
    %2711 = vmatpush1.bf16.msra.mxu0 0
    %2712 = vmatprep.subr.bf16.mxu0 0
    %2713 = vmatpush1.bf16.msra.mxu0 0
    %2714 = vmatprep.subr.bf16.mxu0 0
    %2715 = vmatpush1.bf16.msra.mxu0 0
    %2716 = vmatprep.subr.bf16.mxu0 0
    %2717 = vmatpush1.bf16.msra.mxu0 0
    %2718 = vmatprep.subr.bf16.mxu0 0
    %2719 = vmatpush1.bf16.msra.mxu0 0
    %2720 = vmatprep.subr.bf16.mxu0 0
    %2721 = vmatpush1.bf16.msra.mxu0 0
    %2722 = vmatprep.subr.bf16.mxu0 0
    %2723 = vmatpush1.bf16.msra.mxu0 0
    %2724 = vmatprep.subr.bf16.mxu0 0
    %2725 = vmatpush1.bf16.msra.mxu0 0
    %2726 = vmatprep.subr.bf16.mxu0 0
    %2727 = vmatpush1.bf16.msra.mxu0 0
    %2728 = vmatprep.subr.bf16.mxu0 0
    %2729 = vmatpush1.bf16.msra.mxu0 0
    %2730 = vmatprep.mubr.bf16.mxu0 0
    %2731 = vmatmul.mubr.bf16.gmra.mrb[0].mxu0 %v2696
    %v2732 = vpop.f32.mrb[0].mxu0
    %v2733 = vadd.f32 %v2387, %v2732
    %v2734 = vpop.f32.mrb[0].mxu0
    %v2735 = vadd.f32 %v2391, %v2734
    %v2736 = vpop.f32.mrb[0].mxu0
    %v2737 = vpop.f32.mrb[0].mxu0
    %2738 = vdwg.mxu0
    %v2739 = vadd.f32 %v2689, %v2733
    %v2740 = vmul.f32 %v2739, 0.5
    %v2741 = vtanh.pop %v2740
    %v2742 = vmul.f32 %v2741, 0.5
    %v2743 = vadd.f32 %v2742, 0.5
    %v2744 = vmul.f32 %v2743, %v2735
    %v2745 = vadd.f32 %v2690, %v2744
    %v2746 = vtanh.pop %v2745
    %v2747 = vsub.f32 1.0, %v2743
    %2749 = vrot.lane.b32.xlu0 %v2746, 64
    %v2750 = vpop.permute.xlu0 %2749
    %v2752 = vmul.f32 %v2747, %v2750
    %v2753 = vmul.f32 %v2743, %v2688
    %v2754 = vadd.f32 %v2752, %v2753
    %v2755 = vld [vmem:[#allocation5 + $0x50] sm:$0xff]
    %v2756 = vld [vmem:[#allocation5 + $0x58] sm:$0xff]
    %v2757 = vpack.c.bf16 %v2754, %v2754
    %2759 = vrot.lane.b32.xlu0 %v2757, 64
    %v2760 = vpop.permute.xlu0 %2759
    %v2762 = vsel %vm271, %v2760, 0
    %2764 = vmatprep.subr.bf16.mxu0 %v2419
    %2765 = vmatpush1.bf16.msra.mxu0 %v2418
    %2766 = vmatprep.subr.bf16.mxu0 %v2421
    %2767 = vmatpush1.bf16.msra.mxu0 %v2420
    %2768 = vmatprep.subr.bf16.mxu0 %v2423
    %2769 = vmatpush1.bf16.msra.mxu0 %v2422
    %2770 = vmatprep.subr.bf16.mxu0 %v2425
    %2771 = vmatpush1.bf16.msra.mxu0 %v2424
    %2772 = vmatprep.subr.bf16.mxu0 0
    %2773 = vmatpush1.bf16.msra.mxu0 0
    %2774 = vmatprep.subr.bf16.mxu0 0
    %2775 = vmatpush1.bf16.msra.mxu0 0
    %2776 = vmatprep.subr.bf16.mxu0 0
    %2777 = vmatpush1.bf16.msra.mxu0 0
    %2778 = vmatprep.subr.bf16.mxu0 0
    %2779 = vmatpush1.bf16.msra.mxu0 0
    %2780 = vmatprep.subr.bf16.mxu0 0
    %2781 = vmatpush1.bf16.msra.mxu0 0
    %2782 = vmatprep.subr.bf16.mxu0 0
    %2783 = vmatpush1.bf16.msra.mxu0 0
    %2784 = vmatprep.subr.bf16.mxu0 0
    %2785 = vmatpush1.bf16.msra.mxu0 0
    %2786 = vmatprep.subr.bf16.mxu0 0
    %2787 = vmatpush1.bf16.msra.mxu0 0
    %2788 = vmatprep.subr.bf16.mxu0 0
    %2789 = vmatpush1.bf16.msra.mxu0 0
    %2790 = vmatprep.subr.bf16.mxu0 0
    %2791 = vmatpush1.bf16.msra.mxu0 0
    %2792 = vmatprep.subr.bf16.mxu0 0
    %2793 = vmatpush1.bf16.msra.mxu0 0
    %2794 = vmatprep.subr.bf16.mxu0 0
    %2795 = vmatpush1.bf16.msra.mxu0 0
    %2796 = vmatprep.mubr.bf16.mxu0 0
    %2797 = vmatmul.mubr.bf16.gmra.mrb[0].mxu0 %v2762
    %v2798 = vpop.f32.mrb[0].mxu0
    %v2799 = vadd.f32 %v2387, %v2798
    %v2800 = vpop.f32.mrb[0].mxu0
    %v2801 = vadd.f32 %v2391, %v2800
    %v2802 = vpop.f32.mrb[0].mxu0
    %v2803 = vpop.f32.mrb[0].mxu0
    %2804 = vdwg.mxu0
    %v2805 = vadd.f32 %v2755, %v2799
    %v2806 = vmul.f32 %v2805, 0.5
    %v2807 = vtanh.pop %v2806
    %v2808 = vmul.f32 %v2807, 0.5
    %v2809 = vadd.f32 %v2808, 0.5
    %v2810 = vmul.f32 %v2809, %v2801
    %v2811 = vadd.f32 %v2756, %v2810
    %v2812 = vtanh.pop %v2811
    %v2813 = vsub.f32 1.0, %v2809
    %2815 = vrot.lane.b32.xlu0 %v2812, 64
    %v2816 = vpop.permute.xlu0 %2815
    %v2818 = vmul.f32 %v2813, %v2816
    %v2819 = vmul.f32 %v2809, %v2754
    %v2820 = vadd.f32 %v2818, %v2819
    %v2821 = vld [vmem:[#allocation5 + $0x60] sm:$0xff]
    %v2822 = vld [vmem:[#allocation5 + $0x68] sm:$0xff]
    %v2823 = vpack.c.bf16 %v2820, %v2820
    %2825 = vrot.lane.b32.xlu0 %v2823, 64
    %v2826 = vpop.permute.xlu0 %2825
    %v2828 = vsel %vm271, %v2826, 0
    %2830 = vmatprep.subr.bf16.mxu0 %v2419
    %2831 = vmatpush1.bf16.msra.mxu0 %v2418
    %2832 = vmatprep.subr.bf16.mxu0 %v2421
    %2833 = vmatpush1.bf16.msra.mxu0 %v2420
    %2834 = vmatprep.subr.bf16.mxu0 %v2423
    %2835 = vmatpush1.bf16.msra.mxu0 %v2422
    %2836 = vmatprep.subr.bf16.mxu0 %v2425
    %2837 = vmatpush1.bf16.msra.mxu0 %v2424
    %2838 = vmatprep.subr.bf16.mxu0 0
    %2839 = vmatpush1.bf16.msra.mxu0 0
    %2840 = vmatprep.subr.bf16.mxu0 0
    %2841 = vmatpush1.bf16.msra.mxu0 0
    %2842 = vmatprep.subr.bf16.mxu0 0
    %2843 = vmatpush1.bf16.msra.mxu0 0
    %2844 = vmatprep.subr.bf16.mxu0 0
    %2845 = vmatpush1.bf16.msra.mxu0 0
    %2846 = vmatprep.subr.bf16.mxu0 0
    %2847 = vmatpush1.bf16.msra.mxu0 0
    %2848 = vmatprep.subr.bf16.mxu0 0
    %2849 = vmatpush1.bf16.msra.mxu0 0
    %2850 = vmatprep.subr.bf16.mxu0 0
    %2851 = vmatpush1.bf16.msra.mxu0 0
    %2852 = vmatprep.subr.bf16.mxu0 0
    %2853 = vmatpush1.bf16.msra.mxu0 0
    %2854 = vmatprep.subr.bf16.mxu0 0
    %2855 = vmatpush1.bf16.msra.mxu0 0
    %2856 = vmatprep.subr.bf16.mxu0 0
    %2857 = vmatpush1.bf16.msra.mxu0 0
    %2858 = vmatprep.subr.bf16.mxu0 0
    %2859 = vmatpush1.bf16.msra.mxu0 0
    %2860 = vmatprep.subr.bf16.mxu0 0
    %2861 = vmatpush1.bf16.msra.mxu0 0
    %2862 = vmatprep.mubr.bf16.mxu0 0
    %2863 = vmatmul.mubr.bf16.gmra.mrb[0].mxu0 %v2828
    %v2864 = vpop.f32.mrb[0].mxu0
    %v2865 = vadd.f32 %v2387, %v2864
    %v2866 = vpop.f32.mrb[0].mxu0
    %v2867 = vadd.f32 %v2391, %v2866
    %v2868 = vpop.f32.mrb[0].mxu0
    %v2869 = vpop.f32.mrb[0].mxu0
    %2870 = vdwg.mxu0
    %v2871 = vadd.f32 %v2821, %v2865
    %v2872 = vmul.f32 %v2871, 0.5
    %v2873 = vtanh.pop %v2872
    %v2874 = vmul.f32 %v2873, 0.5
    %v2875 = vadd.f32 %v2874, 0.5
    %v2876 = vmul.f32 %v2875, %v2867
    %v2877 = vadd.f32 %v2822, %v2876
    %v2878 = vtanh.pop %v2877
    %v2879 = vsub.f32 1.0, %v2875
    %2881 = vrot.lane.b32.xlu0 %v2878, 64
    %v2882 = vpop.permute.xlu0 %2881
    %v2884 = vmul.f32 %v2879, %v2882
    %v2885 = vmul.f32 %v2875, %v2820
    %v2886 = vadd.f32 %v2884, %v2885
    %v2887 = vld [vmem:[#allocation5 + $0x70] sm:$0xff]
    %v2888 = vld [vmem:[#allocation5 + $0x78] sm:$0xff]
    %v2889 = vpack.c.bf16 %v2886, %v2886
    %2891 = vrot.lane.b32.xlu0 %v2889, 64
    %v2892 = vpop.permute.xlu0 %2891
    %v2894 = vsel %vm271, %v2892, 0
    %2896 = vmatprep.subr.bf16.mxu0 %v2419
    %2897 = vmatpush1.bf16.msra.mxu0 %v2418
    %2898 = vmatprep.subr.bf16.mxu0 %v2421
    %2899 = vmatpush1.bf16.msra.mxu0 %v2420
    %2900 = vmatprep.subr.bf16.mxu0 %v2423
    %2901 = vmatpush1.bf16.msra.mxu0 %v2422
    %2902 = vmatprep.subr.bf16.mxu0 %v2425
    %2903 = vmatpush1.bf16.msra.mxu0 %v2424
    %2904 = vmatprep.subr.bf16.mxu0 0
    %2905 = vmatpush1.bf16.msra.mxu0 0
    %2906 = vmatprep.subr.bf16.mxu0 0
    %2907 = vmatpush1.bf16.msra.mxu0 0
    %2908 = vmatprep.subr.bf16.mxu0 0
    %2909 = vmatpush1.bf16.msra.mxu0 0
    %2910 = vmatprep.subr.bf16.mxu0 0
    %2911 = vmatpush1.bf16.msra.mxu0 0
    %2912 = vmatprep.subr.bf16.mxu0 0
    %2913 = vmatpush1.bf16.msra.mxu0 0
    %2914 = vmatprep.subr.bf16.mxu0 0
    %2915 = vmatpush1.bf16.msra.mxu0 0
    %2916 = vmatprep.subr.bf16.mxu0 0
    %2917 = vmatpush1.bf16.msra.mxu0 0
    %2918 = vmatprep.subr.bf16.mxu0 0
    %2919 = vmatpush1.bf16.msra.mxu0 0
    %2920 = vmatprep.subr.bf16.mxu0 0
    %2921 = vmatpush1.bf16.msra.mxu0 0
    %2922 = vmatprep.subr.bf16.mxu0 0
    %2923 = vmatpush1.bf16.msra.mxu0 0
    %2924 = vmatprep.subr.bf16.mxu0 0
    %2925 = vmatpush1.bf16.msra.mxu0 0
    %2926 = vmatprep.subr.bf16.mxu0 0
    %2927 = vmatpush1.bf16.msra.mxu0 0
    %2928 = vmatprep.mubr.bf16.mxu0 0
    %2929 = vmatmul.mubr.bf16.gmra.mrb[0].mxu0 %v2894
    %v2930 = vpop.f32.mrb[0].mxu0
    %v2931 = vadd.f32 %v2387, %v2930
    %v2932 = vpop.f32.mrb[0].mxu0
    %v2933 = vadd.f32 %v2391, %v2932
    %v2934 = vpop.f32.mrb[0].mxu0
    %v2935 = vpop.f32.mrb[0].mxu0
    %2936 = vdwg.mxu0
    %v2937 = vadd.f32 %v2887, %v2931
    %v2938 = vmul.f32 %v2937, 0.5
    %v2939 = vtanh.pop %v2938
    %v2940 = vmul.f32 %v2939, 0.5
    %v2941 = vadd.f32 %v2940, 0.5
    %v2942 = vmul.f32 %v2941, %v2933
    %v2943 = vadd.f32 %v2888, %v2942
    %v2944 = vtanh.pop %v2943
    %v2945 = vsub.f32 1.0, %v2941
    %2947 = vrot.lane.b32.xlu0 %v2944, 64
    %v2948 = vpop.permute.xlu0 %2947
    %v2950 = vmul.f32 %v2945, %v2948
    %v2951 = vmul.f32 %v2941, %v2886
    %v2952 = vadd.f32 %v2950, %v2951
    %v2953 = vpack.c.bf16 %v2952, %v2952
    %v2954 = vld [vmem:[%s13] sm:$0xf]
    %v2955 = vld [vmem:[%s13 + $0x4] sm:$0xf]
    %v2956 = vld [vmem:[%s13 + $0x8] sm:$0xf]
    %v2957 = vld [vmem:[%s13 + $0xc] sm:$0xf]
    %v2958 = vld [vmem:[%s13 + $0x10] sm:$0xf]
    %v2959 = vld [vmem:[%s13 + $0x14] sm:$0xf]
    %v2960 = vld [vmem:[%s13 + $0x18] sm:$0xf]
    %v2961 = vld [vmem:[%s13 + $0x1c] sm:$0xf]
    %v2962 = vld [vmem:[%s14] sm:$0x1]
    %v2964 = vlaneseq
    %v2965 = vshrl.u32 %v2964, 7
    %v2966 = vsub.s32 0, %v2965
    %v2967 = vrot.slane %v2962, %v2966
    %2970 = vrot.lane.b32.xlu0 %v2953, 64
    %v2971 = vpop.permute.xlu0 %2970
    %v2980 = vunpack.c.l.b16 %v2954
    %v2981 = vunpack.c.l.b16 %v2955
    %v2982 = vunpack.c.l.b16 %v2956
    %v2983 = vunpack.c.l.b16 %v2957
    %v2984 = vunpack.c.l.b16 %v2958
    %v2985 = vunpack.c.l.b16 %v2959
    %v2986 = vunpack.c.l.b16 %v2960
    %v2987 = vunpack.c.l.b16 %v2961
    %v2988 = vpack.c.b16 %v2981, %v2980
    %v2989 = vpack.c.b16 %v2983, %v2982
    %v2990 = vpack.c.b16 %v2985, %v2984
    %v2991 = vpack.c.b16 %v2987, %v2986
    %v2997 = vsel %vm271, %v2971, 0
    %2999 = vmatprep.subr.bf16.mxu0 0
    %3000 = vmatpush1.bf16.msra.mxu0 %v2988
    %3001 = vmatprep.subr.bf16.mxu0 0
    %3002 = vmatpush1.bf16.msra.mxu0 %v2989
    %3003 = vmatprep.subr.bf16.mxu0 0
    %3004 = vmatpush1.bf16.msra.mxu0 %v2990
    %3005 = vmatprep.subr.bf16.mxu0 0
    %3006 = vmatpush1.bf16.msra.mxu0 %v2991
    %3007 = vmatprep.subr.bf16.mxu0 0
    %3008 = vmatpush1.bf16.msra.mxu0 0
    %3009 = vmatprep.subr.bf16.mxu0 0
    %3010 = vmatpush1.bf16.msra.mxu0 0
    %3011 = vmatprep.subr.bf16.mxu0 0
    %3012 = vmatpush1.bf16.msra.mxu0 0
    %3013 = vmatprep.subr.bf16.mxu0 0
    %3014 = vmatpush1.bf16.msra.mxu0 0
    %3015 = vmatprep.subr.bf16.mxu0 0
    %3016 = vmatpush1.bf16.msra.mxu0 0
    %3017 = vmatprep.subr.bf16.mxu0 0
    %3018 = vmatpush1.bf16.msra.mxu0 0
    %3019 = vmatprep.subr.bf16.mxu0 0
    %3020 = vmatpush1.bf16.msra.mxu0 0
    %3021 = vmatprep.subr.bf16.mxu0 0
    %3022 = vmatpush1.bf16.msra.mxu0 0
    %3023 = vmatprep.subr.bf16.mxu0 0
    %3024 = vmatpush1.bf16.msra.mxu0 0
    %3025 = vmatprep.subr.bf16.mxu0 0
    %3026 = vmatpush1.bf16.msra.mxu0 0
    %3027 = vmatprep.subr.bf16.mxu0 0
    %3028 = vmatpush1.bf16.msra.mxu0 0
    %3029 = vmatprep.subr.bf16.mxu0 0
    %3030 = vmatpush1.bf16.msra.mxu0 0
    %3031 = vmatprep.mubr.bf16.mxu0 0
    %3032 = vmatmul.mubr.bf16.gmra.mrb[0].mxu0 %v2997
    %v3033 = vpop.f32.mrb[0].mxu0
    %v3034 = vadd.f32 %v2967, %v3033
    %v3035 = vpop.f32.mrb[0].mxu0
    %v3036 = vpop.f32.mrb[0].mxu0
    %v3037 = vpop.f32.mrb[0].mxu0
    %3038 = vdwg.mxu0
    %vm3039 = vcmask 74752
    %3040 = vst.msk [vmem:[#allocation6] sm:$0x3] %vm3039, %v3034
    // Predicated region
    $region62: #{tpu_custom_call.1} parent=1 // pred_check
      _
    $region63: #{tpu_custom_call.1} parent=1 // pred_check_branch
      %3042 = sbr.rel (0) target = $region65
    $region64: #{tpu_custom_call.1} parent=1 // pred_region
      %s3044 = ssub.s32 32, 32
      %3045 = vsyncadd [#allocation7], %s3044
      %s3047 = sshll.u32 [#allocation6], 4
      %s3048 = int_to_ptr.vmem [resolvable:$true] %s3047
      %3050 = dma.vmem_to_hbm [thread:$0]  %s3048, 32, %s15, [#allocation7]
    $region65: #{tpu_custom_call.1} parent=1 // pred_fallthru
      _
    // Predicated region
    $region66: #{tpu_custom_call.1} parent=1 // pred_check
      _
    $region67: #{tpu_custom_call.1} parent=1 // pred_check_branch
      %3052 = sbr.rel (0) target = $region69
    $region68: #{tpu_custom_call.1} parent=1 // pred_region
      %3053 = dma.done [#allocation7], 32
    $region69: #{tpu_custom_call.1} parent=1 // pred_fallthru
      _
    %3054 = vsyncpa [#allocation7], 1

</llo_original>
